<compile_context>
chip_gen: v6e
topology: v6e:2x2x1
jax: 0.10.0
libtpu: 0.0.40
codegen_flags: <defaults>
</compile_context>

<pallas_src>
import math

import jax
import jax.numpy as jnp
from jax.experimental import pallas as pl
from jax.experimental.pallas import tpu as pltpu


# ----------------------------------------------------------------------------
# Kernel
# ----------------------------------------------------------------------------
def mnist_fused_kernel(x_ref,
                       w1_ref, b1_ref, cs1_ref, rs1_ref,
                       w2_ref, b2_ref, cs2_ref, rs2_ref,
                       f1_ref, f1b_ref, f2_ref, f2b_ref,
                       out_ref, a1_ref):
    bt = x_ref.shape[0]
    n1 = bt * 32          # stage-1 stacked rows (32-row slot per image)
    n2 = bt * 16          # stage-2 stacked rows (16-row slot per image)
    f32 = jnp.float32

    # ---- Stage 1: Conv2d(1->6, 3x3, pad=1) + ReLU + MaxPool2d(2, 2) ----
    # A1[b, q, kh*128 + w] = x[b, q-1+(kh-1), w]  (zero outside the image), so that
    # Y1[b*32 + q] = A1_row @ W1band is the conv output for spatial row h = q-1 of image b.
    # Lane offsets of the three writes are 0/128/256 (aligned); everything else stays zero.
    a1_ref[...] = jnp.zeros_like(a1_ref)
    a1_ref[:, 2:29, 0:28] = x_ref[:, 0, 0:27, :]      # kh = 0
    a1_ref[:, 1:29, 128:156] = x_ref[:, 0, :, :]      # kh = 1
    a1_ref[:, 1:28, 256:284] = x_ref[:, 0, 1:28, :]   # kh = 2
    a1 = a1_ref[...].reshape(n1, 384)

    y1 = jnp.dot(a1, w1_ref[...], preferred_element_type=f32)          # (n1, 168)
    y1 = jnp.maximum(y1 + b1_ref[...], 0.0)
    # 2x2 max-pool: width via lane-selection matmuls, then height via a row-selection matmul
    # that simultaneously produces the 3 kh-shifted, zero-padded stacks stage 2 needs.
    y1w = jnp.maximum(jnp.dot(y1, cs1_ref[0], preferred_element_type=f32),
                      jnp.dot(y1, cs1_ref[1], preferred_element_type=f32))   # (n1, 84)
    p1s = jnp.maximum(jnp.dot(rs1_ref[0], y1w, preferred_element_type=f32),
                      jnp.dot(rs1_ref[1], y1w, preferred_element_type=f32))  # (3*n2, 84)

    # ---- Stage 2: Conv2d(6->12, 3x3, pad=1) + ReLU + MaxPool2d(2, 2) ----
    y2 = jnp.zeros((n2, 168), f32)
    for kh in range(3):
        y2 = y2 + jnp.dot(p1s[kh * n2:(kh + 1) * n2, :], w2_ref[kh],
                          preferred_element_type=f32)                  # (n2, 168)
    y2 = jnp.maximum(y2 + b2_ref[...], 0.0)
    y2w = jnp.maximum(jnp.dot(y2, cs2_ref[0], preferred_element_type=f32),
                      jnp.dot(y2, cs2_ref[1], preferred_element_type=f32))   # (n2, 84)
    # Height pool, emitted h-major (row h*bt + b) so each per-h fc1 slab is a contiguous,
    # 8-aligned row slice.
    p2 = jnp.maximum(jnp.dot(rs2_ref[0], y2w, preferred_element_type=f32),
                     jnp.dot(rs2_ref[1], y2w, preferred_element_type=f32))   # (7*bt, 84)

    # ---- Classifier: Linear(588->40) -> ReLU -> Linear(40->10, padded to 128 lanes) ----
    acc = jnp.zeros((bt, 40), f32)
    for h in range(7):
        acc = acc + jnp.dot(p2[h * bt:(h + 1) * bt, :], f1_ref[h],
                            preferred_element_type=f32)
    hidden = jnp.maximum(acc + f1b_ref[...], 0.0)                       # (bt, 40)
    out_ref[...] = (jnp.dot(hidden, f2_ref[...], preferred_element_type=f32)
                    + f2b_ref[...])                                     # (bt, 128)


# ----------------------------------------------------------------------------
# Wrapper-side constant construction (pure functions of parameters / bt)
# ----------------------------------------------------------------------------
def _band_weights(w, width):
    """(cout,cin,3,3) conv weights -> (3, cin*width, cout*width) per-kh banded matrices.
    These implement the kw loop AND the width zero-padding of a 3x3 / pad=1 conv, so the
    activations never need width padding."""
    cout, cin = w.shape[:2]
    wi = jnp.arange(width)[:, None]
    wo = jnp.arange(width)[None, :]
    kw = wi - wo + 1
    valid = (kw >= 0) & (kw <= 2)
    b = w[:, :, :, jnp.clip(kw, 0, 2)]                     # (cout, cin, 3, width, width)
    b = jnp.where(valid[None, None, None], b, 0.0)
    b = jnp.transpose(b, (2, 1, 3, 0, 4))                  # (kh, ci, wi, co, wo)
    return b.reshape(3, cin * width, cout * width).astype(jnp.float32)


def _col_pool(cout, win):
    """Even/odd width-pool lane-selection matrices: (2, cout*win, cout*(win//2))."""
    wout = win // 2
    r = jnp.arange(cout * win)[:, None]
    c = jnp.arange(cout * wout)[None, :]
    same = (r // win) == (c // wout)
    e = same & ((r % win) == 2 * (c % wout))
    o = same & ((r % win) == 2 * (c % wout) + 1)
    return jnp.stack([e, o]).astype(jnp.float32)


def _row_pool1_stacked(bt):
    """Stage-1 height-pool row selection emitting the 3 kh-shifted, zero-padded stage-2
    input stacks: (2, 3*bt*16, bt*32).  Output row kh*(bt*16) + b*16 + q holds pooled
    row (q + kh - 2) of image b, or zero when out of range."""
    rows, cols = 3 * bt * 16, bt * 32
    idx = jnp.arange(rows)[:, None]
    kh = idx // (bt * 16)
    rem = idx % (bt * 16)
    b, q = rem // 16, rem % 16
    r = q + kh - 2
    valid = (r >= 0) & (r <= 13)
    src = jnp.arange(cols)[None, :]
    e = valid & (src == b * 32 + 1 + 2 * r)
    o = valid & (src == b * 32 + 2 + 2 * r)
    return jnp.stack([e, o]).astype(jnp.float32)


def _row_pool2(bt):
    """Stage-2 height-pool row selection, h-major output: (2, 7*bt, bt*16).
    Output row h*bt + b holds pooled row h of image b."""
    rows, cols = 7 * bt, bt * 16
    idx = jnp.arange(rows)[:, None]
    h, b = idx // bt, idx % bt
    src = jnp.arange(cols)[None, :]
    e = src == b * 16 + 1 + 2 * h
    o = src == b * 16 + 2 + 2 * h
    return jnp.stack([e, o]).astype(jnp.float32)


def _mnist_forward(x, params, bt=8):
    """Full MNISTModel forward.  x: (B, 1, 28, 28) float32 -> (B, 10)."""
    B = x.shape[0]
    bp = -(-B // bt) * bt
    if bp != B:
        x = jnp.pad(x, ((0, bp - B), (0, 0), (0, 0), (0, 0)))
    x = x.astype(jnp.float32)

    w1k = _band_weights(params["c1_w"], 28)                                  # (3, 28, 168)
    w1 = jnp.zeros((3, 128, 168), jnp.float32).at[:, :28, :].set(w1k).reshape(384, 168)
    b1 = jnp.repeat(params["c1_b"].astype(jnp.float32), 28)[None, :]         # (1, 168)
    cs1 = _col_pool(6, 28)                                                   # (2, 168, 84)
    rs1 = _row_pool1_stacked(bt)                                             # (2, 3*bt*16, bt*32)
    w2 = _band_weights(params["c2_w"], 14)                                   # (3, 84, 168)
    b2 = jnp.repeat(params["c2_b"].astype(jnp.float32), 14)[None, :]         # (1, 168)
    cs2 = _col_pool(12, 14)                                                  # (2, 168, 84)
    rs2 = _row_pool2(bt)                                                     # (2, 7*bt, bt*16)
    # fc1 rows permuted from torch's NCHW flatten (c*49 + h*7 + w) to per-h (c*7 + w) slabs.
    f1 = (params["f1_w"].astype(jnp.float32)
          .reshape(12, 7, 7, 40).transpose(1, 0, 2, 3).reshape(7, 84, 40))
    f1b = params["f1_b"].astype(jnp.float32)[None, :]                        # (1, 40)
    f2 = jnp.zeros((40, 128), jnp.float32).at[:, :10].set(params["f2_w"])
    f2b = jnp.zeros((1, 128), jnp.float32).at[:, :10].set(params["f2_b"])

    consts = [w1, b1, cs1, rs1, w2, b2, cs2, rs2, f1, f1b, f2, f2b]

    def const_spec(a):
        zeros = (0,) * a.ndim
        return pl.BlockSpec(a.shape, lambda i, z=zeros: z)

    out = pl.pallas_call(
        mnist_fused_kernel,
        out_shape=jax.ShapeDtypeStruct((bp, 128), jnp.float32),
        grid=(bp // bt,),
        in_specs=[pl.BlockSpec((bt, 1, 28, 28), lambda i: (i, 0, 0, 0))]
                + [const_spec(a) for a in consts],
        out_specs=pl.BlockSpec((bt, 128), lambda i: (i, 0)),
        scratch_shapes=[pltpu.VMEM((bt, 32, 384), jnp.float32)],   # stage-1 im2col slots
        compiler_params=pltpu.CompilerParams(
            dimension_semantics=("parallel",)),        # v7x: shard batch over both TCs
    )(x, *consts)
    return out[:B, :10]


mnist_forward = jax.jit(_mnist_forward, static_argnames=("bt",))


# ----------------------------------------------------------------------------
# Pure-JAX reference (for verification)
# ----------------------------------------------------------------------------
def reference_forward(x, params):
    def conv_block(x, w, b):
        y = jax.lax.conv_general_dilated(
            x, w, window_strides=(1, 1), padding=((1, 1), (1, 1)),
            dimension_numbers=("NCHW", "OIHW", "NCHW"))
        y = y + b[None, :, None, None]
        y = jnp.maximum(y, 0.0)
        return jax.lax.reduce_window(y, -jnp.inf, jax.lax.max,
                                     (1, 1, 2, 2), (1, 1, 2, 2), "VALID")

    y = conv_block(x, params["c1_w"], params["c1_b"])
    y = conv_block(y, params["c2_w"], params["c2_b"])
    y = y.reshape(y.shape[0], -1)
    h = jnp.maximum(y @ params["f1_w"] + params["f1_b"], 0.0)
    return h @ params["f2_w"] + params["f2_b"]


# ----------------------------------------------------------------------------
# Deterministic parameter init (synthetic; shapes per MNISTModel.__init__)
# ----------------------------------------------------------------------------
def init_params(key):
    ks = jax.random.split(key, 8)

    def u(k, shape, fan_in):
        bound = 1.0 / math.sqrt(fan_in)
        return jax.random.uniform(k, shape, jnp.float32, -bound, bound)

    return {
        "c1_w": u(ks[0], (6, 1, 3, 3), 1 * 9),     # Conv2d(1, 6, 3, pad=1)
        "c1_b": u(ks[1], (6,), 1 * 9),
        "c2_w": u(ks[2], (12, 6, 3, 3), 6 * 9),    # Conv2d(6, 12, 3, pad=1)
        "c2_b": u(ks[3], (12,), 6 * 9),
        "f1_w": u(ks[4], (12 * 7 * 7, 40), 588),   # Linear(588, 40), stored (in, out)
        "f1_b": u(ks[5], (40,), 588),
        "f2_w": u(ks[6], (40, 10), 40),            # Linear(40, 10), stored (in, out)
        "f2_b": u(ks[7], (10,), 40),
    }


if __name__ == "__main__":
    root = jax.random.PRNGKey(0)
    k_params, k_x = jax.random.split(root)

    params = init_params(k_params)
    # MNIST-style input: the 12*7*7 classifier input implies 28x28 spatial, 1 channel.
    x = jax.random.normal(k_x, (16, 1, 28, 28), dtype=jnp.float32)

    out = jax.block_until_ready(mnist_forward(x, params, bt=8))
    ref = jax.block_until_ready(reference_forward(x, params))

    assert out.shape == (16, 10), out.shape
    assert jnp.allclose(out, ref, rtol=1e-3, atol=1e-3), (
        f"max abs err {jnp.max(jnp.abs(out - ref))}")

    print("KERNEL_OK")
</pallas_src>

<mosaic_0001>
module attributes {stable_mosaic.version = 11 : i64} {
  func.func @mnist_fused_kernel(%arg0: i32, %arg1: memref<8x1x28x28xf32, #tpu.memory_space<vmem>>, %arg2: memref<384x168xf32, #tpu.memory_space<vmem>>, %arg3: memref<1x168xf32, #tpu.memory_space<vmem>>, %arg4: memref<2x168x84xf32, #tpu.memory_space<vmem>>, %arg5: memref<2x384x256xf32, #tpu.memory_space<vmem>>, %arg6: memref<3x84x168xf32, #tpu.memory_space<vmem>>, %arg7: memref<1x168xf32, #tpu.memory_space<vmem>>, %arg8: memref<2x168x84xf32, #tpu.memory_space<vmem>>, %arg9: memref<2x56x128xf32, #tpu.memory_space<vmem>>, %arg10: memref<7x84x40xf32, #tpu.memory_space<vmem>>, %arg11: memref<1x40xf32, #tpu.memory_space<vmem>>, %arg12: memref<40x128xf32, #tpu.memory_space<vmem>>, %arg13: memref<1x128xf32, #tpu.memory_space<vmem>>, %arg14: memref<8x128xf32, #tpu.memory_space<vmem>>, %arg15: memref<8x32x384xf32, #tpu.memory_space<vmem>>) attributes {dimension_semantics = [#tpu.dimension_semantics<parallel>], iteration_bounds = array<i64: 2>, scalar_prefetch = 0 : i64, scratch_operands = 1 : i64, tpu.core_type = #tpu.core_type<tc>, window_params = [{transform_indices = @transform_0, window_bounds = array<i64: 8, 1, 28, 28>}, {pipeline_mode = #tpu.pipeline_mode<synchronous>, transform_indices = @transform_1, window_bounds = array<i64: 384, 168>}, {pipeline_mode = #tpu.pipeline_mode<synchronous>, transform_indices = @transform_2, window_bounds = array<i64: 1, 168>}, {pipeline_mode = #tpu.pipeline_mode<synchronous>, transform_indices = @transform_3, window_bounds = array<i64: 2, 168, 84>}, {pipeline_mode = #tpu.pipeline_mode<synchronous>, transform_indices = @transform_4, window_bounds = array<i64: 2, 384, 256>}, {pipeline_mode = #tpu.pipeline_mode<synchronous>, transform_indices = @transform_5, window_bounds = array<i64: 3, 84, 168>}, {pipeline_mode = #tpu.pipeline_mode<synchronous>, transform_indices = @transform_6, window_bounds = array<i64: 1, 168>}, {pipeline_mode = #tpu.pipeline_mode<synchronous>, transform_indices = @transform_7, window_bounds = array<i64: 2, 168, 84>}, {pipeline_mode = #tpu.pipeline_mode<synchronous>, transform_indices = @transform_8, window_bounds = array<i64: 2, 56, 128>}, {pipeline_mode = #tpu.pipeline_mode<synchronous>, transform_indices = @transform_9, window_bounds = array<i64: 7, 84, 40>}, {pipeline_mode = #tpu.pipeline_mode<synchronous>, transform_indices = @transform_10, window_bounds = array<i64: 1, 40>}, {pipeline_mode = #tpu.pipeline_mode<synchronous>, transform_indices = @transform_11, window_bounds = array<i64: 40, 128>}, {pipeline_mode = #tpu.pipeline_mode<synchronous>, transform_indices = @transform_12, window_bounds = array<i64: 1, 128>}, {transform_indices = @transform_13, window_bounds = array<i64: 8, 128>}]} {
    %cst = arith.constant 0.000000e+00 : f32
    %0 = vector.broadcast %cst : f32 to vector<8x32x384xf32>
    %c0 = arith.constant 0 : index
    %c0_0 = arith.constant 0 : index
    %c0_1 = arith.constant 0 : index
    %1 = vector.load %arg15[%c0, %c0_0, %c0_1] : memref<8x32x384xf32, #tpu.memory_space<vmem>>, vector<8x32x384xf32>
    tpu.vector_store %arg15[%c0, %c0_0, %c0_1], %0 {strides = array<i32>} : memref<8x32x384xf32, #tpu.memory_space<vmem>>, vector<8x32x384xf32>,
    %c0_2 = arith.constant 0 : index
    %c0_3 = arith.constant 0 : index
    %c0_4 = arith.constant 0 : index
    %c0_5 = arith.constant 0 : index
    %2 = vector.load %arg1[%c0_2, %c0_3, %c0_4, %c0_5] : memref<8x1x28x28xf32, #tpu.memory_space<vmem>>, vector<8x1x27x28xf32>
    %3 = vector.shape_cast %2 : vector<8x1x27x28xf32> to vector<8x27x28xf32>
    %c0_6 = arith.constant 0 : index
    %c2 = arith.constant 2 : index
    %c0_7 = arith.constant 0 : index
    %4 = vector.load %arg15[%c0_6, %c2, %c0_7] : memref<8x32x384xf32, #tpu.memory_space<vmem>>, vector<8x27x28xf32>
    tpu.vector_store %arg15[%c0_6, %c2, %c0_7], %3 {strides = array<i32>} : memref<8x32x384xf32, #tpu.memory_space<vmem>>, vector<8x27x28xf32>,
    %c0_8 = arith.constant 0 : index
    %c0_9 = arith.constant 0 : index
    %c0_10 = arith.constant 0 : index
    %c0_11 = arith.constant 0 : index
    %5 = vector.load %arg1[%c0_8, %c0_9, %c0_10, %c0_11] : memref<8x1x28x28xf32, #tpu.memory_space<vmem>>, vector<8x1x28x28xf32>
    %6 = vector.shape_cast %5 : vector<8x1x28x28xf32> to vector<8x28x28xf32>
    %c0_12 = arith.constant 0 : index
    %c1 = arith.constant 1 : index
    %c128 = arith.constant 128 : index
    %7 = vector.load %arg15[%c0_12, %c1, %c128] : memref<8x32x384xf32, #tpu.memory_space<vmem>>, vector<8x28x28xf32>
    tpu.vector_store %arg15[%c0_12, %c1, %c128], %6 {strides = array<i32>} : memref<8x32x384xf32, #tpu.memory_space<vmem>>, vector<8x28x28xf32>,
    %c0_13 = arith.constant 0 : index
    %c0_14 = arith.constant 0 : index
    %c1_15 = arith.constant 1 : index
    %c0_16 = arith.constant 0 : index
    %8 = vector.load %arg1[%c0_13, %c0_14, %c1_15, %c0_16] : memref<8x1x28x28xf32, #tpu.memory_space<vmem>>, vector<8x1x27x28xf32>
    %9 = vector.shape_cast %8 : vector<8x1x27x28xf32> to vector<8x27x28xf32>
    %c0_17 = arith.constant 0 : index
    %c1_18 = arith.constant 1 : index
    %c256 = arith.constant 256 : index
    %10 = vector.load %arg15[%c0_17, %c1_18, %c256] : memref<8x32x384xf32, #tpu.memory_space<vmem>>, vector<8x27x28xf32>
    tpu.vector_store %arg15[%c0_17, %c1_18, %c256], %9 {strides = array<i32>} : memref<8x32x384xf32, #tpu.memory_space<vmem>>, vector<8x27x28xf32>,
    %c0_19 = arith.constant 0 : index
    %c0_20 = arith.constant 0 : index
    %c0_21 = arith.constant 0 : index
    %11 = vector.load %arg15[%c0_19, %c0_20, %c0_21] : memref<8x32x384xf32, #tpu.memory_space<vmem>>, vector<8x32x384xf32>
    %12 = vector.shape_cast %11 : vector<8x32x384xf32> to vector<256x384xf32>
    %c0_22 = arith.constant 0 : index
    %c0_23 = arith.constant 0 : index
    %13 = vector.load %arg2[%c0_22, %c0_23] : memref<384x168xf32, #tpu.memory_space<vmem>>, vector<384x168xf32>
    %cst_24 = arith.constant dense<0.000000e+00> : vector<256x168xf32>
    %14 = tpu.matmul %12, %13, %cst_24 {dimension_numbers = #tpu.dot_dimension_numbers<[1], [0], [0], [1], [0, 0, 1, 1], [], []>} : vector<256x384xf32>, vector<384x168xf32>, vector<256x168xf32> -> vector<256x168xf32>
    %c0_25 = arith.constant 0 : index
    %c0_26 = arith.constant 0 : index
    %15 = vector.load %arg3[%c0_25, %c0_26] : memref<1x168xf32, #tpu.memory_space<vmem>>, vector<1x168xf32>
    %16 = vector.broadcast %15 : vector<1x168xf32> to vector<256x168xf32>
    %17 = arith.addf %14, %16 : vector<256x168xf32>
    %cst_27 = arith.constant 0.000000e+00 : f32
    %18 = vector.broadcast %cst_27 : f32 to vector<256x168xf32>
    %19 = arith.maximumf %17, %18 : vector<256x168xf32>
    %c0_28 = arith.constant 0 : index
    %c0_29 = arith.constant 0 : index
    %c0_30 = arith.constant 0 : index
    %20 = vector.load %arg4[%c0_28, %c0_29, %c0_30] : memref<2x168x84xf32, #tpu.memory_space<vmem>>, vector<1x168x84xf32>
    %21 = vector.shape_cast %20 : vector<1x168x84xf32> to vector<168x84xf32>
    %cst_31 = arith.constant dense<0.000000e+00> : vector<256x84xf32>
    %22 = tpu.matmul %19, %21, %cst_31 {dimension_numbers = #tpu.dot_dimension_numbers<[1], [0], [0], [1], [0, 0, 1, 1], [], []>} : vector<256x168xf32>, vector<168x84xf32>, vector<256x84xf32> -> vector<256x84xf32>
    %c1_32 = arith.constant 1 : index
    %c0_33 = arith.constant 0 : index
    %c0_34 = arith.constant 0 : index
    %23 = vector.load %arg4[%c1_32, %c0_33, %c0_34] : memref<2x168x84xf32, #tpu.memory_space<vmem>>, vector<1x168x84xf32>
    %24 = vector.shape_cast %23 : vector<1x168x84xf32> to vector<168x84xf32>
    %cst_35 = arith.constant dense<0.000000e+00> : vector<256x84xf32>
    %25 = tpu.matmul %19, %24, %cst_35 {dimension_numbers = #tpu.dot_dimension_numbers<[1], [0], [0], [1], [0, 0, 1, 1], [], []>} : vector<256x168xf32>, vector<168x84xf32>, vector<256x84xf32> -> vector<256x84xf32>
    %26 = arith.maximumf %22, %25 : vector<256x84xf32>
    %c0_36 = arith.constant 0 : index
    %c0_37 = arith.constant 0 : index
    %c0_38 = arith.constant 0 : index
    %27 = vector.load %arg5[%c0_36, %c0_37, %c0_38] : memref<2x384x256xf32, #tpu.memory_space<vmem>>, vector<1x384x256xf32>
    %28 = vector.shape_cast %27 : vector<1x384x256xf32> to vector<384x256xf32>
    %cst_39 = arith.constant dense<0.000000e+00> : vector<384x84xf32>
    %29 = tpu.matmul %28, %26, %cst_39 {dimension_numbers = #tpu.dot_dimension_numbers<[1], [0], [0], [1], [0, 0, 1, 1], [], []>} : vector<384x256xf32>, vector<256x84xf32>, vector<384x84xf32> -> vector<384x84xf32>
    %c1_40 = arith.constant 1 : index
    %c0_41 = arith.constant 0 : index
    %c0_42 = arith.constant 0 : index
    %30 = vector.load %arg5[%c1_40, %c0_41, %c0_42] : memref<2x384x256xf32, #tpu.memory_space<vmem>>, vector<1x384x256xf32>
    %31 = vector.shape_cast %30 : vector<1x384x256xf32> to vector<384x256xf32>
    %cst_43 = arith.constant dense<0.000000e+00> : vector<384x84xf32>
    %32 = tpu.matmul %31, %26, %cst_43 {dimension_numbers = #tpu.dot_dimension_numbers<[1], [0], [0], [1], [0, 0, 1, 1], [], []>} : vector<384x256xf32>, vector<256x84xf32>, vector<384x84xf32> -> vector<384x84xf32>
    %33 = arith.maximumf %29, %32 : vector<384x84xf32>
    %cst_44 = arith.constant 0.000000e+00 : f32
    %34 = vector.broadcast %cst_44 : f32 to vector<128x168xf32>
    %35 = vector.extract_strided_slice %33 {offsets = [0, 0], sizes = [128, 84], strides = [1, 1]} : vector<384x84xf32> to vector<128x84xf32>
    %c0_45 = arith.constant 0 : index
    %c0_46 = arith.constant 0 : index
    %c0_47 = arith.constant 0 : index
    %36 = vector.load %arg6[%c0_45, %c0_46, %c0_47] : memref<3x84x168xf32, #tpu.memory_space<vmem>>, vector<1x84x168xf32>
    %37 = vector.shape_cast %36 : vector<1x84x168xf32> to vector<84x168xf32>
    %cst_48 = arith.constant dense<0.000000e+00> : vector<128x168xf32>
    %38 = tpu.matmul %35, %37, %cst_48 {dimension_numbers = #tpu.dot_dimension_numbers<[1], [0], [0], [1], [0, 0, 1, 1], [], []>} : vector<128x84xf32>, vector<84x168xf32>, vector<128x168xf32> -> vector<128x168xf32>
    %39 = arith.addf %34, %38 : vector<128x168xf32>
    %40 = vector.extract_strided_slice %33 {offsets = [128, 0], sizes = [128, 84], strides = [1, 1]} : vector<384x84xf32> to vector<128x84xf32>
    %c1_49 = arith.constant 1 : index
    %c0_50 = arith.constant 0 : index
    %c0_51 = arith.constant 0 : index
    %41 = vector.load %arg6[%c1_49, %c0_50, %c0_51] : memref<3x84x168xf32, #tpu.memory_space<vmem>>, vector<1x84x168xf32>
    %42 = vector.shape_cast %41 : vector<1x84x168xf32> to vector<84x168xf32>
    %cst_52 = arith.constant dense<0.000000e+00> : vector<128x168xf32>
    %43 = tpu.matmul %40, %42, %cst_52 {dimension_numbers = #tpu.dot_dimension_numbers<[1], [0], [0], [1], [0, 0, 1, 1], [], []>} : vector<128x84xf32>, vector<84x168xf32>, vector<128x168xf32> -> vector<128x168xf32>
    %44 = arith.addf %39, %43 : vector<128x168xf32>
    %45 = vector.extract_strided_slice %33 {offsets = [256, 0], sizes = [128, 84], strides = [1, 1]} : vector<384x84xf32> to vector<128x84xf32>
    %c2_53 = arith.constant 2 : index
    %c0_54 = arith.constant 0 : index
    %c0_55 = arith.constant 0 : index
    %46 = vector.load %arg6[%c2_53, %c0_54, %c0_55] : memref<3x84x168xf32, #tpu.memory_space<vmem>>, vector<1x84x168xf32>
    %47 = vector.shape_cast %46 : vector<1x84x168xf32> to vector<84x168xf32>
    %cst_56 = arith.constant dense<0.000000e+00> : vector<128x168xf32>
    %48 = tpu.matmul %45, %47, %cst_56 {dimension_numbers = #tpu.dot_dimension_numbers<[1], [0], [0], [1], [0, 0, 1, 1], [], []>} : vector<128x84xf32>, vector<84x168xf32>, vector<128x168xf32> -> vector<128x168xf32>
    %49 = arith.addf %44, %48 : vector<128x168xf32>
    %c0_57 = arith.constant 0 : index
    %c0_58 = arith.constant 0 : index
    %50 = vector.load %arg7[%c0_57, %c0_58] : memref<1x168xf32, #tpu.memory_space<vmem>>, vector<1x168xf32>
    %51 = vector.broadcast %50 : vector<1x168xf32> to vector<128x168xf32>
    %52 = arith.addf %49, %51 : vector<128x168xf32>
    %cst_59 = arith.constant 0.000000e+00 : f32
    %53 = vector.broadcast %cst_59 : f32 to vector<128x168xf32>
    %54 = arith.maximumf %52, %53 : vector<128x168xf32>
    %c0_60 = arith.constant 0 : index
    %c0_61 = arith.constant 0 : index
    %c0_62 = arith.constant 0 : index
    %55 = vector.load %arg8[%c0_60, %c0_61, %c0_62] : memref<2x168x84xf32, #tpu.memory_space<vmem>>, vector<1x168x84xf32>
    %56 = vector.shape_cast %55 : vector<1x168x84xf32> to vector<168x84xf32>
    %cst_63 = arith.constant dense<0.000000e+00> : vector<128x84xf32>
    %57 = tpu.matmul %54, %56, %cst_63 {dimension_numbers = #tpu.dot_dimension_numbers<[1], [0], [0], [1], [0, 0, 1, 1], [], []>} : vector<128x168xf32>, vector<168x84xf32>, vector<128x84xf32> -> vector<128x84xf32>
    %c1_64 = arith.constant 1 : index
    %c0_65 = arith.constant 0 : index
    %c0_66 = arith.constant 0 : index
    %58 = vector.load %arg8[%c1_64, %c0_65, %c0_66] : memref<2x168x84xf32, #tpu.memory_space<vmem>>, vector<1x168x84xf32>
    %59 = vector.shape_cast %58 : vector<1x168x84xf32> to vector<168x84xf32>
    %cst_67 = arith.constant dense<0.000000e+00> : vector<128x84xf32>
    %60 = tpu.matmul %54, %59, %cst_67 {dimension_numbers = #tpu.dot_dimension_numbers<[1], [0], [0], [1], [0, 0, 1, 1], [], []>} : vector<128x168xf32>, vector<168x84xf32>, vector<128x84xf32> -> vector<128x84xf32>
    %61 = arith.maximumf %57, %60 : vector<128x84xf32>
    %c0_68 = arith.constant 0 : index
    %c0_69 = arith.constant 0 : index
    %c0_70 = arith.constant 0 : index
    %62 = vector.load %arg9[%c0_68, %c0_69, %c0_70] : memref<2x56x128xf32, #tpu.memory_space<vmem>>, vector<1x56x128xf32>
    %63 = vector.shape_cast %62 : vector<1x56x128xf32> to vector<56x128xf32>
    %cst_71 = arith.constant dense<0.000000e+00> : vector<56x84xf32>
    %64 = tpu.matmul %63, %61, %cst_71 {dimension_numbers = #tpu.dot_dimension_numbers<[1], [0], [0], [1], [0, 0, 1, 1], [], []>} : vector<56x128xf32>, vector<128x84xf32>, vector<56x84xf32> -> vector<56x84xf32>
    %c1_72 = arith.constant 1 : index
    %c0_73 = arith.constant 0 : index
    %c0_74 = arith.constant 0 : index
    %65 = vector.load %arg9[%c1_72, %c0_73, %c0_74] : memref<2x56x128xf32, #tpu.memory_space<vmem>>, vector<1x56x128xf32>
    %66 = vector.shape_cast %65 : vector<1x56x128xf32> to vector<56x128xf32>
    %cst_75 = arith.constant dense<0.000000e+00> : vector<56x84xf32>
    %67 = tpu.matmul %66, %61, %cst_75 {dimension_numbers = #tpu.dot_dimension_numbers<[1], [0], [0], [1], [0, 0, 1, 1], [], []>} : vector<56x128xf32>, vector<128x84xf32>, vector<56x84xf32> -> vector<56x84xf32>
    %68 = arith.maximumf %64, %67 : vector<56x84xf32>
    %cst_76 = arith.constant 0.000000e+00 : f32
    %69 = vector.broadcast %cst_76 : f32 to vector<8x40xf32>
    %70 = vector.extract_strided_slice %68 {offsets = [0, 0], sizes = [8, 84], strides = [1, 1]} : vector<56x84xf32> to vector<8x84xf32>
    %c0_77 = arith.constant 0 : index
    %c0_78 = arith.constant 0 : index
    %c0_79 = arith.constant 0 : index
    %71 = vector.load %arg10[%c0_77, %c0_78, %c0_79] : memref<7x84x40xf32, #tpu.memory_space<vmem>>, vector<1x84x40xf32>
    %72 = vector.shape_cast %71 : vector<1x84x40xf32> to vector<84x40xf32>
    %cst_80 = arith.constant dense<0.000000e+00> : vector<8x40xf32>
    %73 = tpu.matmul %70, %72, %cst_80 {dimension_numbers = #tpu.dot_dimension_numbers<[1], [0], [0], [1], [0, 0, 1, 1], [], []>} : vector<8x84xf32>, vector<84x40xf32>, vector<8x40xf32> -> vector<8x40xf32>
    %74 = arith.addf %69, %73 : vector<8x40xf32>
    %75 = vector.extract_strided_slice %68 {offsets = [8, 0], sizes = [8, 84], strides = [1, 1]} : vector<56x84xf32> to vector<8x84xf32>
    %c1_81 = arith.constant 1 : index
    %c0_82 = arith.constant 0 : index
    %c0_83 = arith.constant 0 : index
    %76 = vector.load %arg10[%c1_81, %c0_82, %c0_83] : memref<7x84x40xf32, #tpu.memory_space<vmem>>, vector<1x84x40xf32>
    %77 = vector.shape_cast %76 : vector<1x84x40xf32> to vector<84x40xf32>
    %cst_84 = arith.constant dense<0.000000e+00> : vector<8x40xf32>
    %78 = tpu.matmul %75, %77, %cst_84 {dimension_numbers = #tpu.dot_dimension_numbers<[1], [0], [0], [1], [0, 0, 1, 1], [], []>} : vector<8x84xf32>, vector<84x40xf32>, vector<8x40xf32> -> vector<8x40xf32>
    %79 = arith.addf %74, %78 : vector<8x40xf32>
    %80 = vector.extract_strided_slice %68 {offsets = [16, 0], sizes = [8, 84], strides = [1, 1]} : vector<56x84xf32> to vector<8x84xf32>
    %c2_85 = arith.constant 2 : index
    %c0_86 = arith.constant 0 : index
    %c0_87 = arith.constant 0 : index
    %81 = vector.load %arg10[%c2_85, %c0_86, %c0_87] : memref<7x84x40xf32, #tpu.memory_space<vmem>>, vector<1x84x40xf32>
    %82 = vector.shape_cast %81 : vector<1x84x40xf32> to vector<84x40xf32>
    %cst_88 = arith.constant dense<0.000000e+00> : vector<8x40xf32>
    %83 = tpu.matmul %80, %82, %cst_88 {dimension_numbers = #tpu.dot_dimension_numbers<[1], [0], [0], [1], [0, 0, 1, 1], [], []>} : vector<8x84xf32>, vector<84x40xf32>, vector<8x40xf32> -> vector<8x40xf32>
    %84 = arith.addf %79, %83 : vector<8x40xf32>
    %85 = vector.extract_strided_slice %68 {offsets = [24, 0], sizes = [8, 84], strides = [1, 1]} : vector<56x84xf32> to vector<8x84xf32>
    %c3 = arith.constant 3 : index
    %c0_89 = arith.constant 0 : index
    %c0_90 = arith.constant 0 : index
    %86 = vector.load %arg10[%c3, %c0_89, %c0_90] : memref<7x84x40xf32, #tpu.memory_space<vmem>>, vector<1x84x40xf32>
    %87 = vector.shape_cast %86 : vector<1x84x40xf32> to vector<84x40xf32>
    %cst_91 = arith.constant dense<0.000000e+00> : vector<8x40xf32>
    %88 = tpu.matmul %85, %87, %cst_91 {dimension_numbers = #tpu.dot_dimension_numbers<[1], [0], [0], [1], [0, 0, 1, 1], [], []>} : vector<8x84xf32>, vector<84x40xf32>, vector<8x40xf32> -> vector<8x40xf32>
    %89 = arith.addf %84, %88 : vector<8x40xf32>
    %90 = vector.extract_strided_slice %68 {offsets = [32, 0], sizes = [8, 84], strides = [1, 1]} : vector<56x84xf32> to vector<8x84xf32>
    %c4 = arith.constant 4 : index
    %c0_92 = arith.constant 0 : index
    %c0_93 = arith.constant 0 : index
    %91 = vector.load %arg10[%c4, %c0_92, %c0_93] : memref<7x84x40xf32, #tpu.memory_space<vmem>>, vector<1x84x40xf32>
    %92 = vector.shape_cast %91 : vector<1x84x40xf32> to vector<84x40xf32>
    %cst_94 = arith.constant dense<0.000000e+00> : vector<8x40xf32>
    %93 = tpu.matmul %90, %92, %cst_94 {dimension_numbers = #tpu.dot_dimension_numbers<[1], [0], [0], [1], [0, 0, 1, 1], [], []>} : vector<8x84xf32>, vector<84x40xf32>, vector<8x40xf32> -> vector<8x40xf32>
    %94 = arith.addf %89, %93 : vector<8x40xf32>
    %95 = vector.extract_strided_slice %68 {offsets = [40, 0], sizes = [8, 84], strides = [1, 1]} : vector<56x84xf32> to vector<8x84xf32>
    %c5 = arith.constant 5 : index
    %c0_95 = arith.constant 0 : index
    %c0_96 = arith.constant 0 : index
    %96 = vector.load %arg10[%c5, %c0_95, %c0_96] : memref<7x84x40xf32, #tpu.memory_space<vmem>>, vector<1x84x40xf32>
    %97 = vector.shape_cast %96 : vector<1x84x40xf32> to vector<84x40xf32>
    %cst_97 = arith.constant dense<0.000000e+00> : vector<8x40xf32>
    %98 = tpu.matmul %95, %97, %cst_97 {dimension_numbers = #tpu.dot_dimension_numbers<[1], [0], [0], [1], [0, 0, 1, 1], [], []>} : vector<8x84xf32>, vector<84x40xf32>, vector<8x40xf32> -> vector<8x40xf32>
    %99 = arith.addf %94, %98 : vector<8x40xf32>
    %100 = vector.extract_strided_slice %68 {offsets = [48, 0], sizes = [8, 84], strides = [1, 1]} : vector<56x84xf32> to vector<8x84xf32>
    %c6 = arith.constant 6 : index
    %c0_98 = arith.constant 0 : index
    %c0_99 = arith.constant 0 : index
    %101 = vector.load %arg10[%c6, %c0_98, %c0_99] : memref<7x84x40xf32, #tpu.memory_space<vmem>>, vector<1x84x40xf32>
    %102 = vector.shape_cast %101 : vector<1x84x40xf32> to vector<84x40xf32>
    %cst_100 = arith.constant dense<0.000000e+00> : vector<8x40xf32>
    %103 = tpu.matmul %100, %102, %cst_100 {dimension_numbers = #tpu.dot_dimension_numbers<[1], [0], [0], [1], [0, 0, 1, 1], [], []>} : vector<8x84xf32>, vector<84x40xf32>, vector<8x40xf32> -> vector<8x40xf32>
    %104 = arith.addf %99, %103 : vector<8x40xf32>
    %c0_101 = arith.constant 0 : index
    %c0_102 = arith.constant 0 : index
    %105 = vector.load %arg11[%c0_101, %c0_102] : memref<1x40xf32, #tpu.memory_space<vmem>>, vector<1x40xf32>
    %106 = vector.broadcast %105 : vector<1x40xf32> to vector<8x40xf32>
    %107 = arith.addf %104, %106 : vector<8x40xf32>
    %cst_103 = arith.constant 0.000000e+00 : f32
    %108 = vector.broadcast %cst_103 : f32 to vector<8x40xf32>
    %109 = arith.maximumf %107, %108 : vector<8x40xf32>
    %c0_104 = arith.constant 0 : index
    %c0_105 = arith.constant 0 : index
    %110 = vector.load %arg12[%c0_104, %c0_105] : memref<40x128xf32, #tpu.memory_space<vmem>>, vector<40x128xf32>
    %cst_106 = arith.constant dense<0.000000e+00> : vector<8x128xf32>
    %111 = tpu.matmul %109, %110, %cst_106 {dimension_numbers = #tpu.dot_dimension_numbers<[1], [0], [0], [1], [0, 0, 1, 1], [], []>} : vector<8x40xf32>, vector<40x128xf32>, vector<8x128xf32> -> vector<8x128xf32>
    %c0_107 = arith.constant 0 : index
    %c0_108 = arith.constant 0 : index
    %112 = vector.load %arg13[%c0_107, %c0_108] : memref<1x128xf32, #tpu.memory_space<vmem>>, vector<1x128xf32>
    %113 = vector.broadcast %112 : vector<1x128xf32> to vector<8x128xf32>
    %114 = arith.addf %111, %113 : vector<8x128xf32>
    %c0_109 = arith.constant 0 : index
    %c0_110 = arith.constant 0 : index
    %115 = vector.load %arg14[%c0_109, %c0_110] : memref<8x128xf32, #tpu.memory_space<vmem>>, vector<8x128xf32>
    tpu.vector_store %arg14[%c0_109, %c0_110], %114 {strides = array<i32>} : memref<8x128xf32, #tpu.memory_space<vmem>>, vector<8x128xf32>,
    return
  }
  func.func @transform_0(%arg0: i32) -> (i32, i32, i32, i32) {
    %c0_i32 = arith.constant 0 : i32
    %c0_i32_0 = arith.constant 0 : i32
    %c0_i32_1 = arith.constant 0 : i32
    %c0_i32_2 = arith.constant 0 : i32
    return %arg0, %c0_i32, %c0_i32_0, %c0_i32_1 : i32, i32, i32, i32
  }
  func.func @transform_1(%arg0: i32) -> (i32, i32) {
    %c0_i32 = arith.constant 0 : i32
    %c0_i32_0 = arith.constant 0 : i32
    %c0_i32_1 = arith.constant 0 : i32
    return %c0_i32, %c0_i32_0 : i32, i32
  }
  func.func @transform_2(%arg0: i32) -> (i32, i32) {
    %c0_i32 = arith.constant 0 : i32
    %c0_i32_0 = arith.constant 0 : i32
    %c0_i32_1 = arith.constant 0 : i32
    return %c0_i32, %c0_i32_0 : i32, i32
  }
  func.func @transform_3(%arg0: i32) -> (i32, i32, i32) {
    %c0_i32 = arith.constant 0 : i32
    %c0_i32_0 = arith.constant 0 : i32
    %c0_i32_1 = arith.constant 0 : i32
    %c0_i32_2 = arith.constant 0 : i32
    return %c0_i32, %c0_i32_0, %c0_i32_1 : i32, i32, i32
  }
  func.func @transform_4(%arg0: i32) -> (i32, i32, i32) {
    %c0_i32 = arith.constant 0 : i32
    %c0_i32_0 = arith.constant 0 : i32
    %c0_i32_1 = arith.constant 0 : i32
    %c0_i32_2 = arith.constant 0 : i32
    return %c0_i32, %c0_i32_0, %c0_i32_1 : i32, i32, i32
  }
  func.func @transform_5(%arg0: i32) -> (i32, i32, i32) {
    %c0_i32 = arith.constant 0 : i32
    %c0_i32_0 = arith.constant 0 : i32
    %c0_i32_1 = arith.constant 0 : i32
    %c0_i32_2 = arith.constant 0 : i32
    return %c0_i32, %c0_i32_0, %c0_i32_1 : i32, i32, i32
  }
  func.func @transform_6(%arg0: i32) -> (i32, i32) {
    %c0_i32 = arith.constant 0 : i32
    %c0_i32_0 = arith.constant 0 : i32
    %c0_i32_1 = arith.constant 0 : i32
    return %c0_i32, %c0_i32_0 : i32, i32
  }
  func.func @transform_7(%arg0: i32) -> (i32, i32, i32) {
    %c0_i32 = arith.constant 0 : i32
    %c0_i32_0 = arith.constant 0 : i32
    %c0_i32_1 = arith.constant 0 : i32
    %c0_i32_2 = arith.constant 0 : i32
    return %c0_i32, %c0_i32_0, %c0_i32_1 : i32, i32, i32
  }
  func.func @transform_8(%arg0: i32) -> (i32, i32, i32) {
    %c0_i32 = arith.constant 0 : i32
    %c0_i32_0 = arith.constant 0 : i32
    %c0_i32_1 = arith.constant 0 : i32
    %c0_i32_2 = arith.constant 0 : i32
    return %c0_i32, %c0_i32_0, %c0_i32_1 : i32, i32, i32
  }
  func.func @transform_9(%arg0: i32) -> (i32, i32, i32) {
    %c0_i32 = arith.constant 0 : i32
    %c0_i32_0 = arith.constant 0 : i32
    %c0_i32_1 = arith.constant 0 : i32
    %c0_i32_2 = arith.constant 0 : i32
    return %c0_i32, %c0_i32_0, %c0_i32_1 : i32, i32, i32
  }
  func.func @transform_10(%arg0: i32) -> (i32, i32) {
    %c0_i32 = arith.constant 0 : i32
    %c0_i32_0 = arith.constant 0 : i32
    %c0_i32_1 = arith.constant 0 : i32
    return %c0_i32, %c0_i32_0 : i32, i32
  }
  func.func @transform_11(%arg0: i32) -> (i32, i32) {
    %c0_i32 = arith.constant 0 : i32
    %c0_i32_0 = arith.constant 0 : i32
    %c0_i32_1 = arith.constant 0 : i32
    return %c0_i32, %c0_i32_0 : i32, i32
  }
  func.func @transform_12(%arg0: i32) -> (i32, i32) {
    %c0_i32 = arith.constant 0 : i32
    %c0_i32_0 = arith.constant 0 : i32
    %c0_i32_1 = arith.constant 0 : i32
    return %c0_i32, %c0_i32_0 : i32, i32
  }
  func.func @transform_13(%arg0: i32) -> (i32, i32) {
    %c0_i32 = arith.constant 0 : i32
    %c0_i32_0 = arith.constant 0 : i32
    return %arg0, %c0_i32 : i32, i32
  }
}

</mosaic_0001>

<llo_original>
// kernel: _mnist_forward.1
$region0: #{_mnist_forward.1}
  #allocation0 [shape = 'u32[]', space=smem, size = 0x4, offset = 0x4, fixed_abs, tag = 'smem constant byte address 0x4 - core index']
  #allocation1 [shape = 'u32[144,128]{1,0:T(1,128)}', space=vmem, size = 0x12000, scoped, tag = 'internal scratch']
  #allocation2 [shape = 'f32[8,32,384]{2,1,0:T(8,128)}', space=vmem, size = 0x60000, scoped, tag = 'scratch operand']
  %s0 = inlined_call_operand.vmem [shape: f32[16,1,28,28], index: 0, kind: input, shape index: {}]
  %s1 = inlined_call_operand.vmem [shape: f32[384,168], index: 1, kind: input, shape index: {}]
  %s2 = inlined_call_operand.vmem [shape: f32[1,168], index: 2, kind: input, shape index: {}]
  %s3 = inlined_call_operand.vmem [shape: f32[2,168,84], index: 3, kind: input, shape index: {}]
  %s4 = inlined_call_operand.vmem [shape: f32[2,384,256], index: 4, kind: input, shape index: {}]
  %s5 = inlined_call_operand.vmem [shape: f32[3,84,168], index: 5, kind: input, shape index: {}]
  %s6 = inlined_call_operand.vmem [shape: f32[1,168], index: 6, kind: input, shape index: {}]
  %s7 = inlined_call_operand.vmem [shape: f32[2,168,84], index: 7, kind: input, shape index: {}]
  %s8 = inlined_call_operand.vmem [shape: f32[2,56,128], index: 8, kind: input, shape index: {}]
  %s9 = inlined_call_operand.vmem [shape: f32[7,84,40], index: 9, kind: input, shape index: {}]
  %s10 = inlined_call_operand.vmem [shape: f32[1,40], index: 10, kind: input, shape index: {}]
  %s11 = inlined_call_operand.vmem [shape: f32[40,128], index: 11, kind: input, shape index: {}]
  %s12 = inlined_call_operand.vmem [shape: f32[1,128], index: 12, kind: input, shape index: {}]
  %s13 = inlined_call_operand.hbm [shape: f32[16,128], index: 13, kind: output, shape index: {}]
  %s14 = sld [smem:[#allocation0]]
  $region85: #{_mnist_forward.1} parent=0
    _
  %s16 = ssub.s32 1, %s14
  %s17 = scalar_select 0, %s16, %s14
  $region1: #{_mnist_forward.1} parent=0
    #allocation3 [shape = 'u8[8192]{0}', space=vmem, size = 0x2000, scoped, tag = 'output window, operand 0']
    #allocation4 [shape = 's32[2]{0}', space=sflag, size = 0x8, scoped, tag = 'scoped memory for _mnist_forward.1']
    %18 = vsyncpa [#allocation4], 0
    %s19 = scalar_lea.sflag [#allocation4], 1
    %20 = vsyncpa %s19, 0
    loop: start=0, step=1, limit=4
    $region2: #{_mnist_forward.1} parent=1 // loop_pre_header
      _
    $region3: #{_mnist_forward.1} parent=1 // loop_header
      %s22 = sphi 0, %s26
      %p23 = scmp.ge.s32.totalorder %s22, 4
      %s32 = sphi 0, %s34
      %s35 = sphi 0, %s32
      %s36 = sphi 0, %s35
      %s52 = sphi 0, %s36
      %s56 = sphi 0, %s56
      %s58 = sphi 0, %s56
      %s59 = sphi 0, %s58
      %s73 = sphi 0, %s59
      %s77 = sphi 0, %s77
      %s79 = sphi 0, %s77
      %s80 = sphi 0, %s79
      %s94 = sphi 0, %s80
      %s98 = sphi 0, %s98
      %s100 = sphi 0, %s98
      %s101 = sphi 0, %s100
      %s115 = sphi 0, %s101
      %s119 = sphi 0, %s119
      %s121 = sphi 0, %s119
      %s122 = sphi 0, %s121
      %s136 = sphi 0, %s122
      %s140 = sphi 0, %s140
      %s142 = sphi 0, %s140
      %s143 = sphi 0, %s142
      %s157 = sphi 0, %s143
      %s161 = sphi 0, %s161
      %s163 = sphi 0, %s161
      %s164 = sphi 0, %s163
      %s178 = sphi 0, %s164
      %s182 = sphi 0, %s182
      %s184 = sphi 0, %s182
      %s185 = sphi 0, %s184
      %s199 = sphi 0, %s185
      %s203 = sphi 0, %s203
      %s205 = sphi 0, %s203
      %s206 = sphi 0, %s205
      %s220 = sphi 0, %s206
      %s224 = sphi 0, %s224
      %s226 = sphi 0, %s224
      %s227 = sphi 0, %s226
      %s241 = sphi 0, %s227
      %s245 = sphi 0, %s245
      %s247 = sphi 0, %s245
      %s248 = sphi 0, %s247
      %s262 = sphi 0, %s248
      %s266 = sphi 0, %s266
      %s268 = sphi 0, %s266
      %s269 = sphi 0, %s268
      %s283 = sphi 0, %s269
      %s287 = sphi 0, %s287
      %s289 = sphi 0, %s287
      %s290 = sphi 0, %s289
      %s304 = sphi 0, %s290
      %s310 = sphi 0, %s312
      %s313 = sphi 0, %s310
      %s314 = sphi 0, %s313
      %s330 = sphi 0, %s314
    $region4: #{_mnist_forward.1} parent=1 // loop_header_branch
      %25 = sbr.rel (%p23) target = $region8
    $region5: #{_mnist_forward.1} parent=1 // loop_body
      %s27 = ssub.s32 %s22, 1
      %s28 = ssub.s32 %s22, 2
      %s29 = sadd.s32 %s22, 1
      %s30 = ssub.s32 %s22, %s29
      %p31 = scmp.eq.s32.totalorder %s30, 0
      %s33 = sadd.s32 %s32, 1
      %s34 = scalar_select %p31, %s32, %s33
      %p37 = pneg %p31
      %p38 = scmp.eq.s32.totalorder %s22, 1
      %p39 = por %p37, %p38
      %p40 = scmp.ne.s32.totalorder %s32, %s35
      %p41 = scmp.eq.s32.totalorder %s22, 0
      %p42 = por %p40, %p41
      %p43 = scmp.ne.s32.totalorder %s32, %s35
      %p44 = scmp.eq.s32.totalorder %s27, 1
      %p45 = por %p43, %p44
      %p46 = scmp.ne.s32.totalorder %s35, %s36
      %p47 = scmp.eq.s32.totalorder %s27, 0
      %p48 = por %p46, %p47
      %p49 = scmp.ne.s32.totalorder %s35, %s36
      %p50 = scmp.eq.s32.totalorder %s28, 1
      %p51 = por %p49, %p50
      %p53 = scmp.ne.s32.totalorder %s36, %s52
      %p54 = scmp.eq.s32.totalorder %s28, 0
      %p55 = por %p53, %p54
      %s57 = sadd.s32 %s56, 1
      %p60 = scmp.eq.s32.totalorder %s22, 1
      %p61 = scmp.ne.s32.totalorder %s56, %s58
      %p62 = scmp.eq.s32.totalorder %s22, 0
      %p63 = por %p61, %p62
      %p64 = scmp.ne.s32.totalorder %s56, %s58
      %p65 = scmp.eq.s32.totalorder %s27, 1
      %p66 = por %p64, %p65
      %p67 = scmp.ne.s32.totalorder %s58, %s59
      %p68 = scmp.eq.s32.totalorder %s27, 0
      %p69 = por %p67, %p68
      %p70 = scmp.ne.s32.totalorder %s58, %s59
      %p71 = scmp.eq.s32.totalorder %s28, 1
      %p72 = por %p70, %p71
      %p74 = scmp.ne.s32.totalorder %s59, %s73
      %p75 = scmp.eq.s32.totalorder %s28, 0
      %p76 = por %p74, %p75
      %s78 = sadd.s32 %s77, 1
      %p81 = scmp.eq.s32.totalorder %s22, 1
      %p82 = scmp.ne.s32.totalorder %s77, %s79
      %p83 = scmp.eq.s32.totalorder %s22, 0
      %p84 = por %p82, %p83
      %p85 = scmp.ne.s32.totalorder %s77, %s79
      %p86 = scmp.eq.s32.totalorder %s27, 1
      %p87 = por %p85, %p86
      %p88 = scmp.ne.s32.totalorder %s79, %s80
      %p89 = scmp.eq.s32.totalorder %s27, 0
      %p90 = por %p88, %p89
      %p91 = scmp.ne.s32.totalorder %s79, %s80
      %p92 = scmp.eq.s32.totalorder %s28, 1
      %p93 = por %p91, %p92
      %p95 = scmp.ne.s32.totalorder %s80, %s94
      %p96 = scmp.eq.s32.totalorder %s28, 0
      %p97 = por %p95, %p96
      %s99 = sadd.s32 %s98, 1
      %p102 = scmp.eq.s32.totalorder %s22, 1
      %p103 = scmp.ne.s32.totalorder %s98, %s100
      %p104 = scmp.eq.s32.totalorder %s22, 0
      %p105 = por %p103, %p104
      %p106 = scmp.ne.s32.totalorder %s98, %s100
      %p107 = scmp.eq.s32.totalorder %s27, 1
      %p108 = por %p106, %p107
      %p109 = scmp.ne.s32.totalorder %s100, %s101
      %p110 = scmp.eq.s32.totalorder %s27, 0
      %p111 = por %p109, %p110
      %p112 = scmp.ne.s32.totalorder %s100, %s101
      %p113 = scmp.eq.s32.totalorder %s28, 1
      %p114 = por %p112, %p113
      %p116 = scmp.ne.s32.totalorder %s101, %s115
      %p117 = scmp.eq.s32.totalorder %s28, 0
      %p118 = por %p116, %p117
      %s120 = sadd.s32 %s119, 1
      %p123 = scmp.eq.s32.totalorder %s22, 1
      %p124 = scmp.ne.s32.totalorder %s119, %s121
      %p125 = scmp.eq.s32.totalorder %s22, 0
      %p126 = por %p124, %p125
      %p127 = scmp.ne.s32.totalorder %s119, %s121
      %p128 = scmp.eq.s32.totalorder %s27, 1
      %p129 = por %p127, %p128
      %p130 = scmp.ne.s32.totalorder %s121, %s122
      %p131 = scmp.eq.s32.totalorder %s27, 0
      %p132 = por %p130, %p131
      %p133 = scmp.ne.s32.totalorder %s121, %s122
      %p134 = scmp.eq.s32.totalorder %s28, 1
      %p135 = por %p133, %p134
      %p137 = scmp.ne.s32.totalorder %s122, %s136
      %p138 = scmp.eq.s32.totalorder %s28, 0
      %p139 = por %p137, %p138
      %s141 = sadd.s32 %s140, 1
      %p144 = scmp.eq.s32.totalorder %s22, 1
      %p145 = scmp.ne.s32.totalorder %s140, %s142
      %p146 = scmp.eq.s32.totalorder %s22, 0
      %p147 = por %p145, %p146
      %p148 = scmp.ne.s32.totalorder %s140, %s142
      %p149 = scmp.eq.s32.totalorder %s27, 1
      %p150 = por %p148, %p149
      %p151 = scmp.ne.s32.totalorder %s142, %s143
      %p152 = scmp.eq.s32.totalorder %s27, 0
      %p153 = por %p151, %p152
      %p154 = scmp.ne.s32.totalorder %s142, %s143
      %p155 = scmp.eq.s32.totalorder %s28, 1
      %p156 = por %p154, %p155
      %p158 = scmp.ne.s32.totalorder %s143, %s157
      %p159 = scmp.eq.s32.totalorder %s28, 0
      %p160 = por %p158, %p159
      %s162 = sadd.s32 %s161, 1
      %p165 = scmp.eq.s32.totalorder %s22, 1
      %p166 = scmp.ne.s32.totalorder %s161, %s163
      %p167 = scmp.eq.s32.totalorder %s22, 0
      %p168 = por %p166, %p167
      %p169 = scmp.ne.s32.totalorder %s161, %s163
      %p170 = scmp.eq.s32.totalorder %s27, 1
      %p171 = por %p169, %p170
      %p172 = scmp.ne.s32.totalorder %s163, %s164
      %p173 = scmp.eq.s32.totalorder %s27, 0
      %p174 = por %p172, %p173
      %p175 = scmp.ne.s32.totalorder %s163, %s164
      %p176 = scmp.eq.s32.totalorder %s28, 1
      %p177 = por %p175, %p176
      %p179 = scmp.ne.s32.totalorder %s164, %s178
      %p180 = scmp.eq.s32.totalorder %s28, 0
      %p181 = por %p179, %p180
      %s183 = sadd.s32 %s182, 1
      %p186 = scmp.eq.s32.totalorder %s22, 1
      %p187 = scmp.ne.s32.totalorder %s182, %s184
      %p188 = scmp.eq.s32.totalorder %s22, 0
      %p189 = por %p187, %p188
      %p190 = scmp.ne.s32.totalorder %s182, %s184
      %p191 = scmp.eq.s32.totalorder %s27, 1
      %p192 = por %p190, %p191
      %p193 = scmp.ne.s32.totalorder %s184, %s185
      %p194 = scmp.eq.s32.totalorder %s27, 0
      %p195 = por %p193, %p194
      %p196 = scmp.ne.s32.totalorder %s184, %s185
      %p197 = scmp.eq.s32.totalorder %s28, 1
      %p198 = por %p196, %p197
      %p200 = scmp.ne.s32.totalorder %s185, %s199
      %p201 = scmp.eq.s32.totalorder %s28, 0
      %p202 = por %p200, %p201
      %s204 = sadd.s32 %s203, 1
      %p207 = scmp.eq.s32.totalorder %s22, 1
      %p208 = scmp.ne.s32.totalorder %s203, %s205
      %p209 = scmp.eq.s32.totalorder %s22, 0
      %p210 = por %p208, %p209
      %p211 = scmp.ne.s32.totalorder %s203, %s205
      %p212 = scmp.eq.s32.totalorder %s27, 1
      %p213 = por %p211, %p212
      %p214 = scmp.ne.s32.totalorder %s205, %s206
      %p215 = scmp.eq.s32.totalorder %s27, 0
      %p216 = por %p214, %p215
      %p217 = scmp.ne.s32.totalorder %s205, %s206
      %p218 = scmp.eq.s32.totalorder %s28, 1
      %p219 = por %p217, %p218
      %p221 = scmp.ne.s32.totalorder %s206, %s220
      %p222 = scmp.eq.s32.totalorder %s28, 0
      %p223 = por %p221, %p222
      %s225 = sadd.s32 %s224, 1
      %p228 = scmp.eq.s32.totalorder %s22, 1
      %p229 = scmp.ne.s32.totalorder %s224, %s226
      %p230 = scmp.eq.s32.totalorder %s22, 0
      %p231 = por %p229, %p230
      %p232 = scmp.ne.s32.totalorder %s224, %s226
      %p233 = scmp.eq.s32.totalorder %s27, 1
      %p234 = por %p232, %p233
      %p235 = scmp.ne.s32.totalorder %s226, %s227
      %p236 = scmp.eq.s32.totalorder %s27, 0
      %p237 = por %p235, %p236
      %p238 = scmp.ne.s32.totalorder %s226, %s227
      %p239 = scmp.eq.s32.totalorder %s28, 1
      %p240 = por %p238, %p239
      %p242 = scmp.ne.s32.totalorder %s227, %s241
      %p243 = scmp.eq.s32.totalorder %s28, 0
      %p244 = por %p242, %p243
      %s246 = sadd.s32 %s245, 1
      %p249 = scmp.eq.s32.totalorder %s22, 1
      %p250 = scmp.ne.s32.totalorder %s245, %s247
      %p251 = scmp.eq.s32.totalorder %s22, 0
      %p252 = por %p250, %p251
      %p253 = scmp.ne.s32.totalorder %s245, %s247
      %p254 = scmp.eq.s32.totalorder %s27, 1
      %p255 = por %p253, %p254
      %p256 = scmp.ne.s32.totalorder %s247, %s248
      %p257 = scmp.eq.s32.totalorder %s27, 0
      %p258 = por %p256, %p257
      %p259 = scmp.ne.s32.totalorder %s247, %s248
      %p260 = scmp.eq.s32.totalorder %s28, 1
      %p261 = por %p259, %p260
      %p263 = scmp.ne.s32.totalorder %s248, %s262
      %p264 = scmp.eq.s32.totalorder %s28, 0
      %p265 = por %p263, %p264
      %s267 = sadd.s32 %s266, 1
      %p270 = scmp.eq.s32.totalorder %s22, 1
      %p271 = scmp.ne.s32.totalorder %s266, %s268
      %p272 = scmp.eq.s32.totalorder %s22, 0
      %p273 = por %p271, %p272
      %p274 = scmp.ne.s32.totalorder %s266, %s268
      %p275 = scmp.eq.s32.totalorder %s27, 1
      %p276 = por %p274, %p275
      %p277 = scmp.ne.s32.totalorder %s268, %s269
      %p278 = scmp.eq.s32.totalorder %s27, 0
      %p279 = por %p277, %p278
      %p280 = scmp.ne.s32.totalorder %s268, %s269
      %p281 = scmp.eq.s32.totalorder %s28, 1
      %p282 = por %p280, %p281
      %p284 = scmp.ne.s32.totalorder %s269, %s283
      %p285 = scmp.eq.s32.totalorder %s28, 0
      %p286 = por %p284, %p285
      %s288 = sadd.s32 %s287, 1
      %p291 = scmp.eq.s32.totalorder %s22, 1
      %p292 = scmp.ne.s32.totalorder %s287, %s289
      %p293 = scmp.eq.s32.totalorder %s22, 0
      %p294 = por %p292, %p293
      %p295 = scmp.ne.s32.totalorder %s287, %s289
      %p296 = scmp.eq.s32.totalorder %s27, 1
      %p297 = por %p295, %p296
      %p298 = scmp.ne.s32.totalorder %s289, %s290
      %p299 = scmp.eq.s32.totalorder %s27, 0
      %p300 = por %p298, %p299
      %p301 = scmp.ne.s32.totalorder %s289, %s290
      %p302 = scmp.eq.s32.totalorder %s28, 1
      %p303 = por %p301, %p302
      %p305 = scmp.ne.s32.totalorder %s290, %s304
      %p306 = scmp.eq.s32.totalorder %s28, 0
      %p307 = por %p305, %p306
      %s308 = ssub.s32 %s22, %s29
      %p309 = scmp.eq.s32.totalorder %s308, 0
      %s311 = sadd.s32 %s310, 1
      %s312 = scalar_select %p309, %s310, %s311
      %p315 = pneg %p309
      %p316 = scmp.eq.s32.totalorder %s22, 1
      %p317 = por %p315, %p316
      %p318 = scmp.ne.s32.totalorder %s310, %s313
      %p319 = scmp.eq.s32.totalorder %s22, 0
      %p320 = por %p318, %p319
      %p321 = scmp.ne.s32.totalorder %s310, %s313
      %p322 = scmp.eq.s32.totalorder %s27, 1
      %p323 = por %p321, %p322
      %p324 = scmp.ne.s32.totalorder %s313, %s314
      %p325 = scmp.eq.s32.totalorder %s27, 0
      %p326 = por %p324, %p325
      %p327 = scmp.ne.s32.totalorder %s313, %s314
      %p328 = scmp.eq.s32.totalorder %s28, 1
      %p329 = por %p327, %p328
      %p331 = scmp.ne.s32.totalorder %s314, %s330
      %p332 = scmp.eq.s32.totalorder %s28, 0
      %p333 = por %p331, %p332
      %p334 = scmp.le.s32.totalorder 1, %s22
      %p335 = scmp.lt.s32.totalorder %s22, 3
      %p336 = pnand %p334, %p335
      %p337 = pneg %p336
      // Predicated region
      $region9: #{_mnist_forward.1} parent=5 // pred_check
        _
      $region10: #{_mnist_forward.1} parent=5 // pred_check_branch
        %339 = sbr.rel (%p336) target = $region12
      $region11: #{_mnist_forward.1} parent=5 // pred_region
        %s340 = ssub.s32 %s22, 1
        // Predicated region
        $region13: #{_mnist_forward.1} parent=11 // pred_check
          %p341 = pneg %p69
        $region14: #{_mnist_forward.1} parent=11 // pred_check_branch
          %343 = sbr.rel (%p341) target = $region16
        $region15: #{_mnist_forward.1} parent=11 // pred_region
          _
        $region16: #{_mnist_forward.1} parent=11 // pred_fallthru
          _
        // Predicated region
        $region17: #{_mnist_forward.1} parent=11 // pred_check
          %p344 = pneg %p90
        $region18: #{_mnist_forward.1} parent=11 // pred_check_branch
          %346 = sbr.rel (%p344) target = $region20
        $region19: #{_mnist_forward.1} parent=11 // pred_region
          _
        $region20: #{_mnist_forward.1} parent=11 // pred_fallthru
          _
        // Predicated region
        $region21: #{_mnist_forward.1} parent=11 // pred_check
          %p347 = pneg %p111
        $region22: #{_mnist_forward.1} parent=11 // pred_check_branch
          %349 = sbr.rel (%p347) target = $region24
        $region23: #{_mnist_forward.1} parent=11 // pred_region
          _
        $region24: #{_mnist_forward.1} parent=11 // pred_fallthru
          _
        // Predicated region
        $region25: #{_mnist_forward.1} parent=11 // pred_check
          %p350 = pneg %p132
        $region26: #{_mnist_forward.1} parent=11 // pred_check_branch
          %352 = sbr.rel (%p350) target = $region28
        $region27: #{_mnist_forward.1} parent=11 // pred_region
          _
        $region28: #{_mnist_forward.1} parent=11 // pred_fallthru
          _
        // Predicated region
        $region29: #{_mnist_forward.1} parent=11 // pred_check
          %p353 = pneg %p153
        $region30: #{_mnist_forward.1} parent=11 // pred_check_branch
          %355 = sbr.rel (%p353) target = $region32
        $region31: #{_mnist_forward.1} parent=11 // pred_region
          _
        $region32: #{_mnist_forward.1} parent=11 // pred_fallthru
          _
        // Predicated region
        $region33: #{_mnist_forward.1} parent=11 // pred_check
          %p356 = pneg %p174
        $region34: #{_mnist_forward.1} parent=11 // pred_check_branch
          %358 = sbr.rel (%p356) target = $region36
        $region35: #{_mnist_forward.1} parent=11 // pred_region
          _
        $region36: #{_mnist_forward.1} parent=11 // pred_fallthru
          _
        // Predicated region
        $region37: #{_mnist_forward.1} parent=11 // pred_check
          %p359 = pneg %p195
        $region38: #{_mnist_forward.1} parent=11 // pred_check_branch
          %361 = sbr.rel (%p359) target = $region40
        $region39: #{_mnist_forward.1} parent=11 // pred_region
          _
        $region40: #{_mnist_forward.1} parent=11 // pred_fallthru
          _
        // Predicated region
        $region41: #{_mnist_forward.1} parent=11 // pred_check
          %p362 = pneg %p216
        $region42: #{_mnist_forward.1} parent=11 // pred_check_branch
          %364 = sbr.rel (%p362) target = $region44
        $region43: #{_mnist_forward.1} parent=11 // pred_region
          _
        $region44: #{_mnist_forward.1} parent=11 // pred_fallthru
          _
        // Predicated region
        $region45: #{_mnist_forward.1} parent=11 // pred_check
          %p365 = pneg %p237
        $region46: #{_mnist_forward.1} parent=11 // pred_check_branch
          %367 = sbr.rel (%p365) target = $region48
        $region47: #{_mnist_forward.1} parent=11 // pred_region
          _
        $region48: #{_mnist_forward.1} parent=11 // pred_fallthru
          _
        // Predicated region
        $region49: #{_mnist_forward.1} parent=11 // pred_check
          %p368 = pneg %p258
        $region50: #{_mnist_forward.1} parent=11 // pred_check_branch
          %370 = sbr.rel (%p368) target = $region52
        $region51: #{_mnist_forward.1} parent=11 // pred_region
          _
        $region52: #{_mnist_forward.1} parent=11 // pred_fallthru
          _
        // Predicated region
        $region53: #{_mnist_forward.1} parent=11 // pred_check
          %p371 = pneg %p279
        $region54: #{_mnist_forward.1} parent=11 // pred_check_branch
          %373 = sbr.rel (%p371) target = $region56
        $region55: #{_mnist_forward.1} parent=11 // pred_region
          _
        $region56: #{_mnist_forward.1} parent=11 // pred_fallthru
          _
        // Predicated region
        $region57: #{_mnist_forward.1} parent=11 // pred_check
          %p374 = pneg %p300
        $region58: #{_mnist_forward.1} parent=11 // pred_check_branch
          %376 = sbr.rel (%p374) target = $region60
        $region59: #{_mnist_forward.1} parent=11 // pred_region
          _
        $region60: #{_mnist_forward.1} parent=11 // pred_fallthru
          _
      $region12: #{_mnist_forward.1} parent=5 // pred_fallthru
        _
      %p377 = scmp.lt.s32.totalorder %s22, 2
      // Predicated region
      $region61: #{_mnist_forward.1} parent=5 // pred_check
        %p378 = pneg %p377
      $region62: #{_mnist_forward.1} parent=5 // pred_check_branch
        %380 = sbr.rel (%p378) target = $region64
      $region63: #{_mnist_forward.1} parent=5 // pred_region
        // Predicated region
        $region65: #{_mnist_forward.1} parent=63 // pred_check
          %p381 = pneg %p42
        $region66: #{_mnist_forward.1} parent=63 // pred_check_branch
          %383 = sbr.rel (%p381) target = $region68
        $region67: #{_mnist_forward.1} parent=63 // pred_region
          %s384 = smul.u32 8, %s22
          %p385 = scmp.lt.s32.totalorder %s384, 15
          %s386 = scalar_select %p385, %s384, 15
          %s387 = smul.addr %s386, 4
          %s388 = smul.addr %s387, 8
          %s389 = scalar_lea.vmem %s0, %s388
          %s390 = smul.u32 8, %s22
        $region68: #{_mnist_forward.1} parent=63 // pred_fallthru
          _
      $region64: #{_mnist_forward.1} parent=5 // pred_fallthru
        _
      %p391 = scmp.le.s32.totalorder 1, %s22
      %p392 = scmp.lt.s32.totalorder %s22, 3
      %p393 = pnand %p391, %p392
      %p394 = pneg %p393
      // Predicated region
      $region69: #{_mnist_forward.1} parent=5 // pred_check
        _
      $region70: #{_mnist_forward.1} parent=5 // pred_check_branch
        %396 = sbr.rel (%p393) target = $region72
      $region71: #{_mnist_forward.1} parent=5 // pred_region
        %s397 = ssub.s32 %s22, 1
        %s398 = smul.u32 8, %s27
        %p399 = scmp.lt.s32.totalorder %s398, 15
        %s400 = scalar_select %p399, %s398, 15
        %s401 = smul.addr %s400, 4
        %s402 = smul.addr %s401, 8
        %s403 = scalar_lea.vmem %s0, %s402
        %p404 = pneg %p48
        %p405 = pneg %p45
        %p406 = pneg %p69
        %p407 = pneg %p66
        %p408 = pneg %p90
        %p409 = pneg %p87
        %p410 = pneg %p111
        %p411 = pneg %p108
        %p412 = pneg %p132
        %p413 = pneg %p129
        %p414 = pneg %p153
        %p415 = pneg %p150
        %p416 = pneg %p174
        %p417 = pneg %p171
        %p418 = pneg %p195
        %p419 = pneg %p192
        %p420 = pneg %p216
        %p421 = pneg %p213
        %p422 = pneg %p237
        %p423 = pneg %p234
        %p424 = pneg %p258
        %p425 = pneg %p255
        %p426 = pneg %p279
        %p427 = pneg %p276
        %p428 = pneg %p300
        %p429 = pneg %p297
        %p430 = pneg %p326
        %p431 = pneg %p323
        %s432 = sand.u32 %s313, 1
        %s433 = scalar_lea.sflag [#allocation4], %s432
        %s434 = sand.u32 %s313, 1
        %s435 = smul.addr %s434, 8
        %s436 = scalar_lea.vmem [#allocation3], %s435
        %s437 = smul.u32 8, %s27
        %p438 = scmp.lt.s32.totalorder %s437, 15
        %s439 = scalar_select %p438, %s437, 15
        %s440 = smul.addr %s439, 4
        %s441 = smul.addr %s440, 8
        %s442 = scalar_lea.vmem %s0, %s441
        %s443 = smul.u32 8, %s27
        %444 = vst [vmem:[#allocation2] sm:$0xff] 0.0
        %445 = vst [vmem:[#allocation2 + $0x8] sm:$0xff] 0.0
        %446 = vst [vmem:[#allocation2 + $0x10] sm:$0xff] 0.0
        %447 = vst [vmem:[#allocation2 + $0x18] sm:$0xff] 0.0
        %448 = vst [vmem:[#allocation2 + $0x20] sm:$0xff] 0.0
        %449 = vst [vmem:[#allocation2 + $0x28] sm:$0xff] 0.0
        %450 = vst [vmem:[#allocation2 + $0x30] sm:$0xff] 0.0
        %451 = vst [vmem:[#allocation2 + $0x38] sm:$0xff] 0.0
        %452 = vst [vmem:[#allocation2 + $0x40] sm:$0xff] 0.0
        %453 = vst [vmem:[#allocation2 + $0x48] sm:$0xff] 0.0
        %454 = vst [vmem:[#allocation2 + $0x50] sm:$0xff] 0.0
        %455 = vst [vmem:[#allocation2 + $0x58] sm:$0xff] 0.0
        %456 = vst [vmem:[#allocation2 + $0x60] sm:$0xff] 0.0
        %457 = vst [vmem:[#allocation2 + $0x68] sm:$0xff] 0.0
        %458 = vst [vmem:[#allocation2 + $0x70] sm:$0xff] 0.0
        %459 = vst [vmem:[#allocation2 + $0x78] sm:$0xff] 0.0
        %460 = vst [vmem:[#allocation2 + $0x80] sm:$0xff] 0.0
        %461 = vst [vmem:[#allocation2 + $0x88] sm:$0xff] 0.0
        %462 = vst [vmem:[#allocation2 + $0x90] sm:$0xff] 0.0
        %463 = vst [vmem:[#allocation2 + $0x98] sm:$0xff] 0.0
        %464 = vst [vmem:[#allocation2 + $0xa0] sm:$0xff] 0.0
        %465 = vst [vmem:[#allocation2 + $0xa8] sm:$0xff] 0.0
        %466 = vst [vmem:[#allocation2 + $0xb0] sm:$0xff] 0.0
        %467 = vst [vmem:[#allocation2 + $0xb8] sm:$0xff] 0.0
        %468 = vst [vmem:[#allocation2 + $0xc0] sm:$0xff] 0.0
        %469 = vst [vmem:[#allocation2 + $0xc8] sm:$0xff] 0.0
        %470 = vst [vmem:[#allocation2 + $0xd0] sm:$0xff] 0.0
        %471 = vst [vmem:[#allocation2 + $0xd8] sm:$0xff] 0.0
        %472 = vst [vmem:[#allocation2 + $0xe0] sm:$0xff] 0.0
        %473 = vst [vmem:[#allocation2 + $0xe8] sm:$0xff] 0.0
        %474 = vst [vmem:[#allocation2 + $0xf0] sm:$0xff] 0.0
        %475 = vst [vmem:[#allocation2 + $0xf8] sm:$0xff] 0.0
        %476 = vst [vmem:[#allocation2 + $0x100] sm:$0xff] 0.0
        %477 = vst [vmem:[#allocation2 + $0x108] sm:$0xff] 0.0
        %478 = vst [vmem:[#allocation2 + $0x110] sm:$0xff] 0.0
        %479 = vst [vmem:[#allocation2 + $0x118] sm:$0xff] 0.0
        %480 = vst [vmem:[#allocation2 + $0x120] sm:$0xff] 0.0
        %481 = vst [vmem:[#allocation2 + $0x128] sm:$0xff] 0.0
        %482 = vst [vmem:[#allocation2 + $0x130] sm:$0xff] 0.0
        %483 = vst [vmem:[#allocation2 + $0x138] sm:$0xff] 0.0
        %484 = vst [vmem:[#allocation2 + $0x140] sm:$0xff] 0.0
        %485 = vst [vmem:[#allocation2 + $0x148] sm:$0xff] 0.0
        %486 = vst [vmem:[#allocation2 + $0x150] sm:$0xff] 0.0
        %487 = vst [vmem:[#allocation2 + $0x158] sm:$0xff] 0.0
        %488 = vst [vmem:[#allocation2 + $0x160] sm:$0xff] 0.0
        %489 = vst [vmem:[#allocation2 + $0x168] sm:$0xff] 0.0
        %490 = vst [vmem:[#allocation2 + $0x170] sm:$0xff] 0.0
        %491 = vst [vmem:[#allocation2 + $0x178] sm:$0xff] 0.0
        %492 = vst [vmem:[#allocation2 + $0x180] sm:$0xff] 0.0
        %493 = vst [vmem:[#allocation2 + $0x188] sm:$0xff] 0.0
        %494 = vst [vmem:[#allocation2 + $0x190] sm:$0xff] 0.0
        %495 = vst [vmem:[#allocation2 + $0x198] sm:$0xff] 0.0
        %496 = vst [vmem:[#allocation2 + $0x1a0] sm:$0xff] 0.0
        %497 = vst [vmem:[#allocation2 + $0x1a8] sm:$0xff] 0.0
        %498 = vst [vmem:[#allocation2 + $0x1b0] sm:$0xff] 0.0
        %499 = vst [vmem:[#allocation2 + $0x1b8] sm:$0xff] 0.0
        %500 = vst [vmem:[#allocation2 + $0x1c0] sm:$0xff] 0.0
        %501 = vst [vmem:[#allocation2 + $0x1c8] sm:$0xff] 0.0
        %502 = vst [vmem:[#allocation2 + $0x1d0] sm:$0xff] 0.0
        %503 = vst [vmem:[#allocation2 + $0x1d8] sm:$0xff] 0.0
        %504 = vst [vmem:[#allocation2 + $0x1e0] sm:$0xff] 0.0
        %505 = vst [vmem:[#allocation2 + $0x1e8] sm:$0xff] 0.0
        %506 = vst [vmem:[#allocation2 + $0x1f0] sm:$0xff] 0.0
        %507 = vst [vmem:[#allocation2 + $0x1f8] sm:$0xff] 0.0
        %508 = vst [vmem:[#allocation2 + $0x200] sm:$0xff] 0.0
        %509 = vst [vmem:[#allocation2 + $0x208] sm:$0xff] 0.0
        %510 = vst [vmem:[#allocation2 + $0x210] sm:$0xff] 0.0
        %511 = vst [vmem:[#allocation2 + $0x218] sm:$0xff] 0.0
        %512 = vst [vmem:[#allocation2 + $0x220] sm:$0xff] 0.0
        %513 = vst [vmem:[#allocation2 + $0x228] sm:$0xff] 0.0
        %514 = vst [vmem:[#allocation2 + $0x230] sm:$0xff] 0.0
        %515 = vst [vmem:[#allocation2 + $0x238] sm:$0xff] 0.0
        %516 = vst [vmem:[#allocation2 + $0x240] sm:$0xff] 0.0
        %517 = vst [vmem:[#allocation2 + $0x248] sm:$0xff] 0.0
        %518 = vst [vmem:[#allocation2 + $0x250] sm:$0xff] 0.0
        %519 = vst [vmem:[#allocation2 + $0x258] sm:$0xff] 0.0
        %520 = vst [vmem:[#allocation2 + $0x260] sm:$0xff] 0.0
        %521 = vst [vmem:[#allocation2 + $0x268] sm:$0xff] 0.0
        %522 = vst [vmem:[#allocation2 + $0x270] sm:$0xff] 0.0
        %523 = vst [vmem:[#allocation2 + $0x278] sm:$0xff] 0.0
        %524 = vst [vmem:[#allocation2 + $0x280] sm:$0xff] 0.0
        %525 = vst [vmem:[#allocation2 + $0x288] sm:$0xff] 0.0
        %526 = vst [vmem:[#allocation2 + $0x290] sm:$0xff] 0.0
        %527 = vst [vmem:[#allocation2 + $0x298] sm:$0xff] 0.0
        %528 = vst [vmem:[#allocation2 + $0x2a0] sm:$0xff] 0.0
        %529 = vst [vmem:[#allocation2 + $0x2a8] sm:$0xff] 0.0
        %530 = vst [vmem:[#allocation2 + $0x2b0] sm:$0xff] 0.0
        %531 = vst [vmem:[#allocation2 + $0x2b8] sm:$0xff] 0.0
        %532 = vst [vmem:[#allocation2 + $0x2c0] sm:$0xff] 0.0
        %533 = vst [vmem:[#allocation2 + $0x2c8] sm:$0xff] 0.0
        %534 = vst [vmem:[#allocation2 + $0x2d0] sm:$0xff] 0.0
        %535 = vst [vmem:[#allocation2 + $0x2d8] sm:$0xff] 0.0
        %536 = vst [vmem:[#allocation2 + $0x2e0] sm:$0xff] 0.0
        %537 = vst [vmem:[#allocation2 + $0x2e8] sm:$0xff] 0.0
        %538 = vst [vmem:[#allocation2 + $0x2f0] sm:$0xff] 0.0
        %539 = vst [vmem:[#allocation2 + $0x2f8] sm:$0xff] 0.0
        %v540 = vld [vmem:[%s442] sm:$0xff]
        %v541 = vld [vmem:[%s442 + $0x8] sm:$0xff]
        %v542 = vld [vmem:[%s442 + $0x10] sm:$0xff]
        %v543 = vld [vmem:[%s442 + $0x18] sm:$0x7]
        %v544 = vld [vmem:[%s442 + $0x20] sm:$0xff]
        %v545 = vld [vmem:[%s442 + $0x28] sm:$0xff]
        %v546 = vld [vmem:[%s442 + $0x30] sm:$0xff]
        %v547 = vld [vmem:[%s442 + $0x38] sm:$0x7]
        %v548 = vld [vmem:[%s442 + $0x40] sm:$0xff]
        %v549 = vld [vmem:[%s442 + $0x48] sm:$0xff]
        %v550 = vld [vmem:[%s442 + $0x50] sm:$0xff]
        %v551 = vld [vmem:[%s442 + $0x58] sm:$0x7]
        %v552 = vld [vmem:[%s442 + $0x60] sm:$0xff]
        %v553 = vld [vmem:[%s442 + $0x68] sm:$0xff]
        %v554 = vld [vmem:[%s442 + $0x70] sm:$0xff]
        %v555 = vld [vmem:[%s442 + $0x78] sm:$0x7]
        %v556 = vld [vmem:[%s442 + $0x80] sm:$0xff]
        %v557 = vld [vmem:[%s442 + $0x88] sm:$0xff]
        %v558 = vld [vmem:[%s442 + $0x90] sm:$0xff]
        %v559 = vld [vmem:[%s442 + $0x98] sm:$0x7]
        %v560 = vld [vmem:[%s442 + $0xa0] sm:$0xff]
        %v561 = vld [vmem:[%s442 + $0xa8] sm:$0xff]
        %v562 = vld [vmem:[%s442 + $0xb0] sm:$0xff]
        %v563 = vld [vmem:[%s442 + $0xb8] sm:$0x7]
        %v564 = vld [vmem:[%s442 + $0xc0] sm:$0xff]
        %v565 = vld [vmem:[%s442 + $0xc8] sm:$0xff]
        %v566 = vld [vmem:[%s442 + $0xd0] sm:$0xff]
        %v567 = vld [vmem:[%s442 + $0xd8] sm:$0x7]
        %v568 = vld [vmem:[%s442 + $0xe0] sm:$0xff]
        %v569 = vld [vmem:[%s442 + $0xe8] sm:$0xff]
        %v570 = vld [vmem:[%s442 + $0xf0] sm:$0xff]
        %v571 = vld [vmem:[%s442 + $0xf8] sm:$0x7]
        %vm604 = vcmask 1041408
        %v605 = vrot.slane %v540, 6
        %v606 = vrot.slane %v541, 6
        %v607 = vsel %vm604, %v605, %v606
        %v608 = vrot.slane %v542, 6
        %v609 = vsel %vm604, %v606, %v608
        %v610 = vrot.slane %v543, 6
        %v611 = vsel %vm604, %v608, %v610
        %v612 = vrot.slane %v544, 6
        %v613 = vrot.slane %v545, 6
        %v614 = vsel %vm604, %v612, %v613
        %v615 = vrot.slane %v546, 6
        %v616 = vsel %vm604, %v613, %v615
        %v617 = vrot.slane %v547, 6
        %v618 = vsel %vm604, %v615, %v617
        %v619 = vrot.slane %v548, 6
        %v620 = vrot.slane %v549, 6
        %v621 = vsel %vm604, %v619, %v620
        %v622 = vrot.slane %v550, 6
        %v623 = vsel %vm604, %v620, %v622
        %v624 = vrot.slane %v551, 6
        %v625 = vsel %vm604, %v622, %v624
        %v626 = vrot.slane %v552, 6
        %v627 = vrot.slane %v553, 6
        %v628 = vsel %vm604, %v626, %v627
        %v629 = vrot.slane %v554, 6
        %v630 = vsel %vm604, %v627, %v629
        %v631 = vrot.slane %v555, 6
        %v632 = vsel %vm604, %v629, %v631
        %v633 = vrot.slane %v556, 6
        %v634 = vrot.slane %v557, 6
        %v635 = vsel %vm604, %v633, %v634
        %v636 = vrot.slane %v558, 6
        %v637 = vsel %vm604, %v634, %v636
        %v638 = vrot.slane %v559, 6
        %v639 = vsel %vm604, %v636, %v638
        %v640 = vrot.slane %v560, 6
        %v641 = vrot.slane %v561, 6
        %v642 = vsel %vm604, %v640, %v641
        %v643 = vrot.slane %v562, 6
        %v644 = vsel %vm604, %v641, %v643
        %v645 = vrot.slane %v563, 6
        %v646 = vsel %vm604, %v643, %v645
        %v647 = vrot.slane %v564, 6
        %v648 = vrot.slane %v565, 6
        %v649 = vsel %vm604, %v647, %v648
        %v650 = vrot.slane %v566, 6
        %v651 = vsel %vm604, %v648, %v650
        %v652 = vrot.slane %v567, 6
        %v653 = vsel %vm604, %v650, %v652
        %v654 = vrot.slane %v568, 6
        %v655 = vrot.slane %v569, 6
        %v656 = vsel %vm604, %v654, %v655
        %v657 = vrot.slane %v570, 6
        %v658 = vsel %vm604, %v655, %v657
        %v659 = vrot.slane %v571, 6
        %v660 = vsel %vm604, %v657, %v659
        %vm693 = vcmask 228354
        %694 = vst.msk [vmem:[#allocation2] sm:$0xfc] %vm693, %v605
        %vm695 = vcmask 228352
        %696 = vst.msk [vmem:[#allocation2 + $0x18] sm:$0xff] %vm695, %v607
        %697 = vst.msk [vmem:[#allocation2 + $0x30] sm:$0xff] %vm695, %v609
        %vm698 = vcmask 225280
        %699 = vst.msk [vmem:[#allocation2 + $0x48] sm:$0x1f] %vm698, %v611
        %700 = vst.msk [vmem:[#allocation2 + $0x60] sm:$0xfc] %vm693, %v612
        %701 = vst.msk [vmem:[#allocation2 + $0x78] sm:$0xff] %vm695, %v614
        %702 = vst.msk [vmem:[#allocation2 + $0x90] sm:$0xff] %vm695, %v616
        %703 = vst.msk [vmem:[#allocation2 + $0xa8] sm:$0x1f] %vm698, %v618
        %704 = vst.msk [vmem:[#allocation2 + $0xc0] sm:$0xfc] %vm693, %v619
        %705 = vst.msk [vmem:[#allocation2 + $0xd8] sm:$0xff] %vm695, %v621
        %706 = vst.msk [vmem:[#allocation2 + $0xf0] sm:$0xff] %vm695, %v623
        %707 = vst.msk [vmem:[#allocation2 + $0x108] sm:$0x1f] %vm698, %v625
        %708 = vst.msk [vmem:[#allocation2 + $0x120] sm:$0xfc] %vm693, %v626
        %709 = vst.msk [vmem:[#allocation2 + $0x138] sm:$0xff] %vm695, %v628
        %710 = vst.msk [vmem:[#allocation2 + $0x150] sm:$0xff] %vm695, %v630
        %711 = vst.msk [vmem:[#allocation2 + $0x168] sm:$0x1f] %vm698, %v632
        %712 = vst.msk [vmem:[#allocation2 + $0x180] sm:$0xfc] %vm693, %v633
        %713 = vst.msk [vmem:[#allocation2 + $0x198] sm:$0xff] %vm695, %v635
        %714 = vst.msk [vmem:[#allocation2 + $0x1b0] sm:$0xff] %vm695, %v637
        %715 = vst.msk [vmem:[#allocation2 + $0x1c8] sm:$0x1f] %vm698, %v639
        %716 = vst.msk [vmem:[#allocation2 + $0x1e0] sm:$0xfc] %vm693, %v640
        %717 = vst.msk [vmem:[#allocation2 + $0x1f8] sm:$0xff] %vm695, %v642
        %718 = vst.msk [vmem:[#allocation2 + $0x210] sm:$0xff] %vm695, %v644
        %719 = vst.msk [vmem:[#allocation2 + $0x228] sm:$0x1f] %vm698, %v646
        %720 = vst.msk [vmem:[#allocation2 + $0x240] sm:$0xfc] %vm693, %v647
        %721 = vst.msk [vmem:[#allocation2 + $0x258] sm:$0xff] %vm695, %v649
        %722 = vst.msk [vmem:[#allocation2 + $0x270] sm:$0xff] %vm695, %v651
        %723 = vst.msk [vmem:[#allocation2 + $0x288] sm:$0x1f] %vm698, %v653
        %724 = vst.msk [vmem:[#allocation2 + $0x2a0] sm:$0xfc] %vm693, %v654
        %725 = vst.msk [vmem:[#allocation2 + $0x2b8] sm:$0xff] %vm695, %v656
        %726 = vst.msk [vmem:[#allocation2 + $0x2d0] sm:$0xff] %vm695, %v658
        %727 = vst.msk [vmem:[#allocation2 + $0x2e8] sm:$0x1f] %vm698, %v660
        %v728 = vld [vmem:[%s442] sm:$0xff]
        %v729 = vld [vmem:[%s442 + $0x8] sm:$0xff]
        %v730 = vld [vmem:[%s442 + $0x10] sm:$0xff]
        %v731 = vld [vmem:[%s442 + $0x18] sm:$0xf]
        %v732 = vld [vmem:[%s442 + $0x20] sm:$0xff]
        %v733 = vld [vmem:[%s442 + $0x28] sm:$0xff]
        %v734 = vld [vmem:[%s442 + $0x30] sm:$0xff]
        %v735 = vld [vmem:[%s442 + $0x38] sm:$0xf]
        %v736 = vld [vmem:[%s442 + $0x40] sm:$0xff]
        %v737 = vld [vmem:[%s442 + $0x48] sm:$0xff]
        %v738 = vld [vmem:[%s442 + $0x50] sm:$0xff]
        %v739 = vld [vmem:[%s442 + $0x58] sm:$0xf]
        %v740 = vld [vmem:[%s442 + $0x60] sm:$0xff]
        %v741 = vld [vmem:[%s442 + $0x68] sm:$0xff]
        %v742 = vld [vmem:[%s442 + $0x70] sm:$0xff]
        %v743 = vld [vmem:[%s442 + $0x78] sm:$0xf]
        %v744 = vld [vmem:[%s442 + $0x80] sm:$0xff]
        %v745 = vld [vmem:[%s442 + $0x88] sm:$0xff]
        %v746 = vld [vmem:[%s442 + $0x90] sm:$0xff]
        %v747 = vld [vmem:[%s442 + $0x98] sm:$0xf]
        %v748 = vld [vmem:[%s442 + $0xa0] sm:$0xff]
        %v749 = vld [vmem:[%s442 + $0xa8] sm:$0xff]
        %v750 = vld [vmem:[%s442 + $0xb0] sm:$0xff]
        %v751 = vld [vmem:[%s442 + $0xb8] sm:$0xf]
        %v752 = vld [vmem:[%s442 + $0xc0] sm:$0xff]
        %v753 = vld [vmem:[%s442 + $0xc8] sm:$0xff]
        %v754 = vld [vmem:[%s442 + $0xd0] sm:$0xff]
        %v755 = vld [vmem:[%s442 + $0xd8] sm:$0xf]
        %v756 = vld [vmem:[%s442 + $0xe0] sm:$0xff]
        %v757 = vld [vmem:[%s442 + $0xe8] sm:$0xff]
        %v758 = vld [vmem:[%s442 + $0xf0] sm:$0xff]
        %v759 = vld [vmem:[%s442 + $0xf8] sm:$0xf]
        %vm792 = vcmask 1040384
        %v793 = vrot.slane %v728, 7
        %v794 = vrot.slane %v729, 7
        %v795 = vsel %vm792, %v793, %v794
        %v796 = vrot.slane %v730, 7
        %v797 = vsel %vm792, %v794, %v796
        %v798 = vrot.slane %v731, 7
        %v799 = vsel %vm792, %v796, %v798
        %v800 = vrot.slane %v732, 7
        %v801 = vrot.slane %v733, 7
        %v802 = vsel %vm792, %v800, %v801
        %v803 = vrot.slane %v734, 7
        %v804 = vsel %vm792, %v801, %v803
        %v805 = vrot.slane %v735, 7
        %v806 = vsel %vm792, %v803, %v805
        %v807 = vrot.slane %v736, 7
        %v808 = vrot.slane %v737, 7
        %v809 = vsel %vm792, %v807, %v808
        %v810 = vrot.slane %v738, 7
        %v811 = vsel %vm792, %v808, %v810
        %v812 = vrot.slane %v739, 7
        %v813 = vsel %vm792, %v810, %v812
        %v814 = vrot.slane %v740, 7
        %v815 = vrot.slane %v741, 7
        %v816 = vsel %vm792, %v814, %v815
        %v817 = vrot.slane %v742, 7
        %v818 = vsel %vm792, %v815, %v817
        %v819 = vrot.slane %v743, 7
        %v820 = vsel %vm792, %v817, %v819
        %v821 = vrot.slane %v744, 7
        %v822 = vrot.slane %v745, 7
        %v823 = vsel %vm792, %v821, %v822
        %v824 = vrot.slane %v746, 7
        %v825 = vsel %vm792, %v822, %v824
        %v826 = vrot.slane %v747, 7
        %v827 = vsel %vm792, %v824, %v826
        %v828 = vrot.slane %v748, 7
        %v829 = vrot.slane %v749, 7
        %v830 = vsel %vm792, %v828, %v829
        %v831 = vrot.slane %v750, 7
        %v832 = vsel %vm792, %v829, %v831
        %v833 = vrot.slane %v751, 7
        %v834 = vsel %vm792, %v831, %v833
        %v835 = vrot.slane %v752, 7
        %v836 = vrot.slane %v753, 7
        %v837 = vsel %vm792, %v835, %v836
        %v838 = vrot.slane %v754, 7
        %v839 = vsel %vm792, %v836, %v838
        %v840 = vrot.slane %v755, 7
        %v841 = vsel %vm792, %v838, %v840
        %v842 = vrot.slane %v756, 7
        %v843 = vrot.slane %v757, 7
        %v844 = vsel %vm792, %v842, %v843
        %v845 = vrot.slane %v758, 7
        %v846 = vsel %vm792, %v843, %v845
        %v847 = vrot.slane %v759, 7
        %v848 = vsel %vm792, %v845, %v847
        %vm881 = vcmask 228353
        %882 = vst.msk [vmem:[#allocation2 + $0x8] sm:$0xfe] %vm881, %v793
        %883 = vst.msk [vmem:[#allocation2 + $0x20] sm:$0xff] %vm695, %v795
        %884 = vst.msk [vmem:[#allocation2 + $0x38] sm:$0xff] %vm695, %v797
        %885 = vst.msk [vmem:[#allocation2 + $0x50] sm:$0x1f] %vm698, %v799
        %886 = vst.msk [vmem:[#allocation2 + $0x68] sm:$0xfe] %vm881, %v800
        %887 = vst.msk [vmem:[#allocation2 + $0x80] sm:$0xff] %vm695, %v802
        %888 = vst.msk [vmem:[#allocation2 + $0x98] sm:$0xff] %vm695, %v804
        %889 = vst.msk [vmem:[#allocation2 + $0xb0] sm:$0x1f] %vm698, %v806
        %890 = vst.msk [vmem:[#allocation2 + $0xc8] sm:$0xfe] %vm881, %v807
        %891 = vst.msk [vmem:[#allocation2 + $0xe0] sm:$0xff] %vm695, %v809
        %892 = vst.msk [vmem:[#allocation2 + $0xf8] sm:$0xff] %vm695, %v811
        %893 = vst.msk [vmem:[#allocation2 + $0x110] sm:$0x1f] %vm698, %v813
        %894 = vst.msk [vmem:[#allocation2 + $0x128] sm:$0xfe] %vm881, %v814
        %895 = vst.msk [vmem:[#allocation2 + $0x140] sm:$0xff] %vm695, %v816
        %896 = vst.msk [vmem:[#allocation2 + $0x158] sm:$0xff] %vm695, %v818
        %897 = vst.msk [vmem:[#allocation2 + $0x170] sm:$0x1f] %vm698, %v820
        %898 = vst.msk [vmem:[#allocation2 + $0x188] sm:$0xfe] %vm881, %v821
        %899 = vst.msk [vmem:[#allocation2 + $0x1a0] sm:$0xff] %vm695, %v823
        %900 = vst.msk [vmem:[#allocation2 + $0x1b8] sm:$0xff] %vm695, %v825
        %901 = vst.msk [vmem:[#allocation2 + $0x1d0] sm:$0x1f] %vm698, %v827
        %902 = vst.msk [vmem:[#allocation2 + $0x1e8] sm:$0xfe] %vm881, %v828
        %903 = vst.msk [vmem:[#allocation2 + $0x200] sm:$0xff] %vm695, %v830
        %904 = vst.msk [vmem:[#allocation2 + $0x218] sm:$0xff] %vm695, %v832
        %905 = vst.msk [vmem:[#allocation2 + $0x230] sm:$0x1f] %vm698, %v834
        %906 = vst.msk [vmem:[#allocation2 + $0x248] sm:$0xfe] %vm881, %v835
        %907 = vst.msk [vmem:[#allocation2 + $0x260] sm:$0xff] %vm695, %v837
        %908 = vst.msk [vmem:[#allocation2 + $0x278] sm:$0xff] %vm695, %v839
        %909 = vst.msk [vmem:[#allocation2 + $0x290] sm:$0x1f] %vm698, %v841
        %910 = vst.msk [vmem:[#allocation2 + $0x2a8] sm:$0xfe] %vm881, %v842
        %911 = vst.msk [vmem:[#allocation2 + $0x2c0] sm:$0xff] %vm695, %v844
        %912 = vst.msk [vmem:[#allocation2 + $0x2d8] sm:$0xff] %vm695, %v846
        %913 = vst.msk [vmem:[#allocation2 + $0x2f0] sm:$0x1f] %vm698, %v848
        %v914 = vld [vmem:[%s442 + $0x1] sm:$0xff]
        %v915 = vld [vmem:[%s442 + $0x9] sm:$0xff]
        %v916 = vld [vmem:[%s442 + $0x11] sm:$0xff]
        %v917 = vld [vmem:[%s442 + $0x19] sm:$0x7]
        %v918 = vld [vmem:[%s442 + $0x21] sm:$0xff]
        %v919 = vld [vmem:[%s442 + $0x29] sm:$0xff]
        %v920 = vld [vmem:[%s442 + $0x31] sm:$0xff]
        %v921 = vld [vmem:[%s442 + $0x39] sm:$0x7]
        %v922 = vld [vmem:[%s442 + $0x41] sm:$0xff]
        %v923 = vld [vmem:[%s442 + $0x49] sm:$0xff]
        %v924 = vld [vmem:[%s442 + $0x51] sm:$0xff]
        %v925 = vld [vmem:[%s442 + $0x59] sm:$0x7]
        %v926 = vld [vmem:[%s442 + $0x61] sm:$0xff]
        %v927 = vld [vmem:[%s442 + $0x69] sm:$0xff]
        %v928 = vld [vmem:[%s442 + $0x71] sm:$0xff]
        %v929 = vld [vmem:[%s442 + $0x79] sm:$0x7]
        %v930 = vld [vmem:[%s442 + $0x81] sm:$0xff]
        %v931 = vld [vmem:[%s442 + $0x89] sm:$0xff]
        %v932 = vld [vmem:[%s442 + $0x91] sm:$0xff]
        %v933 = vld [vmem:[%s442 + $0x99] sm:$0x7]
        %v934 = vld [vmem:[%s442 + $0xa1] sm:$0xff]
        %v935 = vld [vmem:[%s442 + $0xa9] sm:$0xff]
        %v936 = vld [vmem:[%s442 + $0xb1] sm:$0xff]
        %v937 = vld [vmem:[%s442 + $0xb9] sm:$0x7]
        %v938 = vld [vmem:[%s442 + $0xc1] sm:$0xff]
        %v939 = vld [vmem:[%s442 + $0xc9] sm:$0xff]
        %v940 = vld [vmem:[%s442 + $0xd1] sm:$0xff]
        %v941 = vld [vmem:[%s442 + $0xd9] sm:$0x7]
        %v942 = vld [vmem:[%s442 + $0xe1] sm:$0xff]
        %v943 = vld [vmem:[%s442 + $0xe9] sm:$0xff]
        %v944 = vld [vmem:[%s442 + $0xf1] sm:$0xff]
        %v945 = vld [vmem:[%s442 + $0xf9] sm:$0x7]
        %v978 = vrot.slane %v914, 7
        %v979 = vrot.slane %v915, 7
        %v980 = vsel %vm792, %v978, %v979
        %v981 = vrot.slane %v916, 7
        %v982 = vsel %vm792, %v979, %v981
        %v983 = vrot.slane %v917, 7
        %v984 = vsel %vm792, %v981, %v983
        %v985 = vrot.slane %v918, 7
        %v986 = vrot.slane %v919, 7
        %v987 = vsel %vm792, %v985, %v986
        %v988 = vrot.slane %v920, 7
        %v989 = vsel %vm792, %v986, %v988
        %v990 = vrot.slane %v921, 7
        %v991 = vsel %vm792, %v988, %v990
        %v992 = vrot.slane %v922, 7
        %v993 = vrot.slane %v923, 7
        %v994 = vsel %vm792, %v992, %v993
        %v995 = vrot.slane %v924, 7
        %v996 = vsel %vm792, %v993, %v995
        %v997 = vrot.slane %v925, 7
        %v998 = vsel %vm792, %v995, %v997
        %v999 = vrot.slane %v926, 7
        %v1000 = vrot.slane %v927, 7
        %v1001 = vsel %vm792, %v999, %v1000
        %v1002 = vrot.slane %v928, 7
        %v1003 = vsel %vm792, %v1000, %v1002
        %v1004 = vrot.slane %v929, 7
        %v1005 = vsel %vm792, %v1002, %v1004
        %v1006 = vrot.slane %v930, 7
        %v1007 = vrot.slane %v931, 7
        %v1008 = vsel %vm792, %v1006, %v1007
        %v1009 = vrot.slane %v932, 7
        %v1010 = vsel %vm792, %v1007, %v1009
        %v1011 = vrot.slane %v933, 7
        %v1012 = vsel %vm792, %v1009, %v1011
        %v1013 = vrot.slane %v934, 7
        %v1014 = vrot.slane %v935, 7
        %v1015 = vsel %vm792, %v1013, %v1014
        %v1016 = vrot.slane %v936, 7
        %v1017 = vsel %vm792, %v1014, %v1016
        %v1018 = vrot.slane %v937, 7
        %v1019 = vsel %vm792, %v1016, %v1018
        %v1020 = vrot.slane %v938, 7
        %v1021 = vrot.slane %v939, 7
        %v1022 = vsel %vm792, %v1020, %v1021
        %v1023 = vrot.slane %v940, 7
        %v1024 = vsel %vm792, %v1021, %v1023
        %v1025 = vrot.slane %v941, 7
        %v1026 = vsel %vm792, %v1023, %v1025
        %v1027 = vrot.slane %v942, 7
        %v1028 = vrot.slane %v943, 7
        %v1029 = vsel %vm792, %v1027, %v1028
        %v1030 = vrot.slane %v944, 7
        %v1031 = vsel %vm792, %v1028, %v1030
        %v1032 = vrot.slane %v945, 7
        %v1033 = vsel %vm792, %v1030, %v1032
        %1066 = vst.msk [vmem:[#allocation2 + $0x10] sm:$0xfe] %vm881, %v978
        %1067 = vst.msk [vmem:[#allocation2 + $0x28] sm:$0xff] %vm695, %v980
        %1068 = vst.msk [vmem:[#allocation2 + $0x40] sm:$0xff] %vm695, %v982
        %vm1069 = vcmask 224256
        %1070 = vst.msk [vmem:[#allocation2 + $0x58] sm:$0xf] %vm1069, %v984
        %1071 = vst.msk [vmem:[#allocation2 + $0x70] sm:$0xfe] %vm881, %v985
        %1072 = vst.msk [vmem:[#allocation2 + $0x88] sm:$0xff] %vm695, %v987
        %1073 = vst.msk [vmem:[#allocation2 + $0xa0] sm:$0xff] %vm695, %v989
        %1074 = vst.msk [vmem:[#allocation2 + $0xb8] sm:$0xf] %vm1069, %v991
        %1075 = vst.msk [vmem:[#allocation2 + $0xd0] sm:$0xfe] %vm881, %v992
        %1076 = vst.msk [vmem:[#allocation2 + $0xe8] sm:$0xff] %vm695, %v994
        %1077 = vst.msk [vmem:[#allocation2 + $0x100] sm:$0xff] %vm695, %v996
        %1078 = vst.msk [vmem:[#allocation2 + $0x118] sm:$0xf] %vm1069, %v998
        %1079 = vst.msk [vmem:[#allocation2 + $0x130] sm:$0xfe] %vm881, %v999
        %1080 = vst.msk [vmem:[#allocation2 + $0x148] sm:$0xff] %vm695, %v1001
        %1081 = vst.msk [vmem:[#allocation2 + $0x160] sm:$0xff] %vm695, %v1003
        %1082 = vst.msk [vmem:[#allocation2 + $0x178] sm:$0xf] %vm1069, %v1005
        %1083 = vst.msk [vmem:[#allocation2 + $0x190] sm:$0xfe] %vm881, %v1006
        %1084 = vst.msk [vmem:[#allocation2 + $0x1a8] sm:$0xff] %vm695, %v1008
        %1085 = vst.msk [vmem:[#allocation2 + $0x1c0] sm:$0xff] %vm695, %v1010
        %1086 = vst.msk [vmem:[#allocation2 + $0x1d8] sm:$0xf] %vm1069, %v1012
        %1087 = vst.msk [vmem:[#allocation2 + $0x1f0] sm:$0xfe] %vm881, %v1013
        %1088 = vst.msk [vmem:[#allocation2 + $0x208] sm:$0xff] %vm695, %v1015
        %1089 = vst.msk [vmem:[#allocation2 + $0x220] sm:$0xff] %vm695, %v1017
        %1090 = vst.msk [vmem:[#allocation2 + $0x238] sm:$0xf] %vm1069, %v1019
        %1091 = vst.msk [vmem:[#allocation2 + $0x250] sm:$0xfe] %vm881, %v1020
        %1092 = vst.msk [vmem:[#allocation2 + $0x268] sm:$0xff] %vm695, %v1022
        %1093 = vst.msk [vmem:[#allocation2 + $0x280] sm:$0xff] %vm695, %v1024
        %1094 = vst.msk [vmem:[#allocation2 + $0x298] sm:$0xf] %vm1069, %v1026
        %1095 = vst.msk [vmem:[#allocation2 + $0x2b0] sm:$0xfe] %vm881, %v1027
        %1096 = vst.msk [vmem:[#allocation2 + $0x2c8] sm:$0xff] %vm695, %v1029
        %1097 = vst.msk [vmem:[#allocation2 + $0x2e0] sm:$0xff] %vm695, %v1031
        %1098 = vst.msk [vmem:[#allocation2 + $0x2f8] sm:$0xf] %vm1069, %v1033
        %v1099 = vld [vmem:[#allocation2] sm:$0xff]
        %v1100 = vld [vmem:[#allocation2 + $0x8] sm:$0xff]
        %v1101 = vld [vmem:[#allocation2 + $0x10] sm:$0xff]
        %v1102 = vld [vmem:[#allocation2 + $0x18] sm:$0xff]
        %v1103 = vld [vmem:[#allocation2 + $0x20] sm:$0xff]
        %v1104 = vld [vmem:[#allocation2 + $0x28] sm:$0xff]
        %v1105 = vld [vmem:[#allocation2 + $0x30] sm:$0xff]
        %v1106 = vld [vmem:[#allocation2 + $0x38] sm:$0xff]
        %v1107 = vld [vmem:[#allocation2 + $0x40] sm:$0xff]
        %v1108 = vld [vmem:[#allocation2 + $0x48] sm:$0xff]
        %v1109 = vld [vmem:[#allocation2 + $0x50] sm:$0xff]
        %v1110 = vld [vmem:[#allocation2 + $0x58] sm:$0xff]
        %v1111 = vld [vmem:[#allocation2 + $0x60] sm:$0xff]
        %v1112 = vld [vmem:[#allocation2 + $0x68] sm:$0xff]
        %v1113 = vld [vmem:[#allocation2 + $0x70] sm:$0xff]
        %v1114 = vld [vmem:[#allocation2 + $0x78] sm:$0xff]
        %v1115 = vld [vmem:[#allocation2 + $0x80] sm:$0xff]
        %v1116 = vld [vmem:[#allocation2 + $0x88] sm:$0xff]
        %v1117 = vld [vmem:[#allocation2 + $0x90] sm:$0xff]
        %v1118 = vld [vmem:[#allocation2 + $0x98] sm:$0xff]
        %v1119 = vld [vmem:[#allocation2 + $0xa0] sm:$0xff]
        %v1120 = vld [vmem:[#allocation2 + $0xa8] sm:$0xff]
        %v1121 = vld [vmem:[#allocation2 + $0xb0] sm:$0xff]
        %v1122 = vld [vmem:[#allocation2 + $0xb8] sm:$0xff]
        %v1123 = vld [vmem:[#allocation2 + $0xc0] sm:$0xff]
        %v1124 = vld [vmem:[#allocation2 + $0xc8] sm:$0xff]
        %v1125 = vld [vmem:[#allocation2 + $0xd0] sm:$0xff]
        %v1126 = vld [vmem:[#allocation2 + $0xd8] sm:$0xff]
        %v1127 = vld [vmem:[#allocation2 + $0xe0] sm:$0xff]
        %v1128 = vld [vmem:[#allocation2 + $0xe8] sm:$0xff]
        %v1129 = vld [vmem:[#allocation2 + $0xf0] sm:$0xff]
        %v1130 = vld [vmem:[#allocation2 + $0xf8] sm:$0xff]
        %v1131 = vld [vmem:[#allocation2 + $0x100] sm:$0xff]
        %v1132 = vld [vmem:[#allocation2 + $0x108] sm:$0xff]
        %v1133 = vld [vmem:[#allocation2 + $0x110] sm:$0xff]
        %v1134 = vld [vmem:[#allocation2 + $0x118] sm:$0xff]
        %v1135 = vld [vmem:[#allocation2 + $0x120] sm:$0xff]
        %v1136 = vld [vmem:[#allocation2 + $0x128] sm:$0xff]
        %v1137 = vld [vmem:[#allocation2 + $0x130] sm:$0xff]
        %v1138 = vld [vmem:[#allocation2 + $0x138] sm:$0xff]
        %v1139 = vld [vmem:[#allocation2 + $0x140] sm:$0xff]
        %v1140 = vld [vmem:[#allocation2 + $0x148] sm:$0xff]
        %v1141 = vld [vmem:[#allocation2 + $0x150] sm:$0xff]
        %v1142 = vld [vmem:[#allocation2 + $0x158] sm:$0xff]
        %v1143 = vld [vmem:[#allocation2 + $0x160] sm:$0xff]
        %v1144 = vld [vmem:[#allocation2 + $0x168] sm:$0xff]
        %v1145 = vld [vmem:[#allocation2 + $0x170] sm:$0xff]
        %v1146 = vld [vmem:[#allocation2 + $0x178] sm:$0xff]
        %v1147 = vld [vmem:[#allocation2 + $0x180] sm:$0xff]
        %v1148 = vld [vmem:[#allocation2 + $0x188] sm:$0xff]
        %v1149 = vld [vmem:[#allocation2 + $0x190] sm:$0xff]
        %v1150 = vld [vmem:[#allocation2 + $0x198] sm:$0xff]
        %v1151 = vld [vmem:[#allocation2 + $0x1a0] sm:$0xff]
        %v1152 = vld [vmem:[#allocation2 + $0x1a8] sm:$0xff]
        %v1153 = vld [vmem:[#allocation2 + $0x1b0] sm:$0xff]
        %v1154 = vld [vmem:[#allocation2 + $0x1b8] sm:$0xff]
        %v1155 = vld [vmem:[#allocation2 + $0x1c0] sm:$0xff]
        %v1156 = vld [vmem:[#allocation2 + $0x1c8] sm:$0xff]
        %v1157 = vld [vmem:[#allocation2 + $0x1d0] sm:$0xff]
        %v1158 = vld [vmem:[#allocation2 + $0x1d8] sm:$0xff]
        %v1159 = vld [vmem:[#allocation2 + $0x1e0] sm:$0xff]
        %v1160 = vld [vmem:[#allocation2 + $0x1e8] sm:$0xff]
        %v1161 = vld [vmem:[#allocation2 + $0x1f0] sm:$0xff]
        %v1162 = vld [vmem:[#allocation2 + $0x1f8] sm:$0xff]
        %v1163 = vld [vmem:[#allocation2 + $0x200] sm:$0xff]
        %v1164 = vld [vmem:[#allocation2 + $0x208] sm:$0xff]
        %v1165 = vld [vmem:[#allocation2 + $0x210] sm:$0xff]
        %v1166 = vld [vmem:[#allocation2 + $0x218] sm:$0xff]
        %v1167 = vld [vmem:[#allocation2 + $0x220] sm:$0xff]
        %v1168 = vld [vmem:[#allocation2 + $0x228] sm:$0xff]
        %v1169 = vld [vmem:[#allocation2 + $0x230] sm:$0xff]
        %v1170 = vld [vmem:[#allocation2 + $0x238] sm:$0xff]
        %v1171 = vld [vmem:[#allocation2 + $0x240] sm:$0xff]
        %v1172 = vld [vmem:[#allocation2 + $0x248] sm:$0xff]
        %v1173 = vld [vmem:[#allocation2 + $0x250] sm:$0xff]
        %v1174 = vld [vmem:[#allocation2 + $0x258] sm:$0xff]
        %v1175 = vld [vmem:[#allocation2 + $0x260] sm:$0xff]
        %v1176 = vld [vmem:[#allocation2 + $0x268] sm:$0xff]
        %v1177 = vld [vmem:[#allocation2 + $0x270] sm:$0xff]
        %v1178 = vld [vmem:[#allocation2 + $0x278] sm:$0xff]
        %v1179 = vld [vmem:[#allocation2 + $0x280] sm:$0xff]
        %v1180 = vld [vmem:[#allocation2 + $0x288] sm:$0xff]
        %v1181 = vld [vmem:[#allocation2 + $0x290] sm:$0xff]
        %v1182 = vld [vmem:[#allocation2 + $0x298] sm:$0xff]
        %v1183 = vld [vmem:[#allocation2 + $0x2a0] sm:$0xff]
        %v1184 = vld [vmem:[#allocation2 + $0x2a8] sm:$0xff]
        %v1185 = vld [vmem:[#allocation2 + $0x2b0] sm:$0xff]
        %v1186 = vld [vmem:[#allocation2 + $0x2b8] sm:$0xff]
        %v1187 = vld [vmem:[#allocation2 + $0x2c0] sm:$0xff]
        %v1188 = vld [vmem:[#allocation2 + $0x2c8] sm:$0xff]
        %v1189 = vld [vmem:[#allocation2 + $0x2d0] sm:$0xff]
        %v1190 = vld [vmem:[#allocation2 + $0x2d8] sm:$0xff]
        %v1191 = vld [vmem:[#allocation2 + $0x2e0] sm:$0xff]
        %v1192 = vld [vmem:[#allocation2 + $0x2e8] sm:$0xff]
        %v1193 = vld [vmem:[#allocation2 + $0x2f0] sm:$0xff]
        %v1194 = vld [vmem:[#allocation2 + $0x2f8] sm:$0xff]
        %v1195 = vld [vmem:[%s1] sm:$0xff]
        %v1196 = vld [vmem:[%s1 + $0x8] sm:$0xff]
        %v1197 = vld [vmem:[%s1 + $0x10] sm:$0xff]
        %v1198 = vld [vmem:[%s1 + $0x18] sm:$0xff]
        %v1199 = vld [vmem:[%s1 + $0x20] sm:$0xff]
        %v1200 = vld [vmem:[%s1 + $0x28] sm:$0xff]
        %v1201 = vld [vmem:[%s1 + $0x30] sm:$0xff]
        %v1202 = vld [vmem:[%s1 + $0x38] sm:$0xff]
        %v1203 = vld [vmem:[%s1 + $0x40] sm:$0xff]
        %v1204 = vld [vmem:[%s1 + $0x48] sm:$0xff]
        %v1205 = vld [vmem:[%s1 + $0x50] sm:$0xff]
        %v1206 = vld [vmem:[%s1 + $0x58] sm:$0xff]
        %v1207 = vld [vmem:[%s1 + $0x60] sm:$0xff]
        %v1208 = vld [vmem:[%s1 + $0x68] sm:$0xff]
        %v1209 = vld [vmem:[%s1 + $0x70] sm:$0xff]
        %v1210 = vld [vmem:[%s1 + $0x78] sm:$0xff]
        %v1211 = vld [vmem:[%s1 + $0x80] sm:$0xff]
        %v1212 = vld [vmem:[%s1 + $0x88] sm:$0xff]
        %v1213 = vld [vmem:[%s1 + $0x90] sm:$0xff]
        %v1214 = vld [vmem:[%s1 + $0x98] sm:$0xff]
        %v1215 = vld [vmem:[%s1 + $0xa0] sm:$0xff]
        %v1216 = vld [vmem:[%s1 + $0xa8] sm:$0xff]
        %v1217 = vld [vmem:[%s1 + $0xb0] sm:$0xff]
        %v1218 = vld [vmem:[%s1 + $0xb8] sm:$0xff]
        %v1219 = vld [vmem:[%s1 + $0xc0] sm:$0xff]
        %v1220 = vld [vmem:[%s1 + $0xc8] sm:$0xff]
        %v1221 = vld [vmem:[%s1 + $0xd0] sm:$0xff]
        %v1222 = vld [vmem:[%s1 + $0xd8] sm:$0xff]
        %v1223 = vld [vmem:[%s1 + $0xe0] sm:$0xff]
        %v1224 = vld [vmem:[%s1 + $0xe8] sm:$0xff]
        %v1225 = vld [vmem:[%s1 + $0xf0] sm:$0xff]
        %v1226 = vld [vmem:[%s1 + $0xf8] sm:$0xff]
        %v1227 = vld [vmem:[%s1 + $0x100] sm:$0xff]
        %v1228 = vld [vmem:[%s1 + $0x108] sm:$0xff]
        %v1229 = vld [vmem:[%s1 + $0x110] sm:$0xff]
        %v1230 = vld [vmem:[%s1 + $0x118] sm:$0xff]
        %v1231 = vld [vmem:[%s1 + $0x120] sm:$0xff]
        %v1232 = vld [vmem:[%s1 + $0x128] sm:$0xff]
        %v1233 = vld [vmem:[%s1 + $0x130] sm:$0xff]
        %v1234 = vld [vmem:[%s1 + $0x138] sm:$0xff]
        %v1235 = vld [vmem:[%s1 + $0x140] sm:$0xff]
        %v1236 = vld [vmem:[%s1 + $0x148] sm:$0xff]
        %v1237 = vld [vmem:[%s1 + $0x150] sm:$0xff]
        %v1238 = vld [vmem:[%s1 + $0x158] sm:$0xff]
        %v1239 = vld [vmem:[%s1 + $0x160] sm:$0xff]
        %v1240 = vld [vmem:[%s1 + $0x168] sm:$0xff]
        %v1241 = vld [vmem:[%s1 + $0x170] sm:$0xff]
        %v1242 = vld [vmem:[%s1 + $0x178] sm:$0xff]
        %v1243 = vld [vmem:[%s1 + $0x180] sm:$0xff]
        %v1244 = vld [vmem:[%s1 + $0x188] sm:$0xff]
        %v1245 = vld [vmem:[%s1 + $0x190] sm:$0xff]
        %v1246 = vld [vmem:[%s1 + $0x198] sm:$0xff]
        %v1247 = vld [vmem:[%s1 + $0x1a0] sm:$0xff]
        %v1248 = vld [vmem:[%s1 + $0x1a8] sm:$0xff]
        %v1249 = vld [vmem:[%s1 + $0x1b0] sm:$0xff]
        %v1250 = vld [vmem:[%s1 + $0x1b8] sm:$0xff]
        %v1251 = vld [vmem:[%s1 + $0x1c0] sm:$0xff]
        %v1252 = vld [vmem:[%s1 + $0x1c8] sm:$0xff]
        %v1253 = vld [vmem:[%s1 + $0x1d0] sm:$0xff]
        %v1254 = vld [vmem:[%s1 + $0x1d8] sm:$0xff]
        %v1255 = vld [vmem:[%s1 + $0x1e0] sm:$0xff]
        %v1256 = vld [vmem:[%s1 + $0x1e8] sm:$0xff]
        %v1257 = vld [vmem:[%s1 + $0x1f0] sm:$0xff]
        %v1258 = vld [vmem:[%s1 + $0x1f8] sm:$0xff]
        %v1259 = vld [vmem:[%s1 + $0x200] sm:$0xff]
        %v1260 = vld [vmem:[%s1 + $0x208] sm:$0xff]
        %v1261 = vld [vmem:[%s1 + $0x210] sm:$0xff]
        %v1262 = vld [vmem:[%s1 + $0x218] sm:$0xff]
        %v1263 = vld [vmem:[%s1 + $0x220] sm:$0xff]
        %v1264 = vld [vmem:[%s1 + $0x228] sm:$0xff]
        %v1265 = vld [vmem:[%s1 + $0x230] sm:$0xff]
        %v1266 = vld [vmem:[%s1 + $0x238] sm:$0xff]
        %v1267 = vld [vmem:[%s1 + $0x240] sm:$0xff]
        %v1268 = vld [vmem:[%s1 + $0x248] sm:$0xff]
        %v1269 = vld [vmem:[%s1 + $0x250] sm:$0xff]
        %v1270 = vld [vmem:[%s1 + $0x258] sm:$0xff]
        %v1271 = vld [vmem:[%s1 + $0x260] sm:$0xff]
        %v1272 = vld [vmem:[%s1 + $0x268] sm:$0xff]
        %v1273 = vld [vmem:[%s1 + $0x270] sm:$0xff]
        %v1274 = vld [vmem:[%s1 + $0x278] sm:$0xff]
        %v1275 = vld [vmem:[%s1 + $0x280] sm:$0xff]
        %v1276 = vld [vmem:[%s1 + $0x288] sm:$0xff]
        %v1277 = vld [vmem:[%s1 + $0x290] sm:$0xff]
        %v1278 = vld [vmem:[%s1 + $0x298] sm:$0xff]
        %v1279 = vld [vmem:[%s1 + $0x2a0] sm:$0xff]
        %v1280 = vld [vmem:[%s1 + $0x2a8] sm:$0xff]
        %v1281 = vld [vmem:[%s1 + $0x2b0] sm:$0xff]
        %v1282 = vld [vmem:[%s1 + $0x2b8] sm:$0xff]
        %v1283 = vld [vmem:[%s1 + $0x2c0] sm:$0xff]
        %v1284 = vld [vmem:[%s1 + $0x2c8] sm:$0xff]
        %v1285 = vld [vmem:[%s1 + $0x2d0] sm:$0xff]
        %v1286 = vld [vmem:[%s1 + $0x2d8] sm:$0xff]
        %v1287 = vld [vmem:[%s1 + $0x2e0] sm:$0xff]
        %v1288 = vld [vmem:[%s1 + $0x2e8] sm:$0xff]
        %v1289 = vld [vmem:[%s1 + $0x2f0] sm:$0xff]
        %v1290 = vld [vmem:[%s1 + $0x2f8] sm:$0xff]
        %v1291 = vld [vmem:[%s2] sm:$0x3]
        %v1293 = vlaneseq
        %v1294 = vshrl.u32 %v1293, 7
        %v1295 = vsub.s32 0, %v1294
        %v1296 = vrot.slane %v1291, %v1295
        %v1297 = vlaneseq
        %v1298 = vshrl.u32 %v1297, 7
        %v1299 = vsub.s32 1, %v1298
        %v1300 = vrot.slane %v1291, %v1299
        %1303 = vmatprep.subr.mxu0 %v1226
        %1304 = vmatpush1.msra.mxu0 %v1225
        %1305 = vmatprep.subr.mxu0 %v1224
        %1306 = vmatpush1.msra.mxu0 %v1223
        %1307 = vmatprep.subr.mxu0 %v1222
        %1308 = vmatpush1.msra.mxu0 %v1221
        %1309 = vmatprep.subr.mxu0 %v1220
        %1310 = vmatpush1.msra.mxu0 %v1219
        %1311 = vmatprep.subr.mxu0 %v1218
        %1312 = vmatpush1.msra.mxu0 %v1217
        %1313 = vmatprep.subr.mxu0 %v1216
        %1314 = vmatpush1.msra.mxu0 %v1215
        %1315 = vmatprep.subr.mxu0 %v1214
        %1316 = vmatpush1.msra.mxu0 %v1213
        %1317 = vmatprep.subr.mxu0 %v1212
        %1318 = vmatpush1.msra.mxu0 %v1211
        %1319 = vmatprep.subr.mxu0 %v1210
        %1320 = vmatpush1.msra.mxu0 %v1209
        %1321 = vmatprep.subr.mxu0 %v1208
        %1322 = vmatpush1.msra.mxu0 %v1207
        %1323 = vmatprep.subr.mxu0 %v1206
        %1324 = vmatpush1.msra.mxu0 %v1205
        %1325 = vmatprep.subr.mxu0 %v1204
        %1326 = vmatpush1.msra.mxu0 %v1203
        %1327 = vmatprep.subr.mxu0 %v1202
        %1328 = vmatpush1.msra.mxu0 %v1201
        %1329 = vmatprep.subr.mxu0 %v1200
        %1330 = vmatpush1.msra.mxu0 %v1199
        %1331 = vmatprep.subr.mxu0 %v1198
        %1332 = vmatpush1.msra.mxu0 %v1197
        %1333 = vmatprep.subr.mxu0 %v1196
        %1334 = vmatpush1.msra.mxu0 %v1195
        %1335 = vmatprep.subr.mxu0 %v1258
        %1336 = vmatpush2.msra.mxu0 %v1257
        %1337 = vmatprep.subr.mxu0 %v1256
        %1338 = vmatpush2.msra.mxu0 %v1255
        %1339 = vmatprep.subr.mxu0 %v1254
        %1340 = vmatpush2.msra.mxu0 %v1253
        %1341 = vmatprep.subr.mxu0 %v1252
        %1342 = vmatpush2.msra.mxu0 %v1251
        %1343 = vmatprep.subr.mxu0 %v1250
        %1344 = vmatpush2.msra.mxu0 %v1249
        %1345 = vmatprep.subr.mxu0 %v1248
        %1346 = vmatpush2.msra.mxu0 %v1247
        %1347 = vmatprep.subr.mxu0 %v1246
        %1348 = vmatpush2.msra.mxu0 %v1245
        %1349 = vmatprep.subr.mxu0 %v1244
        %1350 = vmatpush2.msra.mxu0 %v1243
        %1351 = vmatprep.subr.mxu0 %v1242
        %1352 = vmatpush2.msra.mxu0 %v1241
        %1353 = vmatprep.subr.mxu0 %v1240
        %1354 = vmatpush2.msra.mxu0 %v1239
        %1355 = vmatprep.subr.mxu0 %v1238
        %1356 = vmatpush2.msra.mxu0 %v1237
        %1357 = vmatprep.subr.mxu0 %v1236
        %1358 = vmatpush2.msra.mxu0 %v1235
        %1359 = vmatprep.subr.mxu0 %v1234
        %1360 = vmatpush2.msra.mxu0 %v1233
        %1361 = vmatprep.subr.mxu0 %v1232
        %1362 = vmatpush2.msra.mxu0 %v1231
        %1363 = vmatprep.subr.mxu0 %v1230
        %1364 = vmatpush2.msra.mxu0 %v1229
        %1365 = vmatprep.subr.mxu0 %v1228
        %1366 = vmatpush2.msra.mxu0 %v1227
        %1367 = vmatprep.mubr.f32.mxu0 %v1100
        %1368 = vmatmul.mubr.f32.gmra.mxu0 %v1099
        %v1369 = vpop.f32.mrf.mxu0
        %v1370 = vadd.f32 %v1296, %v1369
        %v1371 = vpop.f32.mrf.mxu0
        %v1372 = vadd.f32 %v1300, %v1371
        %1373 = vmatprep.mubr.f32.mxu0 %v1103
        %1374 = vmatmul.mubr.f32.gmra.mxu0 %v1102
        %v1375 = vpop.f32.mrf.mxu0
        %v1376 = vadd.f32 %v1296, %v1375
        %v1377 = vpop.f32.mrf.mxu0
        %v1378 = vadd.f32 %v1300, %v1377
        %1379 = vmatprep.mubr.f32.mxu0 %v1106
        %1380 = vmatmul.mubr.f32.gmra.mxu0 %v1105
        %v1381 = vpop.f32.mrf.mxu0
        %v1382 = vadd.f32 %v1296, %v1381
        %v1383 = vpop.f32.mrf.mxu0
        %v1384 = vadd.f32 %v1300, %v1383
        %1385 = vmatprep.mubr.f32.mxu0 %v1109
        %1386 = vmatmul.mubr.f32.gmra.mxu0 %v1108
        %v1387 = vpop.f32.mrf.mxu0
        %v1388 = vadd.f32 %v1296, %v1387
        %v1389 = vpop.f32.mrf.mxu0
        %v1390 = vadd.f32 %v1300, %v1389
        %1391 = vmatprep.mubr.f32.mxu0 %v1112
        %1392 = vmatmul.mubr.f32.gmra.mxu0 %v1111
        %v1393 = vpop.f32.mrf.mxu0
        %v1394 = vadd.f32 %v1296, %v1393
        %v1395 = vpop.f32.mrf.mxu0
        %v1396 = vadd.f32 %v1300, %v1395
        %1397 = vmatprep.mubr.f32.mxu0 %v1115
        %1398 = vmatmul.mubr.f32.gmra.mxu0 %v1114
        %v1399 = vpop.f32.mrf.mxu0
        %v1400 = vadd.f32 %v1296, %v1399
        %v1401 = vpop.f32.mrf.mxu0
        %v1402 = vadd.f32 %v1300, %v1401
        %1403 = vmatprep.mubr.f32.mxu0 %v1118
        %1404 = vmatmul.mubr.f32.gmra.mxu0 %v1117
        %v1405 = vpop.f32.mrf.mxu0
        %v1406 = vadd.f32 %v1296, %v1405
        %v1407 = vpop.f32.mrf.mxu0
        %v1408 = vadd.f32 %v1300, %v1407
        %1409 = vmatprep.mubr.f32.mxu0 %v1121
        %1410 = vmatmul.mubr.f32.gmra.mxu0 %v1120
        %v1411 = vpop.f32.mrf.mxu0
        %v1412 = vadd.f32 %v1296, %v1411
        %v1413 = vpop.f32.mrf.mxu0
        %v1414 = vadd.f32 %v1300, %v1413
        %1415 = vmatprep.mubr.f32.mxu0 %v1124
        %1416 = vmatmul.mubr.f32.gmra.mxu0 %v1123
        %v1417 = vpop.f32.mrf.mxu0
        %v1418 = vadd.f32 %v1296, %v1417
        %v1419 = vpop.f32.mrf.mxu0
        %v1420 = vadd.f32 %v1300, %v1419
        %1421 = vmatprep.mubr.f32.mxu0 %v1127
        %1422 = vmatmul.mubr.f32.gmra.mxu0 %v1126
        %v1423 = vpop.f32.mrf.mxu0
        %v1424 = vadd.f32 %v1296, %v1423
        %v1425 = vpop.f32.mrf.mxu0
        %v1426 = vadd.f32 %v1300, %v1425
        %1427 = vmatprep.mubr.f32.mxu0 %v1130
        %1428 = vmatmul.mubr.f32.gmra.mxu0 %v1129
        %v1429 = vpop.f32.mrf.mxu0
        %v1430 = vadd.f32 %v1296, %v1429
        %v1431 = vpop.f32.mrf.mxu0
        %v1432 = vadd.f32 %v1300, %v1431
        %1433 = vmatprep.mubr.f32.mxu0 %v1133
        %1434 = vmatmul.mubr.f32.gmra.mxu0 %v1132
        %v1435 = vpop.f32.mrf.mxu0
        %v1436 = vadd.f32 %v1296, %v1435
        %v1437 = vpop.f32.mrf.mxu0
        %v1438 = vadd.f32 %v1300, %v1437
        %1439 = vmatprep.mubr.f32.mxu0 %v1136
        %1440 = vmatmul.mubr.f32.gmra.mxu0 %v1135
        %v1441 = vpop.f32.mrf.mxu0
        %v1442 = vadd.f32 %v1296, %v1441
        %v1443 = vpop.f32.mrf.mxu0
        %v1444 = vadd.f32 %v1300, %v1443
        %1445 = vmatprep.mubr.f32.mxu0 %v1139
        %1446 = vmatmul.mubr.f32.gmra.mxu0 %v1138
        %v1447 = vpop.f32.mrf.mxu0
        %v1448 = vadd.f32 %v1296, %v1447
        %v1449 = vpop.f32.mrf.mxu0
        %v1450 = vadd.f32 %v1300, %v1449
        %1451 = vmatprep.mubr.f32.mxu0 %v1142
        %1452 = vmatmul.mubr.f32.gmra.mxu0 %v1141
        %v1453 = vpop.f32.mrf.mxu0
        %v1454 = vadd.f32 %v1296, %v1453
        %v1455 = vpop.f32.mrf.mxu0
        %v1456 = vadd.f32 %v1300, %v1455
        %1457 = vmatprep.mubr.f32.mxu0 %v1145
        %1458 = vmatmul.mubr.f32.gmra.mxu0 %v1144
        %v1459 = vpop.f32.mrf.mxu0
        %v1460 = vadd.f32 %v1296, %v1459
        %v1461 = vpop.f32.mrf.mxu0
        %v1462 = vadd.f32 %v1300, %v1461
        %1463 = vmatprep.mubr.f32.mxu0 %v1148
        %1464 = vmatmul.mubr.f32.gmra.mxu0 %v1147
        %v1465 = vpop.f32.mrf.mxu0
        %v1466 = vadd.f32 %v1296, %v1465
        %v1467 = vpop.f32.mrf.mxu0
        %v1468 = vadd.f32 %v1300, %v1467
        %1469 = vmatprep.mubr.f32.mxu0 %v1151
        %1470 = vmatmul.mubr.f32.gmra.mxu0 %v1150
        %v1471 = vpop.f32.mrf.mxu0
        %v1472 = vadd.f32 %v1296, %v1471
        %v1473 = vpop.f32.mrf.mxu0
        %v1474 = vadd.f32 %v1300, %v1473
        %1475 = vmatprep.mubr.f32.mxu0 %v1154
        %1476 = vmatmul.mubr.f32.gmra.mxu0 %v1153
        %v1477 = vpop.f32.mrf.mxu0
        %v1478 = vadd.f32 %v1296, %v1477
        %v1479 = vpop.f32.mrf.mxu0
        %v1480 = vadd.f32 %v1300, %v1479
        %1481 = vmatprep.mubr.f32.mxu0 %v1157
        %1482 = vmatmul.mubr.f32.gmra.mxu0 %v1156
        %v1483 = vpop.f32.mrf.mxu0
        %v1484 = vadd.f32 %v1296, %v1483
        %v1485 = vpop.f32.mrf.mxu0
        %v1486 = vadd.f32 %v1300, %v1485
        %1487 = vmatprep.mubr.f32.mxu0 %v1160
        %1488 = vmatmul.mubr.f32.gmra.mxu0 %v1159
        %v1489 = vpop.f32.mrf.mxu0
        %v1490 = vadd.f32 %v1296, %v1489
        %v1491 = vpop.f32.mrf.mxu0
        %v1492 = vadd.f32 %v1300, %v1491
        %1493 = vmatprep.mubr.f32.mxu0 %v1163
        %1494 = vmatmul.mubr.f32.gmra.mxu0 %v1162
        %v1495 = vpop.f32.mrf.mxu0
        %v1496 = vadd.f32 %v1296, %v1495
        %v1497 = vpop.f32.mrf.mxu0
        %v1498 = vadd.f32 %v1300, %v1497
        %1499 = vmatprep.mubr.f32.mxu0 %v1166
        %1500 = vmatmul.mubr.f32.gmra.mxu0 %v1165
        %v1501 = vpop.f32.mrf.mxu0
        %v1502 = vadd.f32 %v1296, %v1501
        %v1503 = vpop.f32.mrf.mxu0
        %v1504 = vadd.f32 %v1300, %v1503
        %1505 = vmatprep.mubr.f32.mxu0 %v1169
        %1506 = vmatmul.mubr.f32.gmra.mxu0 %v1168
        %v1507 = vpop.f32.mrf.mxu0
        %v1508 = vadd.f32 %v1296, %v1507
        %v1509 = vpop.f32.mrf.mxu0
        %v1510 = vadd.f32 %v1300, %v1509
        %1511 = vmatprep.mubr.f32.mxu0 %v1172
        %1512 = vmatmul.mubr.f32.gmra.mxu0 %v1171
        %v1513 = vpop.f32.mrf.mxu0
        %v1514 = vadd.f32 %v1296, %v1513
        %v1515 = vpop.f32.mrf.mxu0
        %v1516 = vadd.f32 %v1300, %v1515
        %1517 = vmatprep.mubr.f32.mxu0 %v1175
        %1518 = vmatmul.mubr.f32.gmra.mxu0 %v1174
        %v1519 = vpop.f32.mrf.mxu0
        %v1520 = vadd.f32 %v1296, %v1519
        %v1521 = vpop.f32.mrf.mxu0
        %v1522 = vadd.f32 %v1300, %v1521
        %1523 = vmatprep.mubr.f32.mxu0 %v1178
        %1524 = vmatmul.mubr.f32.gmra.mxu0 %v1177
        %v1525 = vpop.f32.mrf.mxu0
        %v1526 = vadd.f32 %v1296, %v1525
        %v1527 = vpop.f32.mrf.mxu0
        %v1528 = vadd.f32 %v1300, %v1527
        %1529 = vmatprep.mubr.f32.mxu0 %v1181
        %1530 = vmatmul.mubr.f32.gmra.mxu0 %v1180
        %v1531 = vpop.f32.mrf.mxu0
        %v1532 = vadd.f32 %v1296, %v1531
        %v1533 = vpop.f32.mrf.mxu0
        %v1534 = vadd.f32 %v1300, %v1533
        %1535 = vmatprep.mubr.f32.mxu0 %v1184
        %1536 = vmatmul.mubr.f32.gmra.mxu0 %v1183
        %v1537 = vpop.f32.mrf.mxu0
        %v1538 = vadd.f32 %v1296, %v1537
        %v1539 = vpop.f32.mrf.mxu0
        %v1540 = vadd.f32 %v1300, %v1539
        %1541 = vmatprep.mubr.f32.mxu0 %v1187
        %1542 = vmatmul.mubr.f32.gmra.mxu0 %v1186
        %v1543 = vpop.f32.mrf.mxu0
        %v1544 = vadd.f32 %v1296, %v1543
        %v1545 = vpop.f32.mrf.mxu0
        %v1546 = vadd.f32 %v1300, %v1545
        %1547 = vmatprep.mubr.f32.mxu0 %v1190
        %1548 = vmatmul.mubr.f32.gmra.mxu0 %v1189
        %v1549 = vpop.f32.mrf.mxu0
        %v1550 = vadd.f32 %v1296, %v1549
        %v1551 = vpop.f32.mrf.mxu0
        %v1552 = vadd.f32 %v1300, %v1551
        %1553 = vmatprep.mubr.f32.mxu0 %v1193
        %1554 = vmatmul.mubr.f32.gmra.mxu0 %v1192
        %v1555 = vpop.f32.mrf.mxu0
        %v1556 = vadd.f32 %v1296, %v1555
        %v1557 = vpop.f32.mrf.mxu0
        %v1558 = vadd.f32 %v1300, %v1557
        %1559 = vdwg.mxu0
        %1560 = vmatprep.subr.mxu0 %v1290
        %1561 = vmatpush1.msra.mxu0 %v1289
        %1562 = vmatprep.subr.mxu0 %v1288
        %1563 = vmatpush1.msra.mxu0 %v1287
        %1564 = vmatprep.subr.mxu0 %v1286
        %1565 = vmatpush1.msra.mxu0 %v1285
        %1566 = vmatprep.subr.mxu0 %v1284
        %1567 = vmatpush1.msra.mxu0 %v1283
        %1568 = vmatprep.subr.mxu0 %v1282
        %1569 = vmatpush1.msra.mxu0 %v1281
        %1570 = vmatprep.subr.mxu0 %v1280
        %1571 = vmatpush1.msra.mxu0 %v1279
        %1572 = vmatprep.subr.mxu0 %v1278
        %1573 = vmatpush1.msra.mxu0 %v1277
        %1574 = vmatprep.subr.mxu0 %v1276
        %1575 = vmatpush1.msra.mxu0 %v1275
        %1576 = vmatprep.subr.mxu0 %v1274
        %1577 = vmatpush1.msra.mxu0 %v1273
        %1578 = vmatprep.subr.mxu0 %v1272
        %1579 = vmatpush1.msra.mxu0 %v1271
        %1580 = vmatprep.subr.mxu0 %v1270
        %1581 = vmatpush1.msra.mxu0 %v1269
        %1582 = vmatprep.subr.mxu0 %v1268
        %1583 = vmatpush1.msra.mxu0 %v1267
        %1584 = vmatprep.subr.mxu0 %v1266
        %1585 = vmatpush1.msra.mxu0 %v1265
        %1586 = vmatprep.subr.mxu0 %v1264
        %1587 = vmatpush1.msra.mxu0 %v1263
        %1588 = vmatprep.subr.mxu0 %v1262
        %1589 = vmatpush1.msra.mxu0 %v1261
        %1590 = vmatprep.subr.mxu0 %v1260
        %1591 = vmatpush1.msra.mxu0 %v1259
        %1592 = vmatprep.subr.mxu0 0.0
        %1593 = vmatpush2.msra.mxu0 0.0
        %1594 = vmatprep.subr.mxu0 0.0
        %1595 = vmatpush2.msra.mxu0 0.0
        %1596 = vmatprep.subr.mxu0 0.0
        %1597 = vmatpush2.msra.mxu0 0.0
        %1598 = vmatprep.subr.mxu0 0.0
        %1599 = vmatpush2.msra.mxu0 0.0
        %1600 = vmatprep.subr.mxu0 0.0
        %1601 = vmatpush2.msra.mxu0 0.0
        %1602 = vmatprep.subr.mxu0 0.0
        %1603 = vmatpush2.msra.mxu0 0.0
        %1604 = vmatprep.subr.mxu0 0.0
        %1605 = vmatpush2.msra.mxu0 0.0
        %1606 = vmatprep.subr.mxu0 0.0
        %1607 = vmatpush2.msra.mxu0 0.0
        %1608 = vmatprep.subr.mxu0 0.0
        %1609 = vmatpush2.msra.mxu0 0.0
        %1610 = vmatprep.subr.mxu0 0.0
        %1611 = vmatpush2.msra.mxu0 0.0
        %1612 = vmatprep.subr.mxu0 0.0
        %1613 = vmatpush2.msra.mxu0 0.0
        %1614 = vmatprep.subr.mxu0 0.0
        %1615 = vmatpush2.msra.mxu0 0.0
        %1616 = vmatprep.subr.mxu0 0.0
        %1617 = vmatpush2.msra.mxu0 0.0
        %1618 = vmatprep.subr.mxu0 0.0
        %1619 = vmatpush2.msra.mxu0 0.0
        %1620 = vmatprep.subr.mxu0 0.0
        %1621 = vmatpush2.msra.mxu0 0.0
        %1622 = vmatprep.subr.mxu0 0.0
        %1623 = vmatpush2.msra.mxu0 0.0
        %1624 = vmatprep.mubr.f32.mxu0 0.0
        %1625 = vmatmul.mubr.f32.gmra.mxu0 %v1101
        %v1626 = vpop.f32.mrf.mxu0
        %v1627 = vadd.f32 %v1370, %v1626
        %v1628 = vpop.f32.mrf.mxu0
        %v1629 = vadd.f32 %v1372, %v1628
        %1630 = vmatprep.mubr.f32.mxu0 0.0
        %1631 = vmatmul.mubr.f32.gmra.mxu0 %v1104
        %v1632 = vpop.f32.mrf.mxu0
        %v1633 = vadd.f32 %v1376, %v1632
        %v1634 = vpop.f32.mrf.mxu0
        %v1635 = vadd.f32 %v1378, %v1634
        %1636 = vmatprep.mubr.f32.mxu0 0.0
        %1637 = vmatmul.mubr.f32.gmra.mxu0 %v1107
        %v1638 = vpop.f32.mrf.mxu0
        %v1639 = vadd.f32 %v1382, %v1638
        %v1640 = vpop.f32.mrf.mxu0
        %v1641 = vadd.f32 %v1384, %v1640
        %1642 = vmatprep.mubr.f32.mxu0 0.0
        %1643 = vmatmul.mubr.f32.gmra.mxu0 %v1110
        %v1644 = vpop.f32.mrf.mxu0
        %v1645 = vadd.f32 %v1388, %v1644
        %v1646 = vpop.f32.mrf.mxu0
        %v1647 = vadd.f32 %v1390, %v1646
        %1648 = vmatprep.mubr.f32.mxu0 0.0
        %1649 = vmatmul.mubr.f32.gmra.mxu0 %v1113
        %v1650 = vpop.f32.mrf.mxu0
        %v1651 = vadd.f32 %v1394, %v1650
        %v1652 = vpop.f32.mrf.mxu0
        %v1653 = vadd.f32 %v1396, %v1652
        %1654 = vmatprep.mubr.f32.mxu0 0.0
        %1655 = vmatmul.mubr.f32.gmra.mxu0 %v1116
        %v1656 = vpop.f32.mrf.mxu0
        %v1657 = vadd.f32 %v1400, %v1656
        %v1658 = vpop.f32.mrf.mxu0
        %v1659 = vadd.f32 %v1402, %v1658
        %1660 = vmatprep.mubr.f32.mxu0 0.0
        %1661 = vmatmul.mubr.f32.gmra.mxu0 %v1119
        %v1662 = vpop.f32.mrf.mxu0
        %v1663 = vadd.f32 %v1406, %v1662
        %v1664 = vpop.f32.mrf.mxu0
        %v1665 = vadd.f32 %v1408, %v1664
        %1666 = vmatprep.mubr.f32.mxu0 0.0
        %1667 = vmatmul.mubr.f32.gmra.mxu0 %v1122
        %v1668 = vpop.f32.mrf.mxu0
        %v1669 = vadd.f32 %v1412, %v1668
        %v1670 = vpop.f32.mrf.mxu0
        %v1671 = vadd.f32 %v1414, %v1670
        %1672 = vmatprep.mubr.f32.mxu0 0.0
        %1673 = vmatmul.mubr.f32.gmra.mxu0 %v1125
        %v1674 = vpop.f32.mrf.mxu0
        %v1675 = vadd.f32 %v1418, %v1674
        %v1676 = vpop.f32.mrf.mxu0
        %v1677 = vadd.f32 %v1420, %v1676
        %1678 = vmatprep.mubr.f32.mxu0 0.0
        %1679 = vmatmul.mubr.f32.gmra.mxu0 %v1128
        %v1680 = vpop.f32.mrf.mxu0
        %v1681 = vadd.f32 %v1424, %v1680
        %v1682 = vpop.f32.mrf.mxu0
        %v1683 = vadd.f32 %v1426, %v1682
        %1684 = vmatprep.mubr.f32.mxu0 0.0
        %1685 = vmatmul.mubr.f32.gmra.mxu0 %v1131
        %v1686 = vpop.f32.mrf.mxu0
        %v1687 = vadd.f32 %v1430, %v1686
        %v1688 = vpop.f32.mrf.mxu0
        %v1689 = vadd.f32 %v1432, %v1688
        %1690 = vmatprep.mubr.f32.mxu0 0.0
        %1691 = vmatmul.mubr.f32.gmra.mxu0 %v1134
        %v1692 = vpop.f32.mrf.mxu0
        %v1693 = vadd.f32 %v1436, %v1692
        %v1694 = vpop.f32.mrf.mxu0
        %v1695 = vadd.f32 %v1438, %v1694
        %1696 = vmatprep.mubr.f32.mxu0 0.0
        %1697 = vmatmul.mubr.f32.gmra.mxu0 %v1137
        %v1698 = vpop.f32.mrf.mxu0
        %v1699 = vadd.f32 %v1442, %v1698
        %v1700 = vpop.f32.mrf.mxu0
        %v1701 = vadd.f32 %v1444, %v1700
        %1702 = vmatprep.mubr.f32.mxu0 0.0
        %1703 = vmatmul.mubr.f32.gmra.mxu0 %v1140
        %v1704 = vpop.f32.mrf.mxu0
        %v1705 = vadd.f32 %v1448, %v1704
        %v1706 = vpop.f32.mrf.mxu0
        %v1707 = vadd.f32 %v1450, %v1706
        %1708 = vmatprep.mubr.f32.mxu0 0.0
        %1709 = vmatmul.mubr.f32.gmra.mxu0 %v1143
        %v1710 = vpop.f32.mrf.mxu0
        %v1711 = vadd.f32 %v1454, %v1710
        %v1712 = vpop.f32.mrf.mxu0
        %v1713 = vadd.f32 %v1456, %v1712
        %1714 = vmatprep.mubr.f32.mxu0 0.0
        %1715 = vmatmul.mubr.f32.gmra.mxu0 %v1146
        %v1716 = vpop.f32.mrf.mxu0
        %v1717 = vadd.f32 %v1460, %v1716
        %v1718 = vpop.f32.mrf.mxu0
        %v1719 = vadd.f32 %v1462, %v1718
        %1720 = vmatprep.mubr.f32.mxu0 0.0
        %1721 = vmatmul.mubr.f32.gmra.mxu0 %v1149
        %v1722 = vpop.f32.mrf.mxu0
        %v1723 = vadd.f32 %v1466, %v1722
        %v1724 = vpop.f32.mrf.mxu0
        %v1725 = vadd.f32 %v1468, %v1724
        %1726 = vmatprep.mubr.f32.mxu0 0.0
        %1727 = vmatmul.mubr.f32.gmra.mxu0 %v1152
        %v1728 = vpop.f32.mrf.mxu0
        %v1729 = vadd.f32 %v1472, %v1728
        %v1730 = vpop.f32.mrf.mxu0
        %v1731 = vadd.f32 %v1474, %v1730
        %1732 = vmatprep.mubr.f32.mxu0 0.0
        %1733 = vmatmul.mubr.f32.gmra.mxu0 %v1155
        %v1734 = vpop.f32.mrf.mxu0
        %v1735 = vadd.f32 %v1478, %v1734
        %v1736 = vpop.f32.mrf.mxu0
        %v1737 = vadd.f32 %v1480, %v1736
        %1738 = vmatprep.mubr.f32.mxu0 0.0
        %1739 = vmatmul.mubr.f32.gmra.mxu0 %v1158
        %v1740 = vpop.f32.mrf.mxu0
        %v1741 = vadd.f32 %v1484, %v1740
        %v1742 = vpop.f32.mrf.mxu0
        %v1743 = vadd.f32 %v1486, %v1742
        %1744 = vmatprep.mubr.f32.mxu0 0.0
        %1745 = vmatmul.mubr.f32.gmra.mxu0 %v1161
        %v1746 = vpop.f32.mrf.mxu0
        %v1747 = vadd.f32 %v1490, %v1746
        %v1748 = vpop.f32.mrf.mxu0
        %v1749 = vadd.f32 %v1492, %v1748
        %1750 = vmatprep.mubr.f32.mxu0 0.0
        %1751 = vmatmul.mubr.f32.gmra.mxu0 %v1164
        %v1752 = vpop.f32.mrf.mxu0
        %v1753 = vadd.f32 %v1496, %v1752
        %v1754 = vpop.f32.mrf.mxu0
        %v1755 = vadd.f32 %v1498, %v1754
        %1756 = vmatprep.mubr.f32.mxu0 0.0
        %1757 = vmatmul.mubr.f32.gmra.mxu0 %v1167
        %v1758 = vpop.f32.mrf.mxu0
        %v1759 = vadd.f32 %v1502, %v1758
        %v1760 = vpop.f32.mrf.mxu0
        %v1761 = vadd.f32 %v1504, %v1760
        %1762 = vmatprep.mubr.f32.mxu0 0.0
        %1763 = vmatmul.mubr.f32.gmra.mxu0 %v1170
        %v1764 = vpop.f32.mrf.mxu0
        %v1765 = vadd.f32 %v1508, %v1764
        %v1766 = vpop.f32.mrf.mxu0
        %v1767 = vadd.f32 %v1510, %v1766
        %1768 = vmatprep.mubr.f32.mxu0 0.0
        %1769 = vmatmul.mubr.f32.gmra.mxu0 %v1173
        %v1770 = vpop.f32.mrf.mxu0
        %v1771 = vadd.f32 %v1514, %v1770
        %v1772 = vpop.f32.mrf.mxu0
        %v1773 = vadd.f32 %v1516, %v1772
        %1774 = vmatprep.mubr.f32.mxu0 0.0
        %1775 = vmatmul.mubr.f32.gmra.mxu0 %v1176
        %v1776 = vpop.f32.mrf.mxu0
        %v1777 = vadd.f32 %v1520, %v1776
        %v1778 = vpop.f32.mrf.mxu0
        %v1779 = vadd.f32 %v1522, %v1778
        %1780 = vmatprep.mubr.f32.mxu0 0.0
        %1781 = vmatmul.mubr.f32.gmra.mxu0 %v1179
        %v1782 = vpop.f32.mrf.mxu0
        %v1783 = vadd.f32 %v1526, %v1782
        %v1784 = vpop.f32.mrf.mxu0
        %v1785 = vadd.f32 %v1528, %v1784
        %1786 = vmatprep.mubr.f32.mxu0 0.0
        %1787 = vmatmul.mubr.f32.gmra.mxu0 %v1182
        %v1788 = vpop.f32.mrf.mxu0
        %v1789 = vadd.f32 %v1532, %v1788
        %v1790 = vpop.f32.mrf.mxu0
        %v1791 = vadd.f32 %v1534, %v1790
        %1792 = vmatprep.mubr.f32.mxu0 0.0
        %1793 = vmatmul.mubr.f32.gmra.mxu0 %v1185
        %v1794 = vpop.f32.mrf.mxu0
        %v1795 = vadd.f32 %v1538, %v1794
        %v1796 = vpop.f32.mrf.mxu0
        %v1797 = vadd.f32 %v1540, %v1796
        %1798 = vmatprep.mubr.f32.mxu0 0.0
        %1799 = vmatmul.mubr.f32.gmra.mxu0 %v1188
        %v1800 = vpop.f32.mrf.mxu0
        %v1801 = vadd.f32 %v1544, %v1800
        %v1802 = vpop.f32.mrf.mxu0
        %v1803 = vadd.f32 %v1546, %v1802
        %1804 = vmatprep.mubr.f32.mxu0 0.0
        %1805 = vmatmul.mubr.f32.gmra.mxu0 %v1191
        %v1806 = vpop.f32.mrf.mxu0
        %v1807 = vadd.f32 %v1550, %v1806
        %v1808 = vpop.f32.mrf.mxu0
        %v1809 = vadd.f32 %v1552, %v1808
        %1810 = vmatprep.mubr.f32.mxu0 0.0
        %1811 = vmatmul.mubr.f32.gmra.mxu0 %v1194
        %v1812 = vpop.f32.mrf.mxu0
        %v1813 = vadd.f32 %v1556, %v1812
        %v1814 = vpop.f32.mrf.mxu0
        %v1815 = vadd.f32 %v1558, %v1814
        %1816 = vdwg.mxu0
        %v1817 = vmax.f32 %v1627, 0.0
        %v1818 = vmax.f32 %v1629, 0.0
        %v1819 = vmax.f32 %v1633, 0.0
        %v1820 = vmax.f32 %v1635, 0.0
        %v1821 = vmax.f32 %v1639, 0.0
        %v1822 = vmax.f32 %v1641, 0.0
        %v1823 = vmax.f32 %v1645, 0.0
        %v1824 = vmax.f32 %v1647, 0.0
        %v1825 = vmax.f32 %v1651, 0.0
        %v1826 = vmax.f32 %v1653, 0.0
        %v1827 = vmax.f32 %v1657, 0.0
        %v1828 = vmax.f32 %v1659, 0.0
        %v1829 = vmax.f32 %v1663, 0.0
        %v1830 = vmax.f32 %v1665, 0.0
        %v1831 = vmax.f32 %v1669, 0.0
        %v1832 = vmax.f32 %v1671, 0.0
        %v1833 = vmax.f32 %v1675, 0.0
        %v1834 = vmax.f32 %v1677, 0.0
        %v1835 = vmax.f32 %v1681, 0.0
        %v1836 = vmax.f32 %v1683, 0.0
        %v1837 = vmax.f32 %v1687, 0.0
        %v1838 = vmax.f32 %v1689, 0.0
        %v1839 = vmax.f32 %v1693, 0.0
        %v1840 = vmax.f32 %v1695, 0.0
        %v1841 = vmax.f32 %v1699, 0.0
        %v1842 = vmax.f32 %v1701, 0.0
        %v1843 = vmax.f32 %v1705, 0.0
        %v1844 = vmax.f32 %v1707, 0.0
        %v1845 = vmax.f32 %v1711, 0.0
        %v1846 = vmax.f32 %v1713, 0.0
        %v1847 = vmax.f32 %v1717, 0.0
        %v1848 = vmax.f32 %v1719, 0.0
        %v1849 = vmax.f32 %v1723, 0.0
        %v1850 = vmax.f32 %v1725, 0.0
        %v1851 = vmax.f32 %v1729, 0.0
        %v1852 = vmax.f32 %v1731, 0.0
        %v1853 = vmax.f32 %v1735, 0.0
        %v1854 = vmax.f32 %v1737, 0.0
        %v1855 = vmax.f32 %v1741, 0.0
        %v1856 = vmax.f32 %v1743, 0.0
        %v1857 = vmax.f32 %v1747, 0.0
        %v1858 = vmax.f32 %v1749, 0.0
        %v1859 = vmax.f32 %v1753, 0.0
        %v1860 = vmax.f32 %v1755, 0.0
        %v1861 = vmax.f32 %v1759, 0.0
        %v1862 = vmax.f32 %v1761, 0.0
        %v1863 = vmax.f32 %v1765, 0.0
        %v1864 = vmax.f32 %v1767, 0.0
        %v1865 = vmax.f32 %v1771, 0.0
        %v1866 = vmax.f32 %v1773, 0.0
        %v1867 = vmax.f32 %v1777, 0.0
        %v1868 = vmax.f32 %v1779, 0.0
        %v1869 = vmax.f32 %v1783, 0.0
        %v1870 = vmax.f32 %v1785, 0.0
        %v1871 = vmax.f32 %v1789, 0.0
        %v1872 = vmax.f32 %v1791, 0.0
        %v1873 = vmax.f32 %v1795, 0.0
        %v1874 = vmax.f32 %v1797, 0.0
        %v1875 = vmax.f32 %v1801, 0.0
        %v1876 = vmax.f32 %v1803, 0.0
        %v1877 = vmax.f32 %v1807, 0.0
        %v1878 = vmax.f32 %v1809, 0.0
        %v1879 = vmax.f32 %v1813, 0.0
        %v1880 = vmax.f32 %v1815, 0.0
        %v1881 = vld [vmem:[%s3] sm:$0xff]
        %v1882 = vld [vmem:[%s3 + $0x8] sm:$0xff]
        %v1883 = vld [vmem:[%s3 + $0x10] sm:$0xff]
        %v1884 = vld [vmem:[%s3 + $0x18] sm:$0xff]
        %v1885 = vld [vmem:[%s3 + $0x20] sm:$0xff]
        %v1886 = vld [vmem:[%s3 + $0x28] sm:$0xff]
        %v1887 = vld [vmem:[%s3 + $0x30] sm:$0xff]
        %v1888 = vld [vmem:[%s3 + $0x38] sm:$0xff]
        %v1889 = vld [vmem:[%s3 + $0x40] sm:$0xff]
        %v1890 = vld [vmem:[%s3 + $0x48] sm:$0xff]
        %v1891 = vld [vmem:[%s3 + $0x50] sm:$0xff]
        %v1892 = vld [vmem:[%s3 + $0x58] sm:$0xff]
        %v1893 = vld [vmem:[%s3 + $0x60] sm:$0xff]
        %v1894 = vld [vmem:[%s3 + $0x68] sm:$0xff]
        %v1895 = vld [vmem:[%s3 + $0x70] sm:$0xff]
        %v1896 = vld [vmem:[%s3 + $0x78] sm:$0xff]
        %v1897 = vld [vmem:[%s3 + $0x80] sm:$0xff]
        %v1898 = vld [vmem:[%s3 + $0x88] sm:$0xff]
        %v1899 = vld [vmem:[%s3 + $0x90] sm:$0xff]
        %v1900 = vld [vmem:[%s3 + $0x98] sm:$0xff]
        %v1901 = vld [vmem:[%s3 + $0xa0] sm:$0xff]
        %vm1902 = vcmask 326656
        %v1904 = vsel %vm1902, %v1818, 0
        %v1907 = vsel %vm1902, %v1820, 0
        %v1910 = vsel %vm1902, %v1822, 0
        %v1913 = vsel %vm1902, %v1824, 0
        %v1916 = vsel %vm1902, %v1826, 0
        %v1919 = vsel %vm1902, %v1828, 0
        %v1922 = vsel %vm1902, %v1830, 0
        %v1925 = vsel %vm1902, %v1832, 0
        %v1928 = vsel %vm1902, %v1834, 0
        %v1931 = vsel %vm1902, %v1836, 0
        %v1934 = vsel %vm1902, %v1838, 0
        %v1937 = vsel %vm1902, %v1840, 0
        %v1940 = vsel %vm1902, %v1842, 0
        %v1943 = vsel %vm1902, %v1844, 0
        %v1946 = vsel %vm1902, %v1846, 0
        %v1949 = vsel %vm1902, %v1848, 0
        %v1952 = vsel %vm1902, %v1850, 0
        %v1955 = vsel %vm1902, %v1852, 0
        %v1958 = vsel %vm1902, %v1854, 0
        %v1961 = vsel %vm1902, %v1856, 0
        %v1964 = vsel %vm1902, %v1858, 0
        %v1967 = vsel %vm1902, %v1860, 0
        %v1970 = vsel %vm1902, %v1862, 0
        %v1973 = vsel %vm1902, %v1864, 0
        %v1976 = vsel %vm1902, %v1866, 0
        %v1979 = vsel %vm1902, %v1868, 0
        %v1982 = vsel %vm1902, %v1870, 0
        %v1985 = vsel %vm1902, %v1872, 0
        %v1988 = vsel %vm1902, %v1874, 0
        %v1991 = vsel %vm1902, %v1876, 0
        %v1994 = vsel %vm1902, %v1878, 0
        %v1997 = vsel %vm1902, %v1880, 0
        %1999 = vmatprep.subr.mxu0 0.0
        %2000 = vmatpush1.msra.mxu0 %v1896
        %2001 = vmatprep.subr.mxu0 0.0
        %2002 = vmatpush1.msra.mxu0 %v1895
        %2003 = vmatprep.subr.mxu0 0.0
        %2004 = vmatpush1.msra.mxu0 %v1894
        %2005 = vmatprep.subr.mxu0 0.0
        %2006 = vmatpush1.msra.mxu0 %v1893
        %2007 = vmatprep.subr.mxu0 0.0
        %2008 = vmatpush1.msra.mxu0 %v1892
        %2009 = vmatprep.subr.mxu0 0.0
        %2010 = vmatpush1.msra.mxu0 %v1891
        %2011 = vmatprep.subr.mxu0 0.0
        %2012 = vmatpush1.msra.mxu0 %v1890
        %2013 = vmatprep.subr.mxu0 0.0
        %2014 = vmatpush1.msra.mxu0 %v1889
        %2015 = vmatprep.subr.mxu0 0.0
        %2016 = vmatpush1.msra.mxu0 %v1888
        %2017 = vmatprep.subr.mxu0 0.0
        %2018 = vmatpush1.msra.mxu0 %v1887
        %2019 = vmatprep.subr.mxu0 0.0
        %2020 = vmatpush1.msra.mxu0 %v1886
        %2021 = vmatprep.subr.mxu0 0.0
        %2022 = vmatpush1.msra.mxu0 %v1885
        %2023 = vmatprep.subr.mxu0 0.0
        %2024 = vmatpush1.msra.mxu0 %v1884
        %2025 = vmatprep.subr.mxu0 0.0
        %2026 = vmatpush1.msra.mxu0 %v1883
        %2027 = vmatprep.subr.mxu0 0.0
        %2028 = vmatpush1.msra.mxu0 %v1882
        %2029 = vmatprep.subr.mxu0 0.0
        %2030 = vmatpush1.msra.mxu0 %v1881
        %2031 = vmatprep.subr.mxu0 0.0
        %2032 = vmatpush2.msra.mxu0 0.0
        %2033 = vmatprep.subr.mxu0 0.0
        %2034 = vmatpush2.msra.mxu0 0.0
        %2035 = vmatprep.subr.mxu0 0.0
        %2036 = vmatpush2.msra.mxu0 0.0
        %2037 = vmatprep.subr.mxu0 0.0
        %2038 = vmatpush2.msra.mxu0 0.0
        %2039 = vmatprep.subr.mxu0 0.0
        %2040 = vmatpush2.msra.mxu0 0.0
        %2041 = vmatprep.subr.mxu0 0.0
        %2042 = vmatpush2.msra.mxu0 0.0
        %2043 = vmatprep.subr.mxu0 0.0
        %2044 = vmatpush2.msra.mxu0 0.0
        %2045 = vmatprep.subr.mxu0 0.0
        %2046 = vmatpush2.msra.mxu0 0.0
        %2047 = vmatprep.subr.mxu0 0.0
        %2048 = vmatpush2.msra.mxu0 0.0
        %2049 = vmatprep.subr.mxu0 0.0
        %2050 = vmatpush2.msra.mxu0 0.0
        %2051 = vmatprep.subr.mxu0 0.0
        %2052 = vmatpush2.msra.mxu0 0.0
        %2053 = vmatprep.subr.mxu0 0.0
        %2054 = vmatpush2.msra.mxu0 %v1901
        %2055 = vmatprep.subr.mxu0 0.0
        %2056 = vmatpush2.msra.mxu0 %v1900
        %2057 = vmatprep.subr.mxu0 0.0
        %2058 = vmatpush2.msra.mxu0 %v1899
        %2059 = vmatprep.subr.mxu0 0.0
        %2060 = vmatpush2.msra.mxu0 %v1898
        %2061 = vmatprep.subr.mxu0 0.0
        %2062 = vmatpush2.msra.mxu0 %v1897
        %2063 = vmatprep.mubr.f32.mxu0 %v1904
        %2064 = vmatmul.mubr.f32.gmra.mxu0 %v1817
        %v2065 = vpop.f32.mrf.mxu0
        %v2066 = vadd.f32 0.0, %v2065
        %v2067 = vpop.f32.mrf.mxu0
        %2068 = vmatprep.mubr.f32.mxu0 %v1907
        %2069 = vmatmul.mubr.f32.gmra.mxu0 %v1819
        %v2070 = vpop.f32.mrf.mxu0
        %v2071 = vadd.f32 0.0, %v2070
        %v2072 = vpop.f32.mrf.mxu0
        %2073 = vmatprep.mubr.f32.mxu0 %v1910
        %2074 = vmatmul.mubr.f32.gmra.mxu0 %v1821
        %v2075 = vpop.f32.mrf.mxu0
        %v2076 = vadd.f32 0.0, %v2075
        %v2077 = vpop.f32.mrf.mxu0
        %2078 = vmatprep.mubr.f32.mxu0 %v1913
        %2079 = vmatmul.mubr.f32.gmra.mxu0 %v1823
        %v2080 = vpop.f32.mrf.mxu0
        %v2081 = vadd.f32 0.0, %v2080
        %v2082 = vpop.f32.mrf.mxu0
        %2083 = vmatprep.mubr.f32.mxu0 %v1916
        %2084 = vmatmul.mubr.f32.gmra.mxu0 %v1825
        %v2085 = vpop.f32.mrf.mxu0
        %v2086 = vadd.f32 0.0, %v2085
        %v2087 = vpop.f32.mrf.mxu0
        %2088 = vmatprep.mubr.f32.mxu0 %v1919
        %2089 = vmatmul.mubr.f32.gmra.mxu0 %v1827
        %v2090 = vpop.f32.mrf.mxu0
        %v2091 = vadd.f32 0.0, %v2090
        %v2092 = vpop.f32.mrf.mxu0
        %2093 = vmatprep.mubr.f32.mxu0 %v1922
        %2094 = vmatmul.mubr.f32.gmra.mxu0 %v1829
        %v2095 = vpop.f32.mrf.mxu0
        %v2096 = vadd.f32 0.0, %v2095
        %v2097 = vpop.f32.mrf.mxu0
        %2098 = vmatprep.mubr.f32.mxu0 %v1925
        %2099 = vmatmul.mubr.f32.gmra.mxu0 %v1831
        %v2100 = vpop.f32.mrf.mxu0
        %v2101 = vadd.f32 0.0, %v2100
        %v2102 = vpop.f32.mrf.mxu0
        %2103 = vmatprep.mubr.f32.mxu0 %v1928
        %2104 = vmatmul.mubr.f32.gmra.mxu0 %v1833
        %v2105 = vpop.f32.mrf.mxu0
        %v2106 = vadd.f32 0.0, %v2105
        %v2107 = vpop.f32.mrf.mxu0
        %2108 = vmatprep.mubr.f32.mxu0 %v1931
        %2109 = vmatmul.mubr.f32.gmra.mxu0 %v1835
        %v2110 = vpop.f32.mrf.mxu0
        %v2111 = vadd.f32 0.0, %v2110
        %v2112 = vpop.f32.mrf.mxu0
        %2113 = vmatprep.mubr.f32.mxu0 %v1934
        %2114 = vmatmul.mubr.f32.gmra.mxu0 %v1837
        %v2115 = vpop.f32.mrf.mxu0
        %v2116 = vadd.f32 0.0, %v2115
        %v2117 = vpop.f32.mrf.mxu0
        %2118 = vmatprep.mubr.f32.mxu0 %v1937
        %2119 = vmatmul.mubr.f32.gmra.mxu0 %v1839
        %v2120 = vpop.f32.mrf.mxu0
        %v2121 = vadd.f32 0.0, %v2120
        %v2122 = vpop.f32.mrf.mxu0
        %2123 = vmatprep.mubr.f32.mxu0 %v1940
        %2124 = vmatmul.mubr.f32.gmra.mxu0 %v1841
        %v2125 = vpop.f32.mrf.mxu0
        %v2126 = vadd.f32 0.0, %v2125
        %v2127 = vpop.f32.mrf.mxu0
        %2128 = vmatprep.mubr.f32.mxu0 %v1943
        %2129 = vmatmul.mubr.f32.gmra.mxu0 %v1843
        %v2130 = vpop.f32.mrf.mxu0
        %v2131 = vadd.f32 0.0, %v2130
        %v2132 = vpop.f32.mrf.mxu0
        %2133 = vmatprep.mubr.f32.mxu0 %v1946
        %2134 = vmatmul.mubr.f32.gmra.mxu0 %v1845
        %v2135 = vpop.f32.mrf.mxu0
        %v2136 = vadd.f32 0.0, %v2135
        %v2137 = vpop.f32.mrf.mxu0
        %2138 = vmatprep.mubr.f32.mxu0 %v1949
        %2139 = vmatmul.mubr.f32.gmra.mxu0 %v1847
        %v2140 = vpop.f32.mrf.mxu0
        %v2141 = vadd.f32 0.0, %v2140
        %v2142 = vpop.f32.mrf.mxu0
        %2143 = vmatprep.mubr.f32.mxu0 %v1952
        %2144 = vmatmul.mubr.f32.gmra.mxu0 %v1849
        %v2145 = vpop.f32.mrf.mxu0
        %v2146 = vadd.f32 0.0, %v2145
        %v2147 = vpop.f32.mrf.mxu0
        %2148 = vmatprep.mubr.f32.mxu0 %v1955
        %2149 = vmatmul.mubr.f32.gmra.mxu0 %v1851
        %v2150 = vpop.f32.mrf.mxu0
        %v2151 = vadd.f32 0.0, %v2150
        %v2152 = vpop.f32.mrf.mxu0
        %2153 = vmatprep.mubr.f32.mxu0 %v1958
        %2154 = vmatmul.mubr.f32.gmra.mxu0 %v1853
        %v2155 = vpop.f32.mrf.mxu0
        %v2156 = vadd.f32 0.0, %v2155
        %v2157 = vpop.f32.mrf.mxu0
        %2158 = vmatprep.mubr.f32.mxu0 %v1961
        %2159 = vmatmul.mubr.f32.gmra.mxu0 %v1855
        %v2160 = vpop.f32.mrf.mxu0
        %v2161 = vadd.f32 0.0, %v2160
        %v2162 = vpop.f32.mrf.mxu0
        %2163 = vmatprep.mubr.f32.mxu0 %v1964
        %2164 = vmatmul.mubr.f32.gmra.mxu0 %v1857
        %v2165 = vpop.f32.mrf.mxu0
        %v2166 = vadd.f32 0.0, %v2165
        %v2167 = vpop.f32.mrf.mxu0
        %2168 = vmatprep.mubr.f32.mxu0 %v1967
        %2169 = vmatmul.mubr.f32.gmra.mxu0 %v1859
        %v2170 = vpop.f32.mrf.mxu0
        %v2171 = vadd.f32 0.0, %v2170
        %v2172 = vpop.f32.mrf.mxu0
        %2173 = vmatprep.mubr.f32.mxu0 %v1970
        %2174 = vmatmul.mubr.f32.gmra.mxu0 %v1861
        %v2175 = vpop.f32.mrf.mxu0
        %v2176 = vadd.f32 0.0, %v2175
        %v2177 = vpop.f32.mrf.mxu0
        %2178 = vmatprep.mubr.f32.mxu0 %v1973
        %2179 = vmatmul.mubr.f32.gmra.mxu0 %v1863
        %v2180 = vpop.f32.mrf.mxu0
        %v2181 = vadd.f32 0.0, %v2180
        %v2182 = vpop.f32.mrf.mxu0
        %2183 = vmatprep.mubr.f32.mxu0 %v1976
        %2184 = vmatmul.mubr.f32.gmra.mxu0 %v1865
        %v2185 = vpop.f32.mrf.mxu0
        %v2186 = vadd.f32 0.0, %v2185
        %v2187 = vpop.f32.mrf.mxu0
        %2188 = vmatprep.mubr.f32.mxu0 %v1979
        %2189 = vmatmul.mubr.f32.gmra.mxu0 %v1867
        %v2190 = vpop.f32.mrf.mxu0
        %v2191 = vadd.f32 0.0, %v2190
        %v2192 = vpop.f32.mrf.mxu0
        %2193 = vmatprep.mubr.f32.mxu0 %v1982
        %2194 = vmatmul.mubr.f32.gmra.mxu0 %v1869
        %v2195 = vpop.f32.mrf.mxu0
        %v2196 = vadd.f32 0.0, %v2195
        %v2197 = vpop.f32.mrf.mxu0
        %2198 = vmatprep.mubr.f32.mxu0 %v1985
        %2199 = vmatmul.mubr.f32.gmra.mxu0 %v1871
        %v2200 = vpop.f32.mrf.mxu0
        %v2201 = vadd.f32 0.0, %v2200
        %v2202 = vpop.f32.mrf.mxu0
        %2203 = vmatprep.mubr.f32.mxu0 %v1988
        %2204 = vmatmul.mubr.f32.gmra.mxu0 %v1873
        %v2205 = vpop.f32.mrf.mxu0
        %v2206 = vadd.f32 0.0, %v2205
        %v2207 = vpop.f32.mrf.mxu0
        %2208 = vmatprep.mubr.f32.mxu0 %v1991
        %2209 = vmatmul.mubr.f32.gmra.mxu0 %v1875
        %v2210 = vpop.f32.mrf.mxu0
        %v2211 = vadd.f32 0.0, %v2210
        %v2212 = vpop.f32.mrf.mxu0
        %2213 = vmatprep.mubr.f32.mxu0 %v1994
        %2214 = vmatmul.mubr.f32.gmra.mxu0 %v1877
        %v2215 = vpop.f32.mrf.mxu0
        %v2216 = vadd.f32 0.0, %v2215
        %v2217 = vpop.f32.mrf.mxu0
        %2218 = vmatprep.mubr.f32.mxu0 %v1997
        %2219 = vmatmul.mubr.f32.gmra.mxu0 %v1879
        %v2220 = vpop.f32.mrf.mxu0
        %v2221 = vadd.f32 0.0, %v2220
        %v2222 = vpop.f32.mrf.mxu0
        %2223 = vdwg.mxu0
        %s2224 = scalar_lea.vmem %s3, 168
        %v2225 = vld [vmem:[%s2224] sm:$0xff]
        %v2226 = vld [vmem:[%s2224 + $0x8] sm:$0xff]
        %v2227 = vld [vmem:[%s2224 + $0x10] sm:$0xff]
        %v2228 = vld [vmem:[%s2224 + $0x18] sm:$0xff]
        %v2229 = vld [vmem:[%s2224 + $0x20] sm:$0xff]
        %v2230 = vld [vmem:[%s2224 + $0x28] sm:$0xff]
        %v2231 = vld [vmem:[%s2224 + $0x30] sm:$0xff]
        %v2232 = vld [vmem:[%s2224 + $0x38] sm:$0xff]
        %v2233 = vld [vmem:[%s2224 + $0x40] sm:$0xff]
        %v2234 = vld [vmem:[%s2224 + $0x48] sm:$0xff]
        %v2235 = vld [vmem:[%s2224 + $0x50] sm:$0xff]
        %v2236 = vld [vmem:[%s2224 + $0x58] sm:$0xff]
        %v2237 = vld [vmem:[%s2224 + $0x60] sm:$0xff]
        %v2238 = vld [vmem:[%s2224 + $0x68] sm:$0xff]
        %v2239 = vld [vmem:[%s2224 + $0x70] sm:$0xff]
        %v2240 = vld [vmem:[%s2224 + $0x78] sm:$0xff]
        %v2241 = vld [vmem:[%s2224 + $0x80] sm:$0xff]
        %v2242 = vld [vmem:[%s2224 + $0x88] sm:$0xff]
        %v2243 = vld [vmem:[%s2224 + $0x90] sm:$0xff]
        %v2244 = vld [vmem:[%s2224 + $0x98] sm:$0xff]
        %v2245 = vld [vmem:[%s2224 + $0xa0] sm:$0xff]
        %2246 = vmatprep.subr.mxu0 0.0
        %2247 = vmatpush1.msra.mxu0 %v2240
        %2248 = vmatprep.subr.mxu0 0.0
        %2249 = vmatpush1.msra.mxu0 %v2239
        %2250 = vmatprep.subr.mxu0 0.0
        %2251 = vmatpush1.msra.mxu0 %v2238
        %2252 = vmatprep.subr.mxu0 0.0
        %2253 = vmatpush1.msra.mxu0 %v2237
        %2254 = vmatprep.subr.mxu0 0.0
        %2255 = vmatpush1.msra.mxu0 %v2236
        %2256 = vmatprep.subr.mxu0 0.0
        %2257 = vmatpush1.msra.mxu0 %v2235
        %2258 = vmatprep.subr.mxu0 0.0
        %2259 = vmatpush1.msra.mxu0 %v2234
        %2260 = vmatprep.subr.mxu0 0.0
        %2261 = vmatpush1.msra.mxu0 %v2233
        %2262 = vmatprep.subr.mxu0 0.0
        %2263 = vmatpush1.msra.mxu0 %v2232
        %2264 = vmatprep.subr.mxu0 0.0
        %2265 = vmatpush1.msra.mxu0 %v2231
        %2266 = vmatprep.subr.mxu0 0.0
        %2267 = vmatpush1.msra.mxu0 %v2230
        %2268 = vmatprep.subr.mxu0 0.0
        %2269 = vmatpush1.msra.mxu0 %v2229
        %2270 = vmatprep.subr.mxu0 0.0
        %2271 = vmatpush1.msra.mxu0 %v2228
        %2272 = vmatprep.subr.mxu0 0.0
        %2273 = vmatpush1.msra.mxu0 %v2227
        %2274 = vmatprep.subr.mxu0 0.0
        %2275 = vmatpush1.msra.mxu0 %v2226
        %2276 = vmatprep.subr.mxu0 0.0
        %2277 = vmatpush1.msra.mxu0 %v2225
        %2278 = vmatprep.subr.mxu0 0.0
        %2279 = vmatpush2.msra.mxu0 0.0
        %2280 = vmatprep.subr.mxu0 0.0
        %2281 = vmatpush2.msra.mxu0 0.0
        %2282 = vmatprep.subr.mxu0 0.0
        %2283 = vmatpush2.msra.mxu0 0.0
        %2284 = vmatprep.subr.mxu0 0.0
        %2285 = vmatpush2.msra.mxu0 0.0
        %2286 = vmatprep.subr.mxu0 0.0
        %2287 = vmatpush2.msra.mxu0 0.0
        %2288 = vmatprep.subr.mxu0 0.0
        %2289 = vmatpush2.msra.mxu0 0.0
        %2290 = vmatprep.subr.mxu0 0.0
        %2291 = vmatpush2.msra.mxu0 0.0
        %2292 = vmatprep.subr.mxu0 0.0
        %2293 = vmatpush2.msra.mxu0 0.0
        %2294 = vmatprep.subr.mxu0 0.0
        %2295 = vmatpush2.msra.mxu0 0.0
        %2296 = vmatprep.subr.mxu0 0.0
        %2297 = vmatpush2.msra.mxu0 0.0
        %2298 = vmatprep.subr.mxu0 0.0
        %2299 = vmatpush2.msra.mxu0 0.0
        %2300 = vmatprep.subr.mxu0 0.0
        %2301 = vmatpush2.msra.mxu0 %v2245
        %2302 = vmatprep.subr.mxu0 0.0
        %2303 = vmatpush2.msra.mxu0 %v2244
        %2304 = vmatprep.subr.mxu0 0.0
        %2305 = vmatpush2.msra.mxu0 %v2243
        %2306 = vmatprep.subr.mxu0 0.0
        %2307 = vmatpush2.msra.mxu0 %v2242
        %2308 = vmatprep.subr.mxu0 0.0
        %2309 = vmatpush2.msra.mxu0 %v2241
        %2310 = vmatprep.mubr.f32.mxu0 %v1904
        %2311 = vmatmul.mubr.f32.gmra.mxu0 %v1817
        %v2312 = vpop.f32.mrf.mxu0
        %v2313 = vadd.f32 0.0, %v2312
        %v2314 = vpop.f32.mrf.mxu0
        %2315 = vmatprep.mubr.f32.mxu0 %v1907
        %2316 = vmatmul.mubr.f32.gmra.mxu0 %v1819
        %v2317 = vpop.f32.mrf.mxu0
        %v2318 = vadd.f32 0.0, %v2317
        %v2319 = vpop.f32.mrf.mxu0
        %2320 = vmatprep.mubr.f32.mxu0 %v1910
        %2321 = vmatmul.mubr.f32.gmra.mxu0 %v1821
        %v2322 = vpop.f32.mrf.mxu0
        %v2323 = vadd.f32 0.0, %v2322
        %v2324 = vpop.f32.mrf.mxu0
        %2325 = vmatprep.mubr.f32.mxu0 %v1913
        %2326 = vmatmul.mubr.f32.gmra.mxu0 %v1823
        %v2327 = vpop.f32.mrf.mxu0
        %v2328 = vadd.f32 0.0, %v2327
        %v2329 = vpop.f32.mrf.mxu0
        %2330 = vmatprep.mubr.f32.mxu0 %v1916
        %2331 = vmatmul.mubr.f32.gmra.mxu0 %v1825
        %v2332 = vpop.f32.mrf.mxu0
        %v2333 = vadd.f32 0.0, %v2332
        %v2334 = vpop.f32.mrf.mxu0
        %2335 = vmatprep.mubr.f32.mxu0 %v1919
        %2336 = vmatmul.mubr.f32.gmra.mxu0 %v1827
        %v2337 = vpop.f32.mrf.mxu0
        %v2338 = vadd.f32 0.0, %v2337
        %v2339 = vpop.f32.mrf.mxu0
        %2340 = vmatprep.mubr.f32.mxu0 %v1922
        %2341 = vmatmul.mubr.f32.gmra.mxu0 %v1829
        %v2342 = vpop.f32.mrf.mxu0
        %v2343 = vadd.f32 0.0, %v2342
        %v2344 = vpop.f32.mrf.mxu0
        %2345 = vmatprep.mubr.f32.mxu0 %v1925
        %2346 = vmatmul.mubr.f32.gmra.mxu0 %v1831
        %v2347 = vpop.f32.mrf.mxu0
        %v2348 = vadd.f32 0.0, %v2347
        %v2349 = vpop.f32.mrf.mxu0
        %2350 = vmatprep.mubr.f32.mxu0 %v1928
        %2351 = vmatmul.mubr.f32.gmra.mxu0 %v1833
        %v2352 = vpop.f32.mrf.mxu0
        %v2353 = vadd.f32 0.0, %v2352
        %v2354 = vpop.f32.mrf.mxu0
        %2355 = vmatprep.mubr.f32.mxu0 %v1931
        %2356 = vmatmul.mubr.f32.gmra.mxu0 %v1835
        %v2357 = vpop.f32.mrf.mxu0
        %v2358 = vadd.f32 0.0, %v2357
        %v2359 = vpop.f32.mrf.mxu0
        %2360 = vmatprep.mubr.f32.mxu0 %v1934
        %2361 = vmatmul.mubr.f32.gmra.mxu0 %v1837
        %v2362 = vpop.f32.mrf.mxu0
        %v2363 = vadd.f32 0.0, %v2362
        %v2364 = vpop.f32.mrf.mxu0
        %2365 = vmatprep.mubr.f32.mxu0 %v1937
        %2366 = vmatmul.mubr.f32.gmra.mxu0 %v1839
        %v2367 = vpop.f32.mrf.mxu0
        %v2368 = vadd.f32 0.0, %v2367
        %v2369 = vpop.f32.mrf.mxu0
        %2370 = vmatprep.mubr.f32.mxu0 %v1940
        %2371 = vmatmul.mubr.f32.gmra.mxu0 %v1841
        %v2372 = vpop.f32.mrf.mxu0
        %v2373 = vadd.f32 0.0, %v2372
        %v2374 = vpop.f32.mrf.mxu0
        %2375 = vmatprep.mubr.f32.mxu0 %v1943
        %2376 = vmatmul.mubr.f32.gmra.mxu0 %v1843
        %v2377 = vpop.f32.mrf.mxu0
        %v2378 = vadd.f32 0.0, %v2377
        %v2379 = vpop.f32.mrf.mxu0
        %2380 = vmatprep.mubr.f32.mxu0 %v1946
        %2381 = vmatmul.mubr.f32.gmra.mxu0 %v1845
        %v2382 = vpop.f32.mrf.mxu0
        %v2383 = vadd.f32 0.0, %v2382
        %v2384 = vpop.f32.mrf.mxu0
        %2385 = vmatprep.mubr.f32.mxu0 %v1949
        %2386 = vmatmul.mubr.f32.gmra.mxu0 %v1847
        %v2387 = vpop.f32.mrf.mxu0
        %v2388 = vadd.f32 0.0, %v2387
        %v2389 = vpop.f32.mrf.mxu0
        %2390 = vmatprep.mubr.f32.mxu0 %v1952
        %2391 = vmatmul.mubr.f32.gmra.mxu0 %v1849
        %v2392 = vpop.f32.mrf.mxu0
        %v2393 = vadd.f32 0.0, %v2392
        %v2394 = vpop.f32.mrf.mxu0
        %2395 = vmatprep.mubr.f32.mxu0 %v1955
        %2396 = vmatmul.mubr.f32.gmra.mxu0 %v1851
        %v2397 = vpop.f32.mrf.mxu0
        %v2398 = vadd.f32 0.0, %v2397
        %v2399 = vpop.f32.mrf.mxu0
        %2400 = vmatprep.mubr.f32.mxu0 %v1958
        %2401 = vmatmul.mubr.f32.gmra.mxu0 %v1853
        %v2402 = vpop.f32.mrf.mxu0
        %v2403 = vadd.f32 0.0, %v2402
        %v2404 = vpop.f32.mrf.mxu0
        %2405 = vmatprep.mubr.f32.mxu0 %v1961
        %2406 = vmatmul.mubr.f32.gmra.mxu0 %v1855
        %v2407 = vpop.f32.mrf.mxu0
        %v2408 = vadd.f32 0.0, %v2407
        %v2409 = vpop.f32.mrf.mxu0
        %2410 = vmatprep.mubr.f32.mxu0 %v1964
        %2411 = vmatmul.mubr.f32.gmra.mxu0 %v1857
        %v2412 = vpop.f32.mrf.mxu0
        %v2413 = vadd.f32 0.0, %v2412
        %v2414 = vpop.f32.mrf.mxu0
        %2415 = vmatprep.mubr.f32.mxu0 %v1967
        %2416 = vmatmul.mubr.f32.gmra.mxu0 %v1859
        %v2417 = vpop.f32.mrf.mxu0
        %v2418 = vadd.f32 0.0, %v2417
        %v2419 = vpop.f32.mrf.mxu0
        %2420 = vmatprep.mubr.f32.mxu0 %v1970
        %2421 = vmatmul.mubr.f32.gmra.mxu0 %v1861
        %v2422 = vpop.f32.mrf.mxu0
        %v2423 = vadd.f32 0.0, %v2422
        %v2424 = vpop.f32.mrf.mxu0
        %2425 = vmatprep.mubr.f32.mxu0 %v1973
        %2426 = vmatmul.mubr.f32.gmra.mxu0 %v1863
        %v2427 = vpop.f32.mrf.mxu0
        %v2428 = vadd.f32 0.0, %v2427
        %v2429 = vpop.f32.mrf.mxu0
        %2430 = vmatprep.mubr.f32.mxu0 %v1976
        %2431 = vmatmul.mubr.f32.gmra.mxu0 %v1865
        %v2432 = vpop.f32.mrf.mxu0
        %v2433 = vadd.f32 0.0, %v2432
        %v2434 = vpop.f32.mrf.mxu0
        %2435 = vmatprep.mubr.f32.mxu0 %v1979
        %2436 = vmatmul.mubr.f32.gmra.mxu0 %v1867
        %v2437 = vpop.f32.mrf.mxu0
        %v2438 = vadd.f32 0.0, %v2437
        %v2439 = vpop.f32.mrf.mxu0
        %2440 = vmatprep.mubr.f32.mxu0 %v1982
        %2441 = vmatmul.mubr.f32.gmra.mxu0 %v1869
        %v2442 = vpop.f32.mrf.mxu0
        %v2443 = vadd.f32 0.0, %v2442
        %v2444 = vpop.f32.mrf.mxu0
        %2445 = vmatprep.mubr.f32.mxu0 %v1985
        %2446 = vmatmul.mubr.f32.gmra.mxu0 %v1871
        %v2447 = vpop.f32.mrf.mxu0
        %v2448 = vadd.f32 0.0, %v2447
        %v2449 = vpop.f32.mrf.mxu0
        %2450 = vmatprep.mubr.f32.mxu0 %v1988
        %2451 = vmatmul.mubr.f32.gmra.mxu0 %v1873
        %v2452 = vpop.f32.mrf.mxu0
        %v2453 = vadd.f32 0.0, %v2452
        %v2454 = vpop.f32.mrf.mxu0
        %2455 = vmatprep.mubr.f32.mxu0 %v1991
        %2456 = vmatmul.mubr.f32.gmra.mxu0 %v1875
        %v2457 = vpop.f32.mrf.mxu0
        %v2458 = vadd.f32 0.0, %v2457
        %v2459 = vpop.f32.mrf.mxu0
        %2460 = vmatprep.mubr.f32.mxu0 %v1994
        %2461 = vmatmul.mubr.f32.gmra.mxu0 %v1877
        %v2462 = vpop.f32.mrf.mxu0
        %v2463 = vadd.f32 0.0, %v2462
        %v2464 = vpop.f32.mrf.mxu0
        %2465 = vmatprep.mubr.f32.mxu0 %v1997
        %2466 = vmatmul.mubr.f32.gmra.mxu0 %v1879
        %v2467 = vpop.f32.mrf.mxu0
        %v2468 = vadd.f32 0.0, %v2467
        %v2469 = vpop.f32.mrf.mxu0
        %2470 = vdwg.mxu0
        %v2471 = vmax.f32 %v2066, %v2313
        %v2472 = vmax.f32 %v2071, %v2318
        %v2473 = vmax.f32 %v2076, %v2323
        %v2474 = vmax.f32 %v2081, %v2328
        %v2475 = vmax.f32 %v2086, %v2333
        %v2476 = vmax.f32 %v2091, %v2338
        %v2477 = vmax.f32 %v2096, %v2343
        %v2478 = vmax.f32 %v2101, %v2348
        %v2479 = vmax.f32 %v2106, %v2353
        %v2480 = vmax.f32 %v2111, %v2358
        %v2481 = vmax.f32 %v2116, %v2363
        %v2482 = vmax.f32 %v2121, %v2368
        %v2483 = vmax.f32 %v2126, %v2373
        %v2484 = vmax.f32 %v2131, %v2378
        %v2485 = vmax.f32 %v2136, %v2383
        %v2486 = vmax.f32 %v2141, %v2388
        %v2487 = vmax.f32 %v2146, %v2393
        %v2488 = vmax.f32 %v2151, %v2398
        %v2489 = vmax.f32 %v2156, %v2403
        %v2490 = vmax.f32 %v2161, %v2408
        %v2491 = vmax.f32 %v2166, %v2413
        %v2492 = vmax.f32 %v2171, %v2418
        %v2493 = vmax.f32 %v2176, %v2423
        %v2494 = vmax.f32 %v2181, %v2428
        %v2495 = vmax.f32 %v2186, %v2433
        %v2496 = vmax.f32 %v2191, %v2438
        %v2497 = vmax.f32 %v2196, %v2443
        %v2498 = vmax.f32 %v2201, %v2448
        %v2499 = vmax.f32 %v2206, %v2453
        %v2500 = vmax.f32 %v2211, %v2458
        %v2501 = vmax.f32 %v2216, %v2463
        %v2502 = vmax.f32 %v2221, %v2468
        %v2503 = vld [vmem:[%s4] sm:$0xff]
        %v2504 = vld [vmem:[%s4 + $0x8] sm:$0xff]
        %v2505 = vld [vmem:[%s4 + $0x10] sm:$0xff]
        %v2506 = vld [vmem:[%s4 + $0x18] sm:$0xff]
        %v2507 = vld [vmem:[%s4 + $0x20] sm:$0xff]
        %v2508 = vld [vmem:[%s4 + $0x28] sm:$0xff]
        %v2509 = vld [vmem:[%s4 + $0x30] sm:$0xff]
        %v2510 = vld [vmem:[%s4 + $0x38] sm:$0xff]
        %v2511 = vld [vmem:[%s4 + $0x40] sm:$0xff]
        %v2512 = vld [vmem:[%s4 + $0x48] sm:$0xff]
        %v2513 = vld [vmem:[%s4 + $0x50] sm:$0xff]
        %v2514 = vld [vmem:[%s4 + $0x58] sm:$0xff]
        %v2515 = vld [vmem:[%s4 + $0x60] sm:$0xff]
        %v2516 = vld [vmem:[%s4 + $0x68] sm:$0xff]
        %v2517 = vld [vmem:[%s4 + $0x70] sm:$0xff]
        %v2518 = vld [vmem:[%s4 + $0x78] sm:$0xff]
        %v2519 = vld [vmem:[%s4 + $0x80] sm:$0xff]
        %v2520 = vld [vmem:[%s4 + $0x88] sm:$0xff]
        %v2521 = vld [vmem:[%s4 + $0x90] sm:$0xff]
        %v2522 = vld [vmem:[%s4 + $0x98] sm:$0xff]
        %v2523 = vld [vmem:[%s4 + $0xa0] sm:$0xff]
        %v2524 = vld [vmem:[%s4 + $0xa8] sm:$0xff]
        %v2525 = vld [vmem:[%s4 + $0xb0] sm:$0xff]
        %v2526 = vld [vmem:[%s4 + $0xb8] sm:$0xff]
        %v2527 = vld [vmem:[%s4 + $0xc0] sm:$0xff]
        %v2528 = vld [vmem:[%s4 + $0xc8] sm:$0xff]
        %v2529 = vld [vmem:[%s4 + $0xd0] sm:$0xff]
        %v2530 = vld [vmem:[%s4 + $0xd8] sm:$0xff]
        %v2531 = vld [vmem:[%s4 + $0xe0] sm:$0xff]
        %v2532 = vld [vmem:[%s4 + $0xe8] sm:$0xff]
        %v2533 = vld [vmem:[%s4 + $0xf0] sm:$0xff]
        %v2534 = vld [vmem:[%s4 + $0xf8] sm:$0xff]
        %v2535 = vld [vmem:[%s4 + $0x100] sm:$0xff]
        %v2536 = vld [vmem:[%s4 + $0x108] sm:$0xff]
        %v2537 = vld [vmem:[%s4 + $0x110] sm:$0xff]
        %v2538 = vld [vmem:[%s4 + $0x118] sm:$0xff]
        %v2539 = vld [vmem:[%s4 + $0x120] sm:$0xff]
        %v2540 = vld [vmem:[%s4 + $0x128] sm:$0xff]
        %v2541 = vld [vmem:[%s4 + $0x130] sm:$0xff]
        %v2542 = vld [vmem:[%s4 + $0x138] sm:$0xff]
        %v2543 = vld [vmem:[%s4 + $0x140] sm:$0xff]
        %v2544 = vld [vmem:[%s4 + $0x148] sm:$0xff]
        %v2545 = vld [vmem:[%s4 + $0x150] sm:$0xff]
        %v2546 = vld [vmem:[%s4 + $0x158] sm:$0xff]
        %v2547 = vld [vmem:[%s4 + $0x160] sm:$0xff]
        %v2548 = vld [vmem:[%s4 + $0x168] sm:$0xff]
        %v2549 = vld [vmem:[%s4 + $0x170] sm:$0xff]
        %v2550 = vld [vmem:[%s4 + $0x178] sm:$0xff]
        %v2551 = vld [vmem:[%s4 + $0x180] sm:$0xff]
        %v2552 = vld [vmem:[%s4 + $0x188] sm:$0xff]
        %v2553 = vld [vmem:[%s4 + $0x190] sm:$0xff]
        %v2554 = vld [vmem:[%s4 + $0x198] sm:$0xff]
        %v2555 = vld [vmem:[%s4 + $0x1a0] sm:$0xff]
        %v2556 = vld [vmem:[%s4 + $0x1a8] sm:$0xff]
        %v2557 = vld [vmem:[%s4 + $0x1b0] sm:$0xff]
        %v2558 = vld [vmem:[%s4 + $0x1b8] sm:$0xff]
        %v2559 = vld [vmem:[%s4 + $0x1c0] sm:$0xff]
        %v2560 = vld [vmem:[%s4 + $0x1c8] sm:$0xff]
        %v2561 = vld [vmem:[%s4 + $0x1d0] sm:$0xff]
        %v2562 = vld [vmem:[%s4 + $0x1d8] sm:$0xff]
        %v2563 = vld [vmem:[%s4 + $0x1e0] sm:$0xff]
        %v2564 = vld [vmem:[%s4 + $0x1e8] sm:$0xff]
        %v2565 = vld [vmem:[%s4 + $0x1f0] sm:$0xff]
        %v2566 = vld [vmem:[%s4 + $0x1f8] sm:$0xff]
        %v2567 = vld [vmem:[%s4 + $0x200] sm:$0xff]
        %v2568 = vld [vmem:[%s4 + $0x208] sm:$0xff]
        %v2569 = vld [vmem:[%s4 + $0x210] sm:$0xff]
        %v2570 = vld [vmem:[%s4 + $0x218] sm:$0xff]
        %v2571 = vld [vmem:[%s4 + $0x220] sm:$0xff]
        %v2572 = vld [vmem:[%s4 + $0x228] sm:$0xff]
        %v2573 = vld [vmem:[%s4 + $0x230] sm:$0xff]
        %v2574 = vld [vmem:[%s4 + $0x238] sm:$0xff]
        %v2575 = vld [vmem:[%s4 + $0x240] sm:$0xff]
        %v2576 = vld [vmem:[%s4 + $0x248] sm:$0xff]
        %v2577 = vld [vmem:[%s4 + $0x250] sm:$0xff]
        %v2578 = vld [vmem:[%s4 + $0x258] sm:$0xff]
        %v2579 = vld [vmem:[%s4 + $0x260] sm:$0xff]
        %v2580 = vld [vmem:[%s4 + $0x268] sm:$0xff]
        %v2581 = vld [vmem:[%s4 + $0x270] sm:$0xff]
        %v2582 = vld [vmem:[%s4 + $0x278] sm:$0xff]
        %v2583 = vld [vmem:[%s4 + $0x280] sm:$0xff]
        %v2584 = vld [vmem:[%s4 + $0x288] sm:$0xff]
        %v2585 = vld [vmem:[%s4 + $0x290] sm:$0xff]
        %v2586 = vld [vmem:[%s4 + $0x298] sm:$0xff]
        %v2587 = vld [vmem:[%s4 + $0x2a0] sm:$0xff]
        %v2588 = vld [vmem:[%s4 + $0x2a8] sm:$0xff]
        %v2589 = vld [vmem:[%s4 + $0x2b0] sm:$0xff]
        %v2590 = vld [vmem:[%s4 + $0x2b8] sm:$0xff]
        %v2591 = vld [vmem:[%s4 + $0x2c0] sm:$0xff]
        %v2592 = vld [vmem:[%s4 + $0x2c8] sm:$0xff]
        %v2593 = vld [vmem:[%s4 + $0x2d0] sm:$0xff]
        %v2594 = vld [vmem:[%s4 + $0x2d8] sm:$0xff]
        %v2595 = vld [vmem:[%s4 + $0x2e0] sm:$0xff]
        %v2596 = vld [vmem:[%s4 + $0x2e8] sm:$0xff]
        %v2597 = vld [vmem:[%s4 + $0x2f0] sm:$0xff]
        %v2598 = vld [vmem:[%s4 + $0x2f8] sm:$0xff]
        %2599 = vmatprep.subr.mxu0 0.0
        %2600 = vmatpush1.msra.mxu0 %v2486
        %2601 = vmatprep.subr.mxu0 0.0
        %2602 = vmatpush1.msra.mxu0 %v2485
        %2603 = vmatprep.subr.mxu0 0.0
        %2604 = vmatpush1.msra.mxu0 %v2484
        %2605 = vmatprep.subr.mxu0 0.0
        %2606 = vmatpush1.msra.mxu0 %v2483
        %2607 = vmatprep.subr.mxu0 0.0
        %2608 = vmatpush1.msra.mxu0 %v2482
        %2609 = vmatprep.subr.mxu0 0.0
        %2610 = vmatpush1.msra.mxu0 %v2481
        %2611 = vmatprep.subr.mxu0 0.0
        %2612 = vmatpush1.msra.mxu0 %v2480
        %2613 = vmatprep.subr.mxu0 0.0
        %2614 = vmatpush1.msra.mxu0 %v2479
        %2615 = vmatprep.subr.mxu0 0.0
        %2616 = vmatpush1.msra.mxu0 %v2478
        %2617 = vmatprep.subr.mxu0 0.0
        %2618 = vmatpush1.msra.mxu0 %v2477
        %2619 = vmatprep.subr.mxu0 0.0
        %2620 = vmatpush1.msra.mxu0 %v2476
        %2621 = vmatprep.subr.mxu0 0.0
        %2622 = vmatpush1.msra.mxu0 %v2475
        %2623 = vmatprep.subr.mxu0 0.0
        %2624 = vmatpush1.msra.mxu0 %v2474
        %2625 = vmatprep.subr.mxu0 0.0
        %2626 = vmatpush1.msra.mxu0 %v2473
        %2627 = vmatprep.subr.mxu0 0.0
        %2628 = vmatpush1.msra.mxu0 %v2472
        %2629 = vmatprep.subr.mxu0 0.0
        %2630 = vmatpush1.msra.mxu0 %v2471
        %2631 = vmatprep.subr.mxu0 0.0
        %2632 = vmatpush2.msra.mxu0 %v2502
        %2633 = vmatprep.subr.mxu0 0.0
        %2634 = vmatpush2.msra.mxu0 %v2501
        %2635 = vmatprep.subr.mxu0 0.0
        %2636 = vmatpush2.msra.mxu0 %v2500
        %2637 = vmatprep.subr.mxu0 0.0
        %2638 = vmatpush2.msra.mxu0 %v2499
        %2639 = vmatprep.subr.mxu0 0.0
        %2640 = vmatpush2.msra.mxu0 %v2498
        %2641 = vmatprep.subr.mxu0 0.0
        %2642 = vmatpush2.msra.mxu0 %v2497
        %2643 = vmatprep.subr.mxu0 0.0
        %2644 = vmatpush2.msra.mxu0 %v2496
        %2645 = vmatprep.subr.mxu0 0.0
        %2646 = vmatpush2.msra.mxu0 %v2495
        %2647 = vmatprep.subr.mxu0 0.0
        %2648 = vmatpush2.msra.mxu0 %v2494
        %2649 = vmatprep.subr.mxu0 0.0
        %2650 = vmatpush2.msra.mxu0 %v2493
        %2651 = vmatprep.subr.mxu0 0.0
        %2652 = vmatpush2.msra.mxu0 %v2492
        %2653 = vmatprep.subr.mxu0 0.0
        %2654 = vmatpush2.msra.mxu0 %v2491
        %2655 = vmatprep.subr.mxu0 0.0
        %2656 = vmatpush2.msra.mxu0 %v2490
        %2657 = vmatprep.subr.mxu0 0.0
        %2658 = vmatpush2.msra.mxu0 %v2489
        %2659 = vmatprep.subr.mxu0 0.0
        %2660 = vmatpush2.msra.mxu0 %v2488
        %2661 = vmatprep.subr.mxu0 0.0
        %2662 = vmatpush2.msra.mxu0 %v2487
        %2663 = vmatprep.mubr.f32.mxu0 %v2504
        %2664 = vmatmul.mubr.f32.gmra.mxu0 %v2503
        %v2665 = vpop.f32.mrf.mxu0
        %v2666 = vadd.f32 0.0, %v2665
        %v2667 = vpop.f32.mrf.mxu0
        %2668 = vmatprep.mubr.f32.mxu0 %v2506
        %2669 = vmatmul.mubr.f32.gmra.mxu0 %v2505
        %v2670 = vpop.f32.mrf.mxu0
        %v2671 = vadd.f32 0.0, %v2670
        %v2672 = vpop.f32.mrf.mxu0
        %2673 = vmatprep.mubr.f32.mxu0 %v2508
        %2674 = vmatmul.mubr.f32.gmra.mxu0 %v2507
        %v2675 = vpop.f32.mrf.mxu0
        %v2676 = vadd.f32 0.0, %v2675
        %v2677 = vpop.f32.mrf.mxu0
        %2678 = vmatprep.mubr.f32.mxu0 %v2510
        %2679 = vmatmul.mubr.f32.gmra.mxu0 %v2509
        %v2680 = vpop.f32.mrf.mxu0
        %v2681 = vadd.f32 0.0, %v2680
        %v2682 = vpop.f32.mrf.mxu0
        %2683 = vmatprep.mubr.f32.mxu0 %v2512
        %2684 = vmatmul.mubr.f32.gmra.mxu0 %v2511
        %v2685 = vpop.f32.mrf.mxu0
        %v2686 = vadd.f32 0.0, %v2685
        %v2687 = vpop.f32.mrf.mxu0
        %2688 = vmatprep.mubr.f32.mxu0 %v2514
        %2689 = vmatmul.mubr.f32.gmra.mxu0 %v2513
        %v2690 = vpop.f32.mrf.mxu0
        %v2691 = vadd.f32 0.0, %v2690
        %v2692 = vpop.f32.mrf.mxu0
        %2693 = vmatprep.mubr.f32.mxu0 %v2516
        %2694 = vmatmul.mubr.f32.gmra.mxu0 %v2515
        %v2695 = vpop.f32.mrf.mxu0
        %v2696 = vadd.f32 0.0, %v2695
        %v2697 = vpop.f32.mrf.mxu0
        %2698 = vmatprep.mubr.f32.mxu0 %v2518
        %2699 = vmatmul.mubr.f32.gmra.mxu0 %v2517
        %v2700 = vpop.f32.mrf.mxu0
        %v2701 = vadd.f32 0.0, %v2700
        %v2702 = vpop.f32.mrf.mxu0
        %2703 = vmatprep.mubr.f32.mxu0 %v2520
        %2704 = vmatmul.mubr.f32.gmra.mxu0 %v2519
        %v2705 = vpop.f32.mrf.mxu0
        %v2706 = vadd.f32 0.0, %v2705
        %v2707 = vpop.f32.mrf.mxu0
        %2708 = vmatprep.mubr.f32.mxu0 %v2522
        %2709 = vmatmul.mubr.f32.gmra.mxu0 %v2521
        %v2710 = vpop.f32.mrf.mxu0
        %v2711 = vadd.f32 0.0, %v2710
        %v2712 = vpop.f32.mrf.mxu0
        %2713 = vmatprep.mubr.f32.mxu0 %v2524
        %2714 = vmatmul.mubr.f32.gmra.mxu0 %v2523
        %v2715 = vpop.f32.mrf.mxu0
        %v2716 = vadd.f32 0.0, %v2715
        %v2717 = vpop.f32.mrf.mxu0
        %2718 = vmatprep.mubr.f32.mxu0 %v2526
        %2719 = vmatmul.mubr.f32.gmra.mxu0 %v2525
        %v2720 = vpop.f32.mrf.mxu0
        %v2721 = vadd.f32 0.0, %v2720
        %v2722 = vpop.f32.mrf.mxu0
        %2723 = vmatprep.mubr.f32.mxu0 %v2528
        %2724 = vmatmul.mubr.f32.gmra.mxu0 %v2527
        %v2725 = vpop.f32.mrf.mxu0
        %v2726 = vadd.f32 0.0, %v2725
        %v2727 = vpop.f32.mrf.mxu0
        %2728 = vmatprep.mubr.f32.mxu0 %v2530
        %2729 = vmatmul.mubr.f32.gmra.mxu0 %v2529
        %v2730 = vpop.f32.mrf.mxu0
        %v2731 = vadd.f32 0.0, %v2730
        %v2732 = vpop.f32.mrf.mxu0
        %2733 = vmatprep.mubr.f32.mxu0 %v2532
        %2734 = vmatmul.mubr.f32.gmra.mxu0 %v2531
        %v2735 = vpop.f32.mrf.mxu0
        %v2736 = vadd.f32 0.0, %v2735
        %v2737 = vpop.f32.mrf.mxu0
        %2738 = vmatprep.mubr.f32.mxu0 %v2534
        %2739 = vmatmul.mubr.f32.gmra.mxu0 %v2533
        %v2740 = vpop.f32.mrf.mxu0
        %v2741 = vadd.f32 0.0, %v2740
        %v2742 = vpop.f32.mrf.mxu0
        %2743 = vmatprep.mubr.f32.mxu0 %v2536
        %2744 = vmatmul.mubr.f32.gmra.mxu0 %v2535
        %v2745 = vpop.f32.mrf.mxu0
        %v2746 = vadd.f32 0.0, %v2745
        %v2747 = vpop.f32.mrf.mxu0
        %2748 = vmatprep.mubr.f32.mxu0 %v2538
        %2749 = vmatmul.mubr.f32.gmra.mxu0 %v2537
        %v2750 = vpop.f32.mrf.mxu0
        %v2751 = vadd.f32 0.0, %v2750
        %v2752 = vpop.f32.mrf.mxu0
        %2753 = vmatprep.mubr.f32.mxu0 %v2540
        %2754 = vmatmul.mubr.f32.gmra.mxu0 %v2539
        %v2755 = vpop.f32.mrf.mxu0
        %v2756 = vadd.f32 0.0, %v2755
        %v2757 = vpop.f32.mrf.mxu0
        %2758 = vmatprep.mubr.f32.mxu0 %v2542
        %2759 = vmatmul.mubr.f32.gmra.mxu0 %v2541
        %v2760 = vpop.f32.mrf.mxu0
        %v2761 = vadd.f32 0.0, %v2760
        %v2762 = vpop.f32.mrf.mxu0
        %2763 = vmatprep.mubr.f32.mxu0 %v2544
        %2764 = vmatmul.mubr.f32.gmra.mxu0 %v2543
        %v2765 = vpop.f32.mrf.mxu0
        %v2766 = vadd.f32 0.0, %v2765
        %v2767 = vpop.f32.mrf.mxu0
        %2768 = vmatprep.mubr.f32.mxu0 %v2546
        %2769 = vmatmul.mubr.f32.gmra.mxu0 %v2545
        %v2770 = vpop.f32.mrf.mxu0
        %v2771 = vadd.f32 0.0, %v2770
        %v2772 = vpop.f32.mrf.mxu0
        %2773 = vmatprep.mubr.f32.mxu0 %v2548
        %2774 = vmatmul.mubr.f32.gmra.mxu0 %v2547
        %v2775 = vpop.f32.mrf.mxu0
        %v2776 = vadd.f32 0.0, %v2775
        %v2777 = vpop.f32.mrf.mxu0
        %2778 = vmatprep.mubr.f32.mxu0 %v2550
        %2779 = vmatmul.mubr.f32.gmra.mxu0 %v2549
        %v2780 = vpop.f32.mrf.mxu0
        %v2781 = vadd.f32 0.0, %v2780
        %v2782 = vpop.f32.mrf.mxu0
        %2783 = vmatprep.mubr.f32.mxu0 %v2552
        %2784 = vmatmul.mubr.f32.gmra.mxu0 %v2551
        %v2785 = vpop.f32.mrf.mxu0
        %v2786 = vadd.f32 0.0, %v2785
        %v2787 = vpop.f32.mrf.mxu0
        %2788 = vmatprep.mubr.f32.mxu0 %v2554
        %2789 = vmatmul.mubr.f32.gmra.mxu0 %v2553
        %v2790 = vpop.f32.mrf.mxu0
        %v2791 = vadd.f32 0.0, %v2790
        %v2792 = vpop.f32.mrf.mxu0
        %2793 = vmatprep.mubr.f32.mxu0 %v2556
        %2794 = vmatmul.mubr.f32.gmra.mxu0 %v2555
        %v2795 = vpop.f32.mrf.mxu0
        %v2796 = vadd.f32 0.0, %v2795
        %v2797 = vpop.f32.mrf.mxu0
        %2798 = vmatprep.mubr.f32.mxu0 %v2558
        %2799 = vmatmul.mubr.f32.gmra.mxu0 %v2557
        %v2800 = vpop.f32.mrf.mxu0
        %v2801 = vadd.f32 0.0, %v2800
        %v2802 = vpop.f32.mrf.mxu0
        %2803 = vmatprep.mubr.f32.mxu0 %v2560
        %2804 = vmatmul.mubr.f32.gmra.mxu0 %v2559
        %v2805 = vpop.f32.mrf.mxu0
        %v2806 = vadd.f32 0.0, %v2805
        %v2807 = vpop.f32.mrf.mxu0
        %2808 = vmatprep.mubr.f32.mxu0 %v2562
        %2809 = vmatmul.mubr.f32.gmra.mxu0 %v2561
        %v2810 = vpop.f32.mrf.mxu0
        %v2811 = vadd.f32 0.0, %v2810
        %v2812 = vpop.f32.mrf.mxu0
        %2813 = vmatprep.mubr.f32.mxu0 %v2564
        %2814 = vmatmul.mubr.f32.gmra.mxu0 %v2563
        %v2815 = vpop.f32.mrf.mxu0
        %v2816 = vadd.f32 0.0, %v2815
        %v2817 = vpop.f32.mrf.mxu0
        %2818 = vmatprep.mubr.f32.mxu0 %v2566
        %2819 = vmatmul.mubr.f32.gmra.mxu0 %v2565
        %v2820 = vpop.f32.mrf.mxu0
        %v2821 = vadd.f32 0.0, %v2820
        %v2822 = vpop.f32.mrf.mxu0
        %2823 = vmatprep.mubr.f32.mxu0 %v2568
        %2824 = vmatmul.mubr.f32.gmra.mxu0 %v2567
        %v2825 = vpop.f32.mrf.mxu0
        %v2826 = vadd.f32 0.0, %v2825
        %v2827 = vpop.f32.mrf.mxu0
        %2828 = vmatprep.mubr.f32.mxu0 %v2570
        %2829 = vmatmul.mubr.f32.gmra.mxu0 %v2569
        %v2830 = vpop.f32.mrf.mxu0
        %v2831 = vadd.f32 0.0, %v2830
        %v2832 = vpop.f32.mrf.mxu0
        %2833 = vmatprep.mubr.f32.mxu0 %v2572
        %2834 = vmatmul.mubr.f32.gmra.mxu0 %v2571
        %v2835 = vpop.f32.mrf.mxu0
        %v2836 = vadd.f32 0.0, %v2835
        %v2837 = vpop.f32.mrf.mxu0
        %2838 = vmatprep.mubr.f32.mxu0 %v2574
        %2839 = vmatmul.mubr.f32.gmra.mxu0 %v2573
        %v2840 = vpop.f32.mrf.mxu0
        %v2841 = vadd.f32 0.0, %v2840
        %v2842 = vpop.f32.mrf.mxu0
        %2843 = vmatprep.mubr.f32.mxu0 %v2576
        %2844 = vmatmul.mubr.f32.gmra.mxu0 %v2575
        %v2845 = vpop.f32.mrf.mxu0
        %v2846 = vadd.f32 0.0, %v2845
        %v2847 = vpop.f32.mrf.mxu0
        %2848 = vmatprep.mubr.f32.mxu0 %v2578
        %2849 = vmatmul.mubr.f32.gmra.mxu0 %v2577
        %v2850 = vpop.f32.mrf.mxu0
        %v2851 = vadd.f32 0.0, %v2850
        %v2852 = vpop.f32.mrf.mxu0
        %2853 = vmatprep.mubr.f32.mxu0 %v2580
        %2854 = vmatmul.mubr.f32.gmra.mxu0 %v2579
        %v2855 = vpop.f32.mrf.mxu0
        %v2856 = vadd.f32 0.0, %v2855
        %v2857 = vpop.f32.mrf.mxu0
        %2858 = vmatprep.mubr.f32.mxu0 %v2582
        %2859 = vmatmul.mubr.f32.gmra.mxu0 %v2581
        %v2860 = vpop.f32.mrf.mxu0
        %v2861 = vadd.f32 0.0, %v2860
        %v2862 = vpop.f32.mrf.mxu0
        %2863 = vmatprep.mubr.f32.mxu0 %v2584
        %2864 = vmatmul.mubr.f32.gmra.mxu0 %v2583
        %v2865 = vpop.f32.mrf.mxu0
        %v2866 = vadd.f32 0.0, %v2865
        %v2867 = vpop.f32.mrf.mxu0
        %2868 = vmatprep.mubr.f32.mxu0 %v2586
        %2869 = vmatmul.mubr.f32.gmra.mxu0 %v2585
        %v2870 = vpop.f32.mrf.mxu0
        %v2871 = vadd.f32 0.0, %v2870
        %v2872 = vpop.f32.mrf.mxu0
        %2873 = vmatprep.mubr.f32.mxu0 %v2588
        %2874 = vmatmul.mubr.f32.gmra.mxu0 %v2587
        %v2875 = vpop.f32.mrf.mxu0
        %v2876 = vadd.f32 0.0, %v2875
        %v2877 = vpop.f32.mrf.mxu0
        %2878 = vmatprep.mubr.f32.mxu0 %v2590
        %2879 = vmatmul.mubr.f32.gmra.mxu0 %v2589
        %v2880 = vpop.f32.mrf.mxu0
        %v2881 = vadd.f32 0.0, %v2880
        %v2882 = vpop.f32.mrf.mxu0
        %2883 = vmatprep.mubr.f32.mxu0 %v2592
        %2884 = vmatmul.mubr.f32.gmra.mxu0 %v2591
        %v2885 = vpop.f32.mrf.mxu0
        %v2886 = vadd.f32 0.0, %v2885
        %v2887 = vpop.f32.mrf.mxu0
        %2888 = vmatprep.mubr.f32.mxu0 %v2594
        %2889 = vmatmul.mubr.f32.gmra.mxu0 %v2593
        %v2890 = vpop.f32.mrf.mxu0
        %v2891 = vadd.f32 0.0, %v2890
        %v2892 = vpop.f32.mrf.mxu0
        %2893 = vmatprep.mubr.f32.mxu0 %v2596
        %2894 = vmatmul.mubr.f32.gmra.mxu0 %v2595
        %v2895 = vpop.f32.mrf.mxu0
        %v2896 = vadd.f32 0.0, %v2895
        %v2897 = vpop.f32.mrf.mxu0
        %2898 = vmatprep.mubr.f32.mxu0 %v2598
        %2899 = vmatmul.mubr.f32.gmra.mxu0 %v2597
        %v2900 = vpop.f32.mrf.mxu0
        %v2901 = vadd.f32 0.0, %v2900
        %v2902 = vpop.f32.mrf.mxu0
        %2903 = vdwg.mxu0
        %s2904 = scalar_lea.vmem %s4, 768
        %v2905 = vld [vmem:[%s2904] sm:$0xff]
        %v2906 = vld [vmem:[%s2904 + $0x8] sm:$0xff]
        %v2907 = vld [vmem:[%s2904 + $0x10] sm:$0xff]
        %v2908 = vld [vmem:[%s2904 + $0x18] sm:$0xff]
        %v2909 = vld [vmem:[%s2904 + $0x20] sm:$0xff]
        %v2910 = vld [vmem:[%s2904 + $0x28] sm:$0xff]
        %v2911 = vld [vmem:[%s2904 + $0x30] sm:$0xff]
        %v2912 = vld [vmem:[%s2904 + $0x38] sm:$0xff]
        %v2913 = vld [vmem:[%s2904 + $0x40] sm:$0xff]
        %v2914 = vld [vmem:[%s2904 + $0x48] sm:$0xff]
        %v2915 = vld [vmem:[%s2904 + $0x50] sm:$0xff]
        %v2916 = vld [vmem:[%s2904 + $0x58] sm:$0xff]
        %v2917 = vld [vmem:[%s2904 + $0x60] sm:$0xff]
        %v2918 = vld [vmem:[%s2904 + $0x68] sm:$0xff]
        %v2919 = vld [vmem:[%s2904 + $0x70] sm:$0xff]
        %v2920 = vld [vmem:[%s2904 + $0x78] sm:$0xff]
        %v2921 = vld [vmem:[%s2904 + $0x80] sm:$0xff]
        %v2922 = vld [vmem:[%s2904 + $0x88] sm:$0xff]
        %v2923 = vld [vmem:[%s2904 + $0x90] sm:$0xff]
        %v2924 = vld [vmem:[%s2904 + $0x98] sm:$0xff]
        %v2925 = vld [vmem:[%s2904 + $0xa0] sm:$0xff]
        %v2926 = vld [vmem:[%s2904 + $0xa8] sm:$0xff]
        %v2927 = vld [vmem:[%s2904 + $0xb0] sm:$0xff]
        %v2928 = vld [vmem:[%s2904 + $0xb8] sm:$0xff]
        %v2929 = vld [vmem:[%s2904 + $0xc0] sm:$0xff]
        %v2930 = vld [vmem:[%s2904 + $0xc8] sm:$0xff]
        %v2931 = vld [vmem:[%s2904 + $0xd0] sm:$0xff]
        %v2932 = vld [vmem:[%s2904 + $0xd8] sm:$0xff]
        %v2933 = vld [vmem:[%s2904 + $0xe0] sm:$0xff]
        %v2934 = vld [vmem:[%s2904 + $0xe8] sm:$0xff]
        %v2935 = vld [vmem:[%s2904 + $0xf0] sm:$0xff]
        %v2936 = vld [vmem:[%s2904 + $0xf8] sm:$0xff]
        %v2937 = vld [vmem:[%s2904 + $0x100] sm:$0xff]
        %v2938 = vld [vmem:[%s2904 + $0x108] sm:$0xff]
        %v2939 = vld [vmem:[%s2904 + $0x110] sm:$0xff]
        %v2940 = vld [vmem:[%s2904 + $0x118] sm:$0xff]
        %v2941 = vld [vmem:[%s2904 + $0x120] sm:$0xff]
        %v2942 = vld [vmem:[%s2904 + $0x128] sm:$0xff]
        %v2943 = vld [vmem:[%s2904 + $0x130] sm:$0xff]
        %v2944 = vld [vmem:[%s2904 + $0x138] sm:$0xff]
        %v2945 = vld [vmem:[%s2904 + $0x140] sm:$0xff]
        %v2946 = vld [vmem:[%s2904 + $0x148] sm:$0xff]
        %v2947 = vld [vmem:[%s2904 + $0x150] sm:$0xff]
        %v2948 = vld [vmem:[%s2904 + $0x158] sm:$0xff]
        %v2949 = vld [vmem:[%s2904 + $0x160] sm:$0xff]
        %v2950 = vld [vmem:[%s2904 + $0x168] sm:$0xff]
        %v2951 = vld [vmem:[%s2904 + $0x170] sm:$0xff]
        %v2952 = vld [vmem:[%s2904 + $0x178] sm:$0xff]
        %v2953 = vld [vmem:[%s2904 + $0x180] sm:$0xff]
        %v2954 = vld [vmem:[%s2904 + $0x188] sm:$0xff]
        %v2955 = vld [vmem:[%s2904 + $0x190] sm:$0xff]
        %v2956 = vld [vmem:[%s2904 + $0x198] sm:$0xff]
        %v2957 = vld [vmem:[%s2904 + $0x1a0] sm:$0xff]
        %v2958 = vld [vmem:[%s2904 + $0x1a8] sm:$0xff]
        %v2959 = vld [vmem:[%s2904 + $0x1b0] sm:$0xff]
        %v2960 = vld [vmem:[%s2904 + $0x1b8] sm:$0xff]
        %v2961 = vld [vmem:[%s2904 + $0x1c0] sm:$0xff]
        %v2962 = vld [vmem:[%s2904 + $0x1c8] sm:$0xff]
        %v2963 = vld [vmem:[%s2904 + $0x1d0] sm:$0xff]
        %v2964 = vld [vmem:[%s2904 + $0x1d8] sm:$0xff]
        %v2965 = vld [vmem:[%s2904 + $0x1e0] sm:$0xff]
        %v2966 = vld [vmem:[%s2904 + $0x1e8] sm:$0xff]
        %v2967 = vld [vmem:[%s2904 + $0x1f0] sm:$0xff]
        %v2968 = vld [vmem:[%s2904 + $0x1f8] sm:$0xff]
        %v2969 = vld [vmem:[%s2904 + $0x200] sm:$0xff]
        %v2970 = vld [vmem:[%s2904 + $0x208] sm:$0xff]
        %v2971 = vld [vmem:[%s2904 + $0x210] sm:$0xff]
        %v2972 = vld [vmem:[%s2904 + $0x218] sm:$0xff]
        %v2973 = vld [vmem:[%s2904 + $0x220] sm:$0xff]
        %v2974 = vld [vmem:[%s2904 + $0x228] sm:$0xff]
        %v2975 = vld [vmem:[%s2904 + $0x230] sm:$0xff]
        %v2976 = vld [vmem:[%s2904 + $0x238] sm:$0xff]
        %v2977 = vld [vmem:[%s2904 + $0x240] sm:$0xff]
        %v2978 = vld [vmem:[%s2904 + $0x248] sm:$0xff]
        %v2979 = vld [vmem:[%s2904 + $0x250] sm:$0xff]
        %v2980 = vld [vmem:[%s2904 + $0x258] sm:$0xff]
        %v2981 = vld [vmem:[%s2904 + $0x260] sm:$0xff]
        %v2982 = vld [vmem:[%s2904 + $0x268] sm:$0xff]
        %v2983 = vld [vmem:[%s2904 + $0x270] sm:$0xff]
        %v2984 = vld [vmem:[%s2904 + $0x278] sm:$0xff]
        %v2985 = vld [vmem:[%s2904 + $0x280] sm:$0xff]
        %v2986 = vld [vmem:[%s2904 + $0x288] sm:$0xff]
        %v2987 = vld [vmem:[%s2904 + $0x290] sm:$0xff]
        %v2988 = vld [vmem:[%s2904 + $0x298] sm:$0xff]
        %v2989 = vld [vmem:[%s2904 + $0x2a0] sm:$0xff]
        %v2990 = vld [vmem:[%s2904 + $0x2a8] sm:$0xff]
        %v2991 = vld [vmem:[%s2904 + $0x2b0] sm:$0xff]
        %v2992 = vld [vmem:[%s2904 + $0x2b8] sm:$0xff]
        %v2993 = vld [vmem:[%s2904 + $0x2c0] sm:$0xff]
        %v2994 = vld [vmem:[%s2904 + $0x2c8] sm:$0xff]
        %v2995 = vld [vmem:[%s2904 + $0x2d0] sm:$0xff]
        %v2996 = vld [vmem:[%s2904 + $0x2d8] sm:$0xff]
        %v2997 = vld [vmem:[%s2904 + $0x2e0] sm:$0xff]
        %v2998 = vld [vmem:[%s2904 + $0x2e8] sm:$0xff]
        %v2999 = vld [vmem:[%s2904 + $0x2f0] sm:$0xff]
        %v3000 = vld [vmem:[%s2904 + $0x2f8] sm:$0xff]
        %3001 = vmatprep.subr.mxu0 0.0
        %3002 = vmatpush1.msra.mxu0 %v2486
        %3003 = vmatprep.subr.mxu0 0.0
        %3004 = vmatpush1.msra.mxu0 %v2485
        %3005 = vmatprep.subr.mxu0 0.0
        %3006 = vmatpush1.msra.mxu0 %v2484
        %3007 = vmatprep.subr.mxu0 0.0
        %3008 = vmatpush1.msra.mxu0 %v2483
        %3009 = vmatprep.subr.mxu0 0.0
        %3010 = vmatpush1.msra.mxu0 %v2482
        %3011 = vmatprep.subr.mxu0 0.0
        %3012 = vmatpush1.msra.mxu0 %v2481
        %3013 = vmatprep.subr.mxu0 0.0
        %3014 = vmatpush1.msra.mxu0 %v2480
        %3015 = vmatprep.subr.mxu0 0.0
        %3016 = vmatpush1.msra.mxu0 %v2479
        %3017 = vmatprep.subr.mxu0 0.0
        %3018 = vmatpush1.msra.mxu0 %v2478
        %3019 = vmatprep.subr.mxu0 0.0
        %3020 = vmatpush1.msra.mxu0 %v2477
        %3021 = vmatprep.subr.mxu0 0.0
        %3022 = vmatpush1.msra.mxu0 %v2476
        %3023 = vmatprep.subr.mxu0 0.0
        %3024 = vmatpush1.msra.mxu0 %v2475
        %3025 = vmatprep.subr.mxu0 0.0
        %3026 = vmatpush1.msra.mxu0 %v2474
        %3027 = vmatprep.subr.mxu0 0.0
        %3028 = vmatpush1.msra.mxu0 %v2473
        %3029 = vmatprep.subr.mxu0 0.0
        %3030 = vmatpush1.msra.mxu0 %v2472
        %3031 = vmatprep.subr.mxu0 0.0
        %3032 = vmatpush1.msra.mxu0 %v2471
        %3033 = vmatprep.subr.mxu0 0.0
        %3034 = vmatpush2.msra.mxu0 %v2502
        %3035 = vmatprep.subr.mxu0 0.0
        %3036 = vmatpush2.msra.mxu0 %v2501
        %3037 = vmatprep.subr.mxu0 0.0
        %3038 = vmatpush2.msra.mxu0 %v2500
        %3039 = vmatprep.subr.mxu0 0.0
        %3040 = vmatpush2.msra.mxu0 %v2499
        %3041 = vmatprep.subr.mxu0 0.0
        %3042 = vmatpush2.msra.mxu0 %v2498
        %3043 = vmatprep.subr.mxu0 0.0
        %3044 = vmatpush2.msra.mxu0 %v2497
        %3045 = vmatprep.subr.mxu0 0.0
        %3046 = vmatpush2.msra.mxu0 %v2496
        %3047 = vmatprep.subr.mxu0 0.0
        %3048 = vmatpush2.msra.mxu0 %v2495
        %3049 = vmatprep.subr.mxu0 0.0
        %3050 = vmatpush2.msra.mxu0 %v2494
        %3051 = vmatprep.subr.mxu0 0.0
        %3052 = vmatpush2.msra.mxu0 %v2493
        %3053 = vmatprep.subr.mxu0 0.0
        %3054 = vmatpush2.msra.mxu0 %v2492
        %3055 = vmatprep.subr.mxu0 0.0
        %3056 = vmatpush2.msra.mxu0 %v2491
        %3057 = vmatprep.subr.mxu0 0.0
        %3058 = vmatpush2.msra.mxu0 %v2490
        %3059 = vmatprep.subr.mxu0 0.0
        %3060 = vmatpush2.msra.mxu0 %v2489
        %3061 = vmatprep.subr.mxu0 0.0
        %3062 = vmatpush2.msra.mxu0 %v2488
        %3063 = vmatprep.subr.mxu0 0.0
        %3064 = vmatpush2.msra.mxu0 %v2487
        %3065 = vmatprep.mubr.f32.mxu0 %v2906
        %3066 = vmatmul.mubr.f32.gmra.mxu0 %v2905
        %v3067 = vpop.f32.mrf.mxu0
        %v3068 = vadd.f32 0.0, %v3067
        %v3069 = vpop.f32.mrf.mxu0
        %3070 = vmatprep.mubr.f32.mxu0 %v2908
        %3071 = vmatmul.mubr.f32.gmra.mxu0 %v2907
        %v3072 = vpop.f32.mrf.mxu0
        %v3073 = vadd.f32 0.0, %v3072
        %v3074 = vpop.f32.mrf.mxu0
        %3075 = vmatprep.mubr.f32.mxu0 %v2910
        %3076 = vmatmul.mubr.f32.gmra.mxu0 %v2909
        %v3077 = vpop.f32.mrf.mxu0
        %v3078 = vadd.f32 0.0, %v3077
        %v3079 = vpop.f32.mrf.mxu0
        %3080 = vmatprep.mubr.f32.mxu0 %v2912
        %3081 = vmatmul.mubr.f32.gmra.mxu0 %v2911
        %v3082 = vpop.f32.mrf.mxu0
        %v3083 = vadd.f32 0.0, %v3082
        %v3084 = vpop.f32.mrf.mxu0
        %3085 = vmatprep.mubr.f32.mxu0 %v2914
        %3086 = vmatmul.mubr.f32.gmra.mxu0 %v2913
        %v3087 = vpop.f32.mrf.mxu0
        %v3088 = vadd.f32 0.0, %v3087
        %v3089 = vpop.f32.mrf.mxu0
        %3090 = vmatprep.mubr.f32.mxu0 %v2916
        %3091 = vmatmul.mubr.f32.gmra.mxu0 %v2915
        %v3092 = vpop.f32.mrf.mxu0
        %v3093 = vadd.f32 0.0, %v3092
        %v3094 = vpop.f32.mrf.mxu0
        %3095 = vmatprep.mubr.f32.mxu0 %v2918
        %3096 = vmatmul.mubr.f32.gmra.mxu0 %v2917
        %v3097 = vpop.f32.mrf.mxu0
        %v3098 = vadd.f32 0.0, %v3097
        %v3099 = vpop.f32.mrf.mxu0
        %3100 = vmatprep.mubr.f32.mxu0 %v2920
        %3101 = vmatmul.mubr.f32.gmra.mxu0 %v2919
        %v3102 = vpop.f32.mrf.mxu0
        %v3103 = vadd.f32 0.0, %v3102
        %v3104 = vpop.f32.mrf.mxu0
        %3105 = vmatprep.mubr.f32.mxu0 %v2922
        %3106 = vmatmul.mubr.f32.gmra.mxu0 %v2921
        %v3107 = vpop.f32.mrf.mxu0
        %v3108 = vadd.f32 0.0, %v3107
        %v3109 = vpop.f32.mrf.mxu0
        %3110 = vmatprep.mubr.f32.mxu0 %v2924
        %3111 = vmatmul.mubr.f32.gmra.mxu0 %v2923
        %v3112 = vpop.f32.mrf.mxu0
        %v3113 = vadd.f32 0.0, %v3112
        %v3114 = vpop.f32.mrf.mxu0
        %3115 = vmatprep.mubr.f32.mxu0 %v2926
        %3116 = vmatmul.mubr.f32.gmra.mxu0 %v2925
        %v3117 = vpop.f32.mrf.mxu0
        %v3118 = vadd.f32 0.0, %v3117
        %v3119 = vpop.f32.mrf.mxu0
        %3120 = vmatprep.mubr.f32.mxu0 %v2928
        %3121 = vmatmul.mubr.f32.gmra.mxu0 %v2927
        %v3122 = vpop.f32.mrf.mxu0
        %v3123 = vadd.f32 0.0, %v3122
        %v3124 = vpop.f32.mrf.mxu0
        %3125 = vmatprep.mubr.f32.mxu0 %v2930
        %3126 = vmatmul.mubr.f32.gmra.mxu0 %v2929
        %v3127 = vpop.f32.mrf.mxu0
        %v3128 = vadd.f32 0.0, %v3127
        %v3129 = vpop.f32.mrf.mxu0
        %3130 = vmatprep.mubr.f32.mxu0 %v2932
        %3131 = vmatmul.mubr.f32.gmra.mxu0 %v2931
        %v3132 = vpop.f32.mrf.mxu0
        %v3133 = vadd.f32 0.0, %v3132
        %v3134 = vpop.f32.mrf.mxu0
        %3135 = vmatprep.mubr.f32.mxu0 %v2934
        %3136 = vmatmul.mubr.f32.gmra.mxu0 %v2933
        %v3137 = vpop.f32.mrf.mxu0
        %v3138 = vadd.f32 0.0, %v3137
        %v3139 = vpop.f32.mrf.mxu0
        %3140 = vmatprep.mubr.f32.mxu0 %v2936
        %3141 = vmatmul.mubr.f32.gmra.mxu0 %v2935
        %v3142 = vpop.f32.mrf.mxu0
        %v3143 = vadd.f32 0.0, %v3142
        %v3144 = vpop.f32.mrf.mxu0
        %3145 = vmatprep.mubr.f32.mxu0 %v2938
        %3146 = vmatmul.mubr.f32.gmra.mxu0 %v2937
        %v3147 = vpop.f32.mrf.mxu0
        %v3148 = vadd.f32 0.0, %v3147
        %v3149 = vpop.f32.mrf.mxu0
        %3150 = vmatprep.mubr.f32.mxu0 %v2940
        %3151 = vmatmul.mubr.f32.gmra.mxu0 %v2939
        %v3152 = vpop.f32.mrf.mxu0
        %v3153 = vadd.f32 0.0, %v3152
        %v3154 = vpop.f32.mrf.mxu0
        %3155 = vmatprep.mubr.f32.mxu0 %v2942
        %3156 = vmatmul.mubr.f32.gmra.mxu0 %v2941
        %v3157 = vpop.f32.mrf.mxu0
        %v3158 = vadd.f32 0.0, %v3157
        %v3159 = vpop.f32.mrf.mxu0
        %3160 = vmatprep.mubr.f32.mxu0 %v2944
        %3161 = vmatmul.mubr.f32.gmra.mxu0 %v2943
        %v3162 = vpop.f32.mrf.mxu0
        %v3163 = vadd.f32 0.0, %v3162
        %v3164 = vpop.f32.mrf.mxu0
        %3165 = vmatprep.mubr.f32.mxu0 %v2946
        %3166 = vmatmul.mubr.f32.gmra.mxu0 %v2945
        %v3167 = vpop.f32.mrf.mxu0
        %v3168 = vadd.f32 0.0, %v3167
        %v3169 = vpop.f32.mrf.mxu0
        %3170 = vmatprep.mubr.f32.mxu0 %v2948
        %3171 = vmatmul.mubr.f32.gmra.mxu0 %v2947
        %v3172 = vpop.f32.mrf.mxu0
        %v3173 = vadd.f32 0.0, %v3172
        %v3174 = vpop.f32.mrf.mxu0
        %3175 = vmatprep.mubr.f32.mxu0 %v2950
        %3176 = vmatmul.mubr.f32.gmra.mxu0 %v2949
        %v3177 = vpop.f32.mrf.mxu0
        %v3178 = vadd.f32 0.0, %v3177
        %v3179 = vpop.f32.mrf.mxu0
        %3180 = vmatprep.mubr.f32.mxu0 %v2952
        %3181 = vmatmul.mubr.f32.gmra.mxu0 %v2951
        %v3182 = vpop.f32.mrf.mxu0
        %v3183 = vadd.f32 0.0, %v3182
        %v3184 = vpop.f32.mrf.mxu0
        %3185 = vmatprep.mubr.f32.mxu0 %v2954
        %3186 = vmatmul.mubr.f32.gmra.mxu0 %v2953
        %v3187 = vpop.f32.mrf.mxu0
        %v3188 = vadd.f32 0.0, %v3187
        %v3189 = vpop.f32.mrf.mxu0
        %3190 = vmatprep.mubr.f32.mxu0 %v2956
        %3191 = vmatmul.mubr.f32.gmra.mxu0 %v2955
        %v3192 = vpop.f32.mrf.mxu0
        %v3193 = vadd.f32 0.0, %v3192
        %v3194 = vpop.f32.mrf.mxu0
        %3195 = vmatprep.mubr.f32.mxu0 %v2958
        %3196 = vmatmul.mubr.f32.gmra.mxu0 %v2957
        %v3197 = vpop.f32.mrf.mxu0
        %v3198 = vadd.f32 0.0, %v3197
        %v3199 = vpop.f32.mrf.mxu0
        %3200 = vmatprep.mubr.f32.mxu0 %v2960
        %3201 = vmatmul.mubr.f32.gmra.mxu0 %v2959
        %v3202 = vpop.f32.mrf.mxu0
        %v3203 = vadd.f32 0.0, %v3202
        %v3204 = vpop.f32.mrf.mxu0
        %3205 = vmatprep.mubr.f32.mxu0 %v2962
        %3206 = vmatmul.mubr.f32.gmra.mxu0 %v2961
        %v3207 = vpop.f32.mrf.mxu0
        %v3208 = vadd.f32 0.0, %v3207
        %v3209 = vpop.f32.mrf.mxu0
        %3210 = vmatprep.mubr.f32.mxu0 %v2964
        %3211 = vmatmul.mubr.f32.gmra.mxu0 %v2963
        %v3212 = vpop.f32.mrf.mxu0
        %v3213 = vadd.f32 0.0, %v3212
        %v3214 = vpop.f32.mrf.mxu0
        %3215 = vmatprep.mubr.f32.mxu0 %v2966
        %3216 = vmatmul.mubr.f32.gmra.mxu0 %v2965
        %v3217 = vpop.f32.mrf.mxu0
        %v3218 = vadd.f32 0.0, %v3217
        %v3219 = vpop.f32.mrf.mxu0
        %3220 = vmatprep.mubr.f32.mxu0 %v2968
        %3221 = vmatmul.mubr.f32.gmra.mxu0 %v2967
        %v3222 = vpop.f32.mrf.mxu0
        %v3223 = vadd.f32 0.0, %v3222
        %v3224 = vpop.f32.mrf.mxu0
        %3225 = vmatprep.mubr.f32.mxu0 %v2970
        %3226 = vmatmul.mubr.f32.gmra.mxu0 %v2969
        %v3227 = vpop.f32.mrf.mxu0
        %v3228 = vadd.f32 0.0, %v3227
        %v3229 = vpop.f32.mrf.mxu0
        %3230 = vmatprep.mubr.f32.mxu0 %v2972
        %3231 = vmatmul.mubr.f32.gmra.mxu0 %v2971
        %v3232 = vpop.f32.mrf.mxu0
        %v3233 = vadd.f32 0.0, %v3232
        %v3234 = vpop.f32.mrf.mxu0
        %3235 = vmatprep.mubr.f32.mxu0 %v2974
        %3236 = vmatmul.mubr.f32.gmra.mxu0 %v2973
        %v3237 = vpop.f32.mrf.mxu0
        %v3238 = vadd.f32 0.0, %v3237
        %v3239 = vpop.f32.mrf.mxu0
        %3240 = vmatprep.mubr.f32.mxu0 %v2976
        %3241 = vmatmul.mubr.f32.gmra.mxu0 %v2975
        %v3242 = vpop.f32.mrf.mxu0
        %v3243 = vadd.f32 0.0, %v3242
        %v3244 = vpop.f32.mrf.mxu0
        %3245 = vmatprep.mubr.f32.mxu0 %v2978
        %3246 = vmatmul.mubr.f32.gmra.mxu0 %v2977
        %v3247 = vpop.f32.mrf.mxu0
        %v3248 = vadd.f32 0.0, %v3247
        %v3249 = vpop.f32.mrf.mxu0
        %3250 = vmatprep.mubr.f32.mxu0 %v2980
        %3251 = vmatmul.mubr.f32.gmra.mxu0 %v2979
        %v3252 = vpop.f32.mrf.mxu0
        %v3253 = vadd.f32 0.0, %v3252
        %v3254 = vpop.f32.mrf.mxu0
        %3255 = vmatprep.mubr.f32.mxu0 %v2982
        %3256 = vmatmul.mubr.f32.gmra.mxu0 %v2981
        %v3257 = vpop.f32.mrf.mxu0
        %v3258 = vadd.f32 0.0, %v3257
        %v3259 = vpop.f32.mrf.mxu0
        %3260 = vmatprep.mubr.f32.mxu0 %v2984
        %3261 = vmatmul.mubr.f32.gmra.mxu0 %v2983
        %v3262 = vpop.f32.mrf.mxu0
        %v3263 = vadd.f32 0.0, %v3262
        %v3264 = vpop.f32.mrf.mxu0
        %3265 = vmatprep.mubr.f32.mxu0 %v2986
        %3266 = vmatmul.mubr.f32.gmra.mxu0 %v2985
        %v3267 = vpop.f32.mrf.mxu0
        %v3268 = vadd.f32 0.0, %v3267
        %v3269 = vpop.f32.mrf.mxu0
        %3270 = vmatprep.mubr.f32.mxu0 %v2988
        %3271 = vmatmul.mubr.f32.gmra.mxu0 %v2987
        %v3272 = vpop.f32.mrf.mxu0
        %v3273 = vadd.f32 0.0, %v3272
        %v3274 = vpop.f32.mrf.mxu0
        %3275 = vmatprep.mubr.f32.mxu0 %v2990
        %3276 = vmatmul.mubr.f32.gmra.mxu0 %v2989
        %v3277 = vpop.f32.mrf.mxu0
        %v3278 = vadd.f32 0.0, %v3277
        %v3279 = vpop.f32.mrf.mxu0
        %3280 = vmatprep.mubr.f32.mxu0 %v2992
        %3281 = vmatmul.mubr.f32.gmra.mxu0 %v2991
        %v3282 = vpop.f32.mrf.mxu0
        %v3283 = vadd.f32 0.0, %v3282
        %v3284 = vpop.f32.mrf.mxu0
        %3285 = vmatprep.mubr.f32.mxu0 %v2994
        %3286 = vmatmul.mubr.f32.gmra.mxu0 %v2993
        %v3287 = vpop.f32.mrf.mxu0
        %v3288 = vadd.f32 0.0, %v3287
        %v3289 = vpop.f32.mrf.mxu0
        %3290 = vmatprep.mubr.f32.mxu0 %v2996
        %3291 = vmatmul.mubr.f32.gmra.mxu0 %v2995
        %v3292 = vpop.f32.mrf.mxu0
        %v3293 = vadd.f32 0.0, %v3292
        %v3294 = vpop.f32.mrf.mxu0
        %3295 = vmatprep.mubr.f32.mxu0 %v2998
        %3296 = vmatmul.mubr.f32.gmra.mxu0 %v2997
        %v3297 = vpop.f32.mrf.mxu0
        %v3298 = vadd.f32 0.0, %v3297
        %v3299 = vpop.f32.mrf.mxu0
        %3300 = vmatprep.mubr.f32.mxu0 %v3000
        %3301 = vmatmul.mubr.f32.gmra.mxu0 %v2999
        %v3302 = vpop.f32.mrf.mxu0
        %v3303 = vadd.f32 0.0, %v3302
        %v3304 = vpop.f32.mrf.mxu0
        %3305 = vdwg.mxu0
        %v3306 = vmax.f32 %v2666, %v3068
        %v3307 = vmax.f32 %v2671, %v3073
        %v3308 = vmax.f32 %v2676, %v3078
        %v3309 = vmax.f32 %v2681, %v3083
        %v3310 = vmax.f32 %v2686, %v3088
        %v3311 = vmax.f32 %v2691, %v3093
        %v3312 = vmax.f32 %v2696, %v3098
        %v3313 = vmax.f32 %v2701, %v3103
        %v3314 = vmax.f32 %v2706, %v3108
        %v3315 = vmax.f32 %v2711, %v3113
        %v3316 = vmax.f32 %v2716, %v3118
        %v3317 = vmax.f32 %v2721, %v3123
        %v3318 = vmax.f32 %v2726, %v3128
        %v3319 = vmax.f32 %v2731, %v3133
        %v3320 = vmax.f32 %v2736, %v3138
        %v3321 = vmax.f32 %v2741, %v3143
        %v3322 = vmax.f32 %v2746, %v3148
        %v3323 = vmax.f32 %v2751, %v3153
        %v3324 = vmax.f32 %v2756, %v3158
        %v3325 = vmax.f32 %v2761, %v3163
        %v3326 = vmax.f32 %v2766, %v3168
        %v3327 = vmax.f32 %v2771, %v3173
        %v3328 = vmax.f32 %v2776, %v3178
        %v3329 = vmax.f32 %v2781, %v3183
        %v3330 = vmax.f32 %v2786, %v3188
        %v3331 = vmax.f32 %v2791, %v3193
        %v3332 = vmax.f32 %v2796, %v3198
        %v3333 = vmax.f32 %v2801, %v3203
        %v3334 = vmax.f32 %v2806, %v3208
        %v3335 = vmax.f32 %v2811, %v3213
        %v3336 = vmax.f32 %v2816, %v3218
        %v3337 = vmax.f32 %v2821, %v3223
        %v3338 = vmax.f32 %v2826, %v3228
        %v3339 = vmax.f32 %v2831, %v3233
        %v3340 = vmax.f32 %v2836, %v3238
        %v3341 = vmax.f32 %v2841, %v3243
        %v3342 = vmax.f32 %v2846, %v3248
        %v3343 = vmax.f32 %v2851, %v3253
        %v3344 = vmax.f32 %v2856, %v3258
        %v3345 = vmax.f32 %v2861, %v3263
        %v3346 = vmax.f32 %v2866, %v3268
        %v3347 = vmax.f32 %v2871, %v3273
        %v3348 = vmax.f32 %v2876, %v3278
        %v3349 = vmax.f32 %v2881, %v3283
        %v3350 = vmax.f32 %v2886, %v3288
        %v3351 = vmax.f32 %v2891, %v3293
        %v3352 = vmax.f32 %v2896, %v3298
        %v3353 = vmax.f32 %v2901, %v3303
        %v3354 = vld [vmem:[%s5] sm:$0xff]
        %v3355 = vld [vmem:[%s5 + $0x8] sm:$0xff]
        %v3356 = vld [vmem:[%s5 + $0x10] sm:$0xff]
        %v3357 = vld [vmem:[%s5 + $0x18] sm:$0xff]
        %v3358 = vld [vmem:[%s5 + $0x20] sm:$0xff]
        %v3359 = vld [vmem:[%s5 + $0x28] sm:$0xff]
        %v3360 = vld [vmem:[%s5 + $0x30] sm:$0xff]
        %v3361 = vld [vmem:[%s5 + $0x38] sm:$0xff]
        %v3362 = vld [vmem:[%s5 + $0x40] sm:$0xff]
        %v3363 = vld [vmem:[%s5 + $0x48] sm:$0xff]
        %v3364 = vld [vmem:[%s5 + $0x50] sm:$0xff]
        %v3365 = vld [vmem:[%s5 + $0x58] sm:$0xff]
        %v3366 = vld [vmem:[%s5 + $0x60] sm:$0xff]
        %v3367 = vld [vmem:[%s5 + $0x68] sm:$0xff]
        %v3368 = vld [vmem:[%s5 + $0x70] sm:$0xff]
        %v3369 = vld [vmem:[%s5 + $0x78] sm:$0xff]
        %v3370 = vld [vmem:[%s5 + $0x80] sm:$0xff]
        %v3371 = vld [vmem:[%s5 + $0x88] sm:$0xff]
        %v3372 = vld [vmem:[%s5 + $0x90] sm:$0xff]
        %v3373 = vld [vmem:[%s5 + $0x98] sm:$0xff]
        %v3374 = vld [vmem:[%s5 + $0xa0] sm:$0xf]
        %v3375 = vld [vmem:[%s5 + $0xa8] sm:$0xf]
        %s3376 = scalar_lea.vmem %s5, 176
        %v3377 = vld [vmem:[%s3376] sm:$0xff]
        %v3378 = vld [vmem:[%s3376 + $0x8] sm:$0xff]
        %v3379 = vld [vmem:[%s3376 + $0x10] sm:$0xff]
        %v3380 = vld [vmem:[%s3376 + $0x18] sm:$0xff]
        %v3381 = vld [vmem:[%s3376 + $0x20] sm:$0xff]
        %v3382 = vld [vmem:[%s3376 + $0x28] sm:$0xff]
        %v3383 = vld [vmem:[%s3376 + $0x30] sm:$0xff]
        %v3384 = vld [vmem:[%s3376 + $0x38] sm:$0xff]
        %v3385 = vld [vmem:[%s3376 + $0x40] sm:$0xff]
        %v3386 = vld [vmem:[%s3376 + $0x48] sm:$0xff]
        %v3387 = vld [vmem:[%s3376 + $0x50] sm:$0xff]
        %v3388 = vld [vmem:[%s3376 + $0x58] sm:$0xff]
        %v3389 = vld [vmem:[%s3376 + $0x60] sm:$0xff]
        %v3390 = vld [vmem:[%s3376 + $0x68] sm:$0xff]
        %v3391 = vld [vmem:[%s3376 + $0x70] sm:$0xff]
        %v3392 = vld [vmem:[%s3376 + $0x78] sm:$0xff]
        %v3393 = vld [vmem:[%s3376 + $0x80] sm:$0xff]
        %v3394 = vld [vmem:[%s3376 + $0x88] sm:$0xff]
        %v3395 = vld [vmem:[%s3376 + $0x90] sm:$0xff]
        %v3396 = vld [vmem:[%s3376 + $0x98] sm:$0xff]
        %v3397 = vld [vmem:[%s3376 + $0xa0] sm:$0xf]
        %v3398 = vld [vmem:[%s3376 + $0xa8] sm:$0xf]
        %vm3399 = vcmask 687104
        %v3401 = vsel %vm3399, %v3322, 0
        %v3404 = vsel %vm3399, %v3323, 0
        %v3407 = vsel %vm3399, %v3324, 0
        %v3410 = vsel %vm3399, %v3325, 0
        %v3413 = vsel %vm3399, %v3326, 0
        %v3416 = vsel %vm3399, %v3327, 0
        %v3419 = vsel %vm3399, %v3328, 0
        %v3422 = vsel %vm3399, %v3329, 0
        %v3425 = vsel %vm3399, %v3330, 0
        %v3428 = vsel %vm3399, %v3331, 0
        %v3431 = vsel %vm3399, %v3332, 0
        %v3434 = vsel %vm3399, %v3333, 0
        %v3437 = vsel %vm3399, %v3334, 0
        %v3440 = vsel %vm3399, %v3335, 0
        %v3443 = vsel %vm3399, %v3336, 0
        %v3446 = vsel %vm3399, %v3337, 0
        %vm3448 = vcmask 1043456
        %v3450 = vsel %vm3448, %v3397, 0
        %v3453 = vsel %vm3448, %v3398, 0
        %3455 = vmatprep.subr.mxu0 0.0
        %3456 = vmatpush1.msra.mxu0 0.0
        %3457 = vmatprep.subr.mxu0 0.0
        %3458 = vmatpush1.msra.mxu0 0.0
        %3459 = vmatprep.subr.mxu0 0.0
        %3460 = vmatpush1.msra.mxu0 0.0
        %3461 = vmatprep.subr.mxu0 0.0
        %3462 = vmatpush1.msra.mxu0 0.0
        %3463 = vmatprep.subr.mxu0 0.0
        %3464 = vmatpush1.msra.mxu0 0.0
        %3465 = vmatprep.subr.mxu0 %v3453
        %3466 = vmatpush1.msra.mxu0 %v3450
        %3467 = vmatprep.subr.mxu0 %v3396
        %3468 = vmatpush1.msra.mxu0 %v3395
        %3469 = vmatprep.subr.mxu0 %v3394
        %3470 = vmatpush1.msra.mxu0 %v3393
        %3471 = vmatprep.subr.mxu0 %v3392
        %3472 = vmatpush1.msra.mxu0 %v3391
        %3473 = vmatprep.subr.mxu0 %v3390
        %3474 = vmatpush1.msra.mxu0 %v3389
        %3475 = vmatprep.subr.mxu0 %v3388
        %3476 = vmatpush1.msra.mxu0 %v3387
        %3477 = vmatprep.subr.mxu0 %v3386
        %3478 = vmatpush1.msra.mxu0 %v3385
        %3479 = vmatprep.subr.mxu0 %v3384
        %3480 = vmatpush1.msra.mxu0 %v3383
        %3481 = vmatprep.subr.mxu0 %v3382
        %3482 = vmatpush1.msra.mxu0 %v3381
        %3483 = vmatprep.subr.mxu0 %v3380
        %3484 = vmatpush1.msra.mxu0 %v3379
        %3485 = vmatprep.subr.mxu0 %v3378
        %3486 = vmatpush1.msra.mxu0 %v3377
        %3487 = vmatprep.subr.mxu0 0.0
        %3488 = vmatpush2.msra.mxu0 0.0
        %3489 = vmatprep.subr.mxu0 0.0
        %3490 = vmatpush2.msra.mxu0 0.0
        %3491 = vmatprep.subr.mxu0 0.0
        %3492 = vmatpush2.msra.mxu0 0.0
        %3493 = vmatprep.subr.mxu0 0.0
        %3494 = vmatpush2.msra.mxu0 0.0
        %3495 = vmatprep.subr.mxu0 0.0
        %3496 = vmatpush2.msra.mxu0 0.0
        %3497 = vmatprep.subr.mxu0 0.0
        %3498 = vmatpush2.msra.mxu0 0.0
        %3499 = vmatprep.subr.mxu0 0.0
        %3500 = vmatpush2.msra.mxu0 0.0
        %3501 = vmatprep.subr.mxu0 0.0
        %3502 = vmatpush2.msra.mxu0 0.0
        %3503 = vmatprep.subr.mxu0 0.0
        %3504 = vmatpush2.msra.mxu0 0.0
        %3505 = vmatprep.subr.mxu0 0.0
        %3506 = vmatpush2.msra.mxu0 0.0
        %3507 = vmatprep.subr.mxu0 0.0
        %3508 = vmatpush2.msra.mxu0 0.0
        %3509 = vmatprep.subr.mxu0 0.0
        %3510 = vmatpush2.msra.mxu0 0.0
        %3511 = vmatprep.subr.mxu0 0.0
        %3512 = vmatpush2.msra.mxu0 0.0
        %3513 = vmatprep.subr.mxu0 0.0
        %3514 = vmatpush2.msra.mxu0 0.0
        %3515 = vmatprep.subr.mxu0 0.0
        %3516 = vmatpush2.msra.mxu0 0.0
        %3517 = vmatprep.subr.mxu0 0.0
        %3518 = vmatpush2.msra.mxu0 0.0
        %3519 = vmatprep.mubr.f32.mxu0 0.0
        %3520 = vmatmul.mubr.f32.gmra.mxu0 %v3401
        %v3521 = vpop.f32.mrf.mxu0
        %v3522 = vadd.f32 0.0, %v3521
        %v3523 = vpop.f32.mrf.mxu0
        %v3524 = vadd.f32 0.0, %v3523
        %3525 = vmatprep.mubr.f32.mxu0 0.0
        %3526 = vmatmul.mubr.f32.gmra.mxu0 %v3404
        %v3527 = vpop.f32.mrf.mxu0
        %v3528 = vadd.f32 0.0, %v3527
        %v3529 = vpop.f32.mrf.mxu0
        %v3530 = vadd.f32 0.0, %v3529
        %3531 = vmatprep.mubr.f32.mxu0 0.0
        %3532 = vmatmul.mubr.f32.gmra.mxu0 %v3407
        %v3533 = vpop.f32.mrf.mxu0
        %v3534 = vadd.f32 0.0, %v3533
        %v3535 = vpop.f32.mrf.mxu0
        %v3536 = vadd.f32 0.0, %v3535
        %3537 = vmatprep.mubr.f32.mxu0 0.0
        %3538 = vmatmul.mubr.f32.gmra.mxu0 %v3410
        %v3539 = vpop.f32.mrf.mxu0
        %v3540 = vadd.f32 0.0, %v3539
        %v3541 = vpop.f32.mrf.mxu0
        %v3542 = vadd.f32 0.0, %v3541
        %3543 = vmatprep.mubr.f32.mxu0 0.0
        %3544 = vmatmul.mubr.f32.gmra.mxu0 %v3413
        %v3545 = vpop.f32.mrf.mxu0
        %v3546 = vadd.f32 0.0, %v3545
        %v3547 = vpop.f32.mrf.mxu0
        %v3548 = vadd.f32 0.0, %v3547
        %3549 = vmatprep.mubr.f32.mxu0 0.0
        %3550 = vmatmul.mubr.f32.gmra.mxu0 %v3416
        %v3551 = vpop.f32.mrf.mxu0
        %v3552 = vadd.f32 0.0, %v3551
        %v3553 = vpop.f32.mrf.mxu0
        %v3554 = vadd.f32 0.0, %v3553
        %3555 = vmatprep.mubr.f32.mxu0 0.0
        %3556 = vmatmul.mubr.f32.gmra.mxu0 %v3419
        %v3557 = vpop.f32.mrf.mxu0
        %v3558 = vadd.f32 0.0, %v3557
        %v3559 = vpop.f32.mrf.mxu0
        %v3560 = vadd.f32 0.0, %v3559
        %3561 = vmatprep.mubr.f32.mxu0 0.0
        %3562 = vmatmul.mubr.f32.gmra.mxu0 %v3422
        %v3563 = vpop.f32.mrf.mxu0
        %v3564 = vadd.f32 0.0, %v3563
        %v3565 = vpop.f32.mrf.mxu0
        %v3566 = vadd.f32 0.0, %v3565
        %3567 = vmatprep.mubr.f32.mxu0 0.0
        %3568 = vmatmul.mubr.f32.gmra.mxu0 %v3425
        %v3569 = vpop.f32.mrf.mxu0
        %v3570 = vadd.f32 0.0, %v3569
        %v3571 = vpop.f32.mrf.mxu0
        %v3572 = vadd.f32 0.0, %v3571
        %3573 = vmatprep.mubr.f32.mxu0 0.0
        %3574 = vmatmul.mubr.f32.gmra.mxu0 %v3428
        %v3575 = vpop.f32.mrf.mxu0
        %v3576 = vadd.f32 0.0, %v3575
        %v3577 = vpop.f32.mrf.mxu0
        %v3578 = vadd.f32 0.0, %v3577
        %3579 = vmatprep.mubr.f32.mxu0 0.0
        %3580 = vmatmul.mubr.f32.gmra.mxu0 %v3431
        %v3581 = vpop.f32.mrf.mxu0
        %v3582 = vadd.f32 0.0, %v3581
        %v3583 = vpop.f32.mrf.mxu0
        %v3584 = vadd.f32 0.0, %v3583
        %3585 = vmatprep.mubr.f32.mxu0 0.0
        %3586 = vmatmul.mubr.f32.gmra.mxu0 %v3434
        %v3587 = vpop.f32.mrf.mxu0
        %v3588 = vadd.f32 0.0, %v3587
        %v3589 = vpop.f32.mrf.mxu0
        %v3590 = vadd.f32 0.0, %v3589
        %3591 = vmatprep.mubr.f32.mxu0 0.0
        %3592 = vmatmul.mubr.f32.gmra.mxu0 %v3437
        %v3593 = vpop.f32.mrf.mxu0
        %v3594 = vadd.f32 0.0, %v3593
        %v3595 = vpop.f32.mrf.mxu0
        %v3596 = vadd.f32 0.0, %v3595
        %3597 = vmatprep.mubr.f32.mxu0 0.0
        %3598 = vmatmul.mubr.f32.gmra.mxu0 %v3440
        %v3599 = vpop.f32.mrf.mxu0
        %v3600 = vadd.f32 0.0, %v3599
        %v3601 = vpop.f32.mrf.mxu0
        %v3602 = vadd.f32 0.0, %v3601
        %3603 = vmatprep.mubr.f32.mxu0 0.0
        %3604 = vmatmul.mubr.f32.gmra.mxu0 %v3443
        %v3605 = vpop.f32.mrf.mxu0
        %v3606 = vadd.f32 0.0, %v3605
        %v3607 = vpop.f32.mrf.mxu0
        %v3608 = vadd.f32 0.0, %v3607
        %3609 = vmatprep.mubr.f32.mxu0 0.0
        %3610 = vmatmul.mubr.f32.gmra.mxu0 %v3446
        %v3611 = vpop.f32.mrf.mxu0
        %v3612 = vadd.f32 0.0, %v3611
        %v3613 = vpop.f32.mrf.mxu0
        %v3614 = vadd.f32 0.0, %v3613
        %3615 = vdwg.mxu0
        %v3617 = vsel %vm3399, %v3306, 0
        %v3620 = vsel %vm3399, %v3307, 0
        %v3623 = vsel %vm3399, %v3308, 0
        %v3626 = vsel %vm3399, %v3309, 0
        %v3629 = vsel %vm3399, %v3310, 0
        %v3632 = vsel %vm3399, %v3311, 0
        %v3635 = vsel %vm3399, %v3312, 0
        %v3638 = vsel %vm3399, %v3313, 0
        %v3641 = vsel %vm3399, %v3314, 0
        %v3644 = vsel %vm3399, %v3315, 0
        %v3647 = vsel %vm3399, %v3316, 0
        %v3650 = vsel %vm3399, %v3317, 0
        %v3653 = vsel %vm3399, %v3318, 0
        %v3656 = vsel %vm3399, %v3319, 0
        %v3659 = vsel %vm3399, %v3320, 0
        %v3662 = vsel %vm3399, %v3321, 0
        %v3665 = vsel %vm3448, %v3374, 0
        %v3668 = vsel %vm3448, %v3375, 0
        %3670 = vmatprep.subr.mxu0 0.0
        %3671 = vmatpush1.msra.mxu0 0.0
        %3672 = vmatprep.subr.mxu0 0.0
        %3673 = vmatpush1.msra.mxu0 0.0
        %3674 = vmatprep.subr.mxu0 0.0
        %3675 = vmatpush1.msra.mxu0 0.0
        %3676 = vmatprep.subr.mxu0 0.0
        %3677 = vmatpush1.msra.mxu0 0.0
        %3678 = vmatprep.subr.mxu0 0.0
        %3679 = vmatpush1.msra.mxu0 0.0
        %3680 = vmatprep.subr.mxu0 %v3668
        %3681 = vmatpush1.msra.mxu0 %v3665
        %3682 = vmatprep.subr.mxu0 %v3373
        %3683 = vmatpush1.msra.mxu0 %v3372
        %3684 = vmatprep.subr.mxu0 %v3371
        %3685 = vmatpush1.msra.mxu0 %v3370
        %3686 = vmatprep.subr.mxu0 %v3369
        %3687 = vmatpush1.msra.mxu0 %v3368
        %3688 = vmatprep.subr.mxu0 %v3367
        %3689 = vmatpush1.msra.mxu0 %v3366
        %3690 = vmatprep.subr.mxu0 %v3365
        %3691 = vmatpush1.msra.mxu0 %v3364
        %3692 = vmatprep.subr.mxu0 %v3363
        %3693 = vmatpush1.msra.mxu0 %v3362
        %3694 = vmatprep.subr.mxu0 %v3361
        %3695 = vmatpush1.msra.mxu0 %v3360
        %3696 = vmatprep.subr.mxu0 %v3359
        %3697 = vmatpush1.msra.mxu0 %v3358
        %3698 = vmatprep.subr.mxu0 %v3357
        %3699 = vmatpush1.msra.mxu0 %v3356
        %3700 = vmatprep.subr.mxu0 %v3355
        %3701 = vmatpush1.msra.mxu0 %v3354
        %3702 = vmatprep.subr.mxu0 0.0
        %3703 = vmatpush2.msra.mxu0 0.0
        %3704 = vmatprep.subr.mxu0 0.0
        %3705 = vmatpush2.msra.mxu0 0.0
        %3706 = vmatprep.subr.mxu0 0.0
        %3707 = vmatpush2.msra.mxu0 0.0
        %3708 = vmatprep.subr.mxu0 0.0
        %3709 = vmatpush2.msra.mxu0 0.0
        %3710 = vmatprep.subr.mxu0 0.0
        %3711 = vmatpush2.msra.mxu0 0.0
        %3712 = vmatprep.subr.mxu0 0.0
        %3713 = vmatpush2.msra.mxu0 0.0
        %3714 = vmatprep.subr.mxu0 0.0
        %3715 = vmatpush2.msra.mxu0 0.0
        %3716 = vmatprep.subr.mxu0 0.0
        %3717 = vmatpush2.msra.mxu0 0.0
        %3718 = vmatprep.subr.mxu0 0.0
        %3719 = vmatpush2.msra.mxu0 0.0
        %3720 = vmatprep.subr.mxu0 0.0
        %3721 = vmatpush2.msra.mxu0 0.0
        %3722 = vmatprep.subr.mxu0 0.0
        %3723 = vmatpush2.msra.mxu0 0.0
        %3724 = vmatprep.subr.mxu0 0.0
        %3725 = vmatpush2.msra.mxu0 0.0
        %3726 = vmatprep.subr.mxu0 0.0
        %3727 = vmatpush2.msra.mxu0 0.0
        %3728 = vmatprep.subr.mxu0 0.0
        %3729 = vmatpush2.msra.mxu0 0.0
        %3730 = vmatprep.subr.mxu0 0.0
        %3731 = vmatpush2.msra.mxu0 0.0
        %3732 = vmatprep.subr.mxu0 0.0
        %3733 = vmatpush2.msra.mxu0 0.0
        %3734 = vmatprep.mubr.f32.mxu0 0.0
        %3735 = vmatmul.mubr.f32.gmra.mxu0 %v3617
        %v3736 = vpop.f32.mrf.mxu0
        %v3737 = vadd.f32 %v3522, %v3736
        %v3738 = vpop.f32.mrf.mxu0
        %v3739 = vadd.f32 %v3524, %v3738
        %3740 = vmatprep.mubr.f32.mxu0 0.0
        %3741 = vmatmul.mubr.f32.gmra.mxu0 %v3620
        %v3742 = vpop.f32.mrf.mxu0
        %v3743 = vadd.f32 %v3528, %v3742
        %v3744 = vpop.f32.mrf.mxu0
        %v3745 = vadd.f32 %v3530, %v3744
        %3746 = vmatprep.mubr.f32.mxu0 0.0
        %3747 = vmatmul.mubr.f32.gmra.mxu0 %v3623
        %v3748 = vpop.f32.mrf.mxu0
        %v3749 = vadd.f32 %v3534, %v3748
        %v3750 = vpop.f32.mrf.mxu0
        %v3751 = vadd.f32 %v3536, %v3750
        %3752 = vmatprep.mubr.f32.mxu0 0.0
        %3753 = vmatmul.mubr.f32.gmra.mxu0 %v3626
        %v3754 = vpop.f32.mrf.mxu0
        %v3755 = vadd.f32 %v3540, %v3754
        %v3756 = vpop.f32.mrf.mxu0
        %v3757 = vadd.f32 %v3542, %v3756
        %3758 = vmatprep.mubr.f32.mxu0 0.0
        %3759 = vmatmul.mubr.f32.gmra.mxu0 %v3629
        %v3760 = vpop.f32.mrf.mxu0
        %v3761 = vadd.f32 %v3546, %v3760
        %v3762 = vpop.f32.mrf.mxu0
        %v3763 = vadd.f32 %v3548, %v3762
        %3764 = vmatprep.mubr.f32.mxu0 0.0
        %3765 = vmatmul.mubr.f32.gmra.mxu0 %v3632
        %v3766 = vpop.f32.mrf.mxu0
        %v3767 = vadd.f32 %v3552, %v3766
        %v3768 = vpop.f32.mrf.mxu0
        %v3769 = vadd.f32 %v3554, %v3768
        %3770 = vmatprep.mubr.f32.mxu0 0.0
        %3771 = vmatmul.mubr.f32.gmra.mxu0 %v3635
        %v3772 = vpop.f32.mrf.mxu0
        %v3773 = vadd.f32 %v3558, %v3772
        %v3774 = vpop.f32.mrf.mxu0
        %v3775 = vadd.f32 %v3560, %v3774
        %3776 = vmatprep.mubr.f32.mxu0 0.0
        %3777 = vmatmul.mubr.f32.gmra.mxu0 %v3638
        %v3778 = vpop.f32.mrf.mxu0
        %v3779 = vadd.f32 %v3564, %v3778
        %v3780 = vpop.f32.mrf.mxu0
        %v3781 = vadd.f32 %v3566, %v3780
        %3782 = vmatprep.mubr.f32.mxu0 0.0
        %3783 = vmatmul.mubr.f32.gmra.mxu0 %v3641
        %v3784 = vpop.f32.mrf.mxu0
        %v3785 = vadd.f32 %v3570, %v3784
        %v3786 = vpop.f32.mrf.mxu0
        %v3787 = vadd.f32 %v3572, %v3786
        %3788 = vmatprep.mubr.f32.mxu0 0.0
        %3789 = vmatmul.mubr.f32.gmra.mxu0 %v3644
        %v3790 = vpop.f32.mrf.mxu0
        %v3791 = vadd.f32 %v3576, %v3790
        %v3792 = vpop.f32.mrf.mxu0
        %v3793 = vadd.f32 %v3578, %v3792
        %3794 = vmatprep.mubr.f32.mxu0 0.0
        %3795 = vmatmul.mubr.f32.gmra.mxu0 %v3647
        %v3796 = vpop.f32.mrf.mxu0
        %v3797 = vadd.f32 %v3582, %v3796
        %v3798 = vpop.f32.mrf.mxu0
        %v3799 = vadd.f32 %v3584, %v3798
        %3800 = vmatprep.mubr.f32.mxu0 0.0
        %3801 = vmatmul.mubr.f32.gmra.mxu0 %v3650
        %v3802 = vpop.f32.mrf.mxu0
        %v3803 = vadd.f32 %v3588, %v3802
        %v3804 = vpop.f32.mrf.mxu0
        %v3805 = vadd.f32 %v3590, %v3804
        %3806 = vmatprep.mubr.f32.mxu0 0.0
        %3807 = vmatmul.mubr.f32.gmra.mxu0 %v3653
        %v3808 = vpop.f32.mrf.mxu0
        %v3809 = vadd.f32 %v3594, %v3808
        %v3810 = vpop.f32.mrf.mxu0
        %v3811 = vadd.f32 %v3596, %v3810
        %3812 = vmatprep.mubr.f32.mxu0 0.0
        %3813 = vmatmul.mubr.f32.gmra.mxu0 %v3656
        %v3814 = vpop.f32.mrf.mxu0
        %v3815 = vadd.f32 %v3600, %v3814
        %v3816 = vpop.f32.mrf.mxu0
        %v3817 = vadd.f32 %v3602, %v3816
        %3818 = vmatprep.mubr.f32.mxu0 0.0
        %3819 = vmatmul.mubr.f32.gmra.mxu0 %v3659
        %v3820 = vpop.f32.mrf.mxu0
        %v3821 = vadd.f32 %v3606, %v3820
        %v3822 = vpop.f32.mrf.mxu0
        %v3823 = vadd.f32 %v3608, %v3822
        %3824 = vmatprep.mubr.f32.mxu0 0.0
        %3825 = vmatmul.mubr.f32.gmra.mxu0 %v3662
        %v3826 = vpop.f32.mrf.mxu0
        %v3827 = vadd.f32 %v3612, %v3826
        %v3828 = vpop.f32.mrf.mxu0
        %v3829 = vadd.f32 %v3614, %v3828
        %3830 = vdwg.mxu0
        %s3831 = scalar_lea.vmem %s5, 352
        %v3832 = vld [vmem:[%s3831] sm:$0xff]
        %v3833 = vld [vmem:[%s3831 + $0x8] sm:$0xff]
        %v3834 = vld [vmem:[%s3831 + $0x10] sm:$0xff]
        %v3835 = vld [vmem:[%s3831 + $0x18] sm:$0xff]
        %v3836 = vld [vmem:[%s3831 + $0x20] sm:$0xff]
        %v3837 = vld [vmem:[%s3831 + $0x28] sm:$0xff]
        %v3838 = vld [vmem:[%s3831 + $0x30] sm:$0xff]
        %v3839 = vld [vmem:[%s3831 + $0x38] sm:$0xff]
        %v3840 = vld [vmem:[%s3831 + $0x40] sm:$0xff]
        %v3841 = vld [vmem:[%s3831 + $0x48] sm:$0xff]
        %v3842 = vld [vmem:[%s3831 + $0x50] sm:$0xff]
        %v3843 = vld [vmem:[%s3831 + $0x58] sm:$0xff]
        %v3844 = vld [vmem:[%s3831 + $0x60] sm:$0xff]
        %v3845 = vld [vmem:[%s3831 + $0x68] sm:$0xff]
        %v3846 = vld [vmem:[%s3831 + $0x70] sm:$0xff]
        %v3847 = vld [vmem:[%s3831 + $0x78] sm:$0xff]
        %v3848 = vld [vmem:[%s3831 + $0x80] sm:$0xff]
        %v3849 = vld [vmem:[%s3831 + $0x88] sm:$0xff]
        %v3850 = vld [vmem:[%s3831 + $0x90] sm:$0xff]
        %v3851 = vld [vmem:[%s3831 + $0x98] sm:$0xff]
        %v3852 = vld [vmem:[%s3831 + $0xa0] sm:$0xf]
        %v3853 = vld [vmem:[%s3831 + $0xa8] sm:$0xf]
        %v3855 = vsel %vm3399, %v3338, 0
        %v3858 = vsel %vm3399, %v3339, 0
        %v3861 = vsel %vm3399, %v3340, 0
        %v3864 = vsel %vm3399, %v3341, 0
        %v3867 = vsel %vm3399, %v3342, 0
        %v3870 = vsel %vm3399, %v3343, 0
        %v3873 = vsel %vm3399, %v3344, 0
        %v3876 = vsel %vm3399, %v3345, 0
        %v3879 = vsel %vm3399, %v3346, 0
        %v3882 = vsel %vm3399, %v3347, 0
        %v3885 = vsel %vm3399, %v3348, 0
        %v3888 = vsel %vm3399, %v3349, 0
        %v3891 = vsel %vm3399, %v3350, 0
        %v3894 = vsel %vm3399, %v3351, 0
        %v3897 = vsel %vm3399, %v3352, 0
        %v3900 = vsel %vm3399, %v3353, 0
        %v3903 = vsel %vm3448, %v3852, 0
        %v3906 = vsel %vm3448, %v3853, 0
        %3908 = vmatprep.subr.mxu0 0.0
        %3909 = vmatpush1.msra.mxu0 0.0
        %3910 = vmatprep.subr.mxu0 0.0
        %3911 = vmatpush1.msra.mxu0 0.0
        %3912 = vmatprep.subr.mxu0 0.0
        %3913 = vmatpush1.msra.mxu0 0.0
        %3914 = vmatprep.subr.mxu0 0.0
        %3915 = vmatpush1.msra.mxu0 0.0
        %3916 = vmatprep.subr.mxu0 0.0
        %3917 = vmatpush1.msra.mxu0 0.0
        %3918 = vmatprep.subr.mxu0 %v3906
        %3919 = vmatpush1.msra.mxu0 %v3903
        %3920 = vmatprep.subr.mxu0 %v3851
        %3921 = vmatpush1.msra.mxu0 %v3850
        %3922 = vmatprep.subr.mxu0 %v3849
        %3923 = vmatpush1.msra.mxu0 %v3848
        %3924 = vmatprep.subr.mxu0 %v3847
        %3925 = vmatpush1.msra.mxu0 %v3846
        %3926 = vmatprep.subr.mxu0 %v3845
        %3927 = vmatpush1.msra.mxu0 %v3844
        %3928 = vmatprep.subr.mxu0 %v3843
        %3929 = vmatpush1.msra.mxu0 %v3842
        %3930 = vmatprep.subr.mxu0 %v3841
        %3931 = vmatpush1.msra.mxu0 %v3840
        %3932 = vmatprep.subr.mxu0 %v3839
        %3933 = vmatpush1.msra.mxu0 %v3838
        %3934 = vmatprep.subr.mxu0 %v3837
        %3935 = vmatpush1.msra.mxu0 %v3836
        %3936 = vmatprep.subr.mxu0 %v3835
        %3937 = vmatpush1.msra.mxu0 %v3834
        %3938 = vmatprep.subr.mxu0 %v3833
        %3939 = vmatpush1.msra.mxu0 %v3832
        %3940 = vmatprep.subr.mxu0 0.0
        %3941 = vmatpush2.msra.mxu0 0.0
        %3942 = vmatprep.subr.mxu0 0.0
        %3943 = vmatpush2.msra.mxu0 0.0
        %3944 = vmatprep.subr.mxu0 0.0
        %3945 = vmatpush2.msra.mxu0 0.0
        %3946 = vmatprep.subr.mxu0 0.0
        %3947 = vmatpush2.msra.mxu0 0.0
        %3948 = vmatprep.subr.mxu0 0.0
        %3949 = vmatpush2.msra.mxu0 0.0
        %3950 = vmatprep.subr.mxu0 0.0
        %3951 = vmatpush2.msra.mxu0 0.0
        %3952 = vmatprep.subr.mxu0 0.0
        %3953 = vmatpush2.msra.mxu0 0.0
        %3954 = vmatprep.subr.mxu0 0.0
        %3955 = vmatpush2.msra.mxu0 0.0
        %3956 = vmatprep.subr.mxu0 0.0
        %3957 = vmatpush2.msra.mxu0 0.0
        %3958 = vmatprep.subr.mxu0 0.0
        %3959 = vmatpush2.msra.mxu0 0.0
        %3960 = vmatprep.subr.mxu0 0.0
        %3961 = vmatpush2.msra.mxu0 0.0
        %3962 = vmatprep.subr.mxu0 0.0
        %3963 = vmatpush2.msra.mxu0 0.0
        %3964 = vmatprep.subr.mxu0 0.0
        %3965 = vmatpush2.msra.mxu0 0.0
        %3966 = vmatprep.subr.mxu0 0.0
        %3967 = vmatpush2.msra.mxu0 0.0
        %3968 = vmatprep.subr.mxu0 0.0
        %3969 = vmatpush2.msra.mxu0 0.0
        %3970 = vmatprep.subr.mxu0 0.0
        %3971 = vmatpush2.msra.mxu0 0.0
        %3972 = vmatprep.mubr.f32.mxu0 0.0
        %3973 = vmatmul.mubr.f32.gmra.mxu0 %v3855
        %v3974 = vpop.f32.mrf.mxu0
        %v3975 = vadd.f32 0.0, %v3974
        %v3976 = vpop.f32.mrf.mxu0
        %v3977 = vadd.f32 0.0, %v3976
        %3978 = vmatprep.mubr.f32.mxu0 0.0
        %3979 = vmatmul.mubr.f32.gmra.mxu0 %v3858
        %v3980 = vpop.f32.mrf.mxu0
        %v3981 = vadd.f32 0.0, %v3980
        %v3982 = vpop.f32.mrf.mxu0
        %v3983 = vadd.f32 0.0, %v3982
        %3984 = vmatprep.mubr.f32.mxu0 0.0
        %3985 = vmatmul.mubr.f32.gmra.mxu0 %v3861
        %v3986 = vpop.f32.mrf.mxu0
        %v3987 = vadd.f32 0.0, %v3986
        %v3988 = vpop.f32.mrf.mxu0
        %v3989 = vadd.f32 0.0, %v3988
        %3990 = vmatprep.mubr.f32.mxu0 0.0
        %3991 = vmatmul.mubr.f32.gmra.mxu0 %v3864
        %v3992 = vpop.f32.mrf.mxu0
        %v3993 = vadd.f32 0.0, %v3992
        %v3994 = vpop.f32.mrf.mxu0
        %v3995 = vadd.f32 0.0, %v3994
        %3996 = vmatprep.mubr.f32.mxu0 0.0
        %3997 = vmatmul.mubr.f32.gmra.mxu0 %v3867
        %v3998 = vpop.f32.mrf.mxu0
        %v3999 = vadd.f32 0.0, %v3998
        %v4000 = vpop.f32.mrf.mxu0
        %v4001 = vadd.f32 0.0, %v4000
        %4002 = vmatprep.mubr.f32.mxu0 0.0
        %4003 = vmatmul.mubr.f32.gmra.mxu0 %v3870
        %v4004 = vpop.f32.mrf.mxu0
        %v4005 = vadd.f32 0.0, %v4004
        %v4006 = vpop.f32.mrf.mxu0
        %v4007 = vadd.f32 0.0, %v4006
        %4008 = vmatprep.mubr.f32.mxu0 0.0
        %4009 = vmatmul.mubr.f32.gmra.mxu0 %v3873
        %v4010 = vpop.f32.mrf.mxu0
        %v4011 = vadd.f32 0.0, %v4010
        %v4012 = vpop.f32.mrf.mxu0
        %v4013 = vadd.f32 0.0, %v4012
        %4014 = vmatprep.mubr.f32.mxu0 0.0
        %4015 = vmatmul.mubr.f32.gmra.mxu0 %v3876
        %v4016 = vpop.f32.mrf.mxu0
        %v4017 = vadd.f32 0.0, %v4016
        %v4018 = vpop.f32.mrf.mxu0
        %v4019 = vadd.f32 0.0, %v4018
        %4020 = vmatprep.mubr.f32.mxu0 0.0
        %4021 = vmatmul.mubr.f32.gmra.mxu0 %v3879
        %v4022 = vpop.f32.mrf.mxu0
        %v4023 = vadd.f32 0.0, %v4022
        %v4024 = vpop.f32.mrf.mxu0
        %v4025 = vadd.f32 0.0, %v4024
        %4026 = vmatprep.mubr.f32.mxu0 0.0
        %4027 = vmatmul.mubr.f32.gmra.mxu0 %v3882
        %v4028 = vpop.f32.mrf.mxu0
        %v4029 = vadd.f32 0.0, %v4028
        %v4030 = vpop.f32.mrf.mxu0
        %v4031 = vadd.f32 0.0, %v4030
        %4032 = vmatprep.mubr.f32.mxu0 0.0
        %4033 = vmatmul.mubr.f32.gmra.mxu0 %v3885
        %v4034 = vpop.f32.mrf.mxu0
        %v4035 = vadd.f32 0.0, %v4034
        %v4036 = vpop.f32.mrf.mxu0
        %v4037 = vadd.f32 0.0, %v4036
        %4038 = vmatprep.mubr.f32.mxu0 0.0
        %4039 = vmatmul.mubr.f32.gmra.mxu0 %v3888
        %v4040 = vpop.f32.mrf.mxu0
        %v4041 = vadd.f32 0.0, %v4040
        %v4042 = vpop.f32.mrf.mxu0
        %v4043 = vadd.f32 0.0, %v4042
        %4044 = vmatprep.mubr.f32.mxu0 0.0
        %4045 = vmatmul.mubr.f32.gmra.mxu0 %v3891
        %v4046 = vpop.f32.mrf.mxu0
        %v4047 = vadd.f32 0.0, %v4046
        %v4048 = vpop.f32.mrf.mxu0
        %v4049 = vadd.f32 0.0, %v4048
        %4050 = vmatprep.mubr.f32.mxu0 0.0
        %4051 = vmatmul.mubr.f32.gmra.mxu0 %v3894
        %v4052 = vpop.f32.mrf.mxu0
        %v4053 = vadd.f32 0.0, %v4052
        %v4054 = vpop.f32.mrf.mxu0
        %v4055 = vadd.f32 0.0, %v4054
        %4056 = vmatprep.mubr.f32.mxu0 0.0
        %4057 = vmatmul.mubr.f32.gmra.mxu0 %v3897
        %v4058 = vpop.f32.mrf.mxu0
        %v4059 = vadd.f32 0.0, %v4058
        %v4060 = vpop.f32.mrf.mxu0
        %v4061 = vadd.f32 0.0, %v4060
        %4062 = vmatprep.mubr.f32.mxu0 0.0
        %4063 = vmatmul.mubr.f32.gmra.mxu0 %v3900
        %v4064 = vpop.f32.mrf.mxu0
        %v4065 = vadd.f32 0.0, %v4064
        %v4066 = vpop.f32.mrf.mxu0
        %v4067 = vadd.f32 0.0, %v4066
        %4068 = vdwg.mxu0
        %v4069 = vadd.f32 %v3737, %v3975
        %v4070 = vadd.f32 %v3739, %v3977
        %v4071 = vadd.f32 %v3743, %v3981
        %v4072 = vadd.f32 %v3745, %v3983
        %v4073 = vadd.f32 %v3749, %v3987
        %v4074 = vadd.f32 %v3751, %v3989
        %v4075 = vadd.f32 %v3755, %v3993
        %v4076 = vadd.f32 %v3757, %v3995
        %v4077 = vadd.f32 %v3761, %v3999
        %v4078 = vadd.f32 %v3763, %v4001
        %v4079 = vadd.f32 %v3767, %v4005
        %v4080 = vadd.f32 %v3769, %v4007
        %v4081 = vadd.f32 %v3773, %v4011
        %v4082 = vadd.f32 %v3775, %v4013
        %v4083 = vadd.f32 %v3779, %v4017
        %v4084 = vadd.f32 %v3781, %v4019
        %v4085 = vadd.f32 %v3785, %v4023
        %v4086 = vadd.f32 %v3787, %v4025
        %v4087 = vadd.f32 %v3791, %v4029
        %v4088 = vadd.f32 %v3793, %v4031
        %v4089 = vadd.f32 %v3797, %v4035
        %v4090 = vadd.f32 %v3799, %v4037
        %v4091 = vadd.f32 %v3803, %v4041
        %v4092 = vadd.f32 %v3805, %v4043
        %v4093 = vadd.f32 %v3809, %v4047
        %v4094 = vadd.f32 %v3811, %v4049
        %v4095 = vadd.f32 %v3815, %v4053
        %v4096 = vadd.f32 %v3817, %v4055
        %v4097 = vadd.f32 %v3821, %v4059
        %v4098 = vadd.f32 %v3823, %v4061
        %v4099 = vadd.f32 %v3827, %v4065
        %v4100 = vadd.f32 %v3829, %v4067
        %v4101 = vld [vmem:[%s6] sm:$0x3]
        %v4103 = vlaneseq
        %v4104 = vshrl.u32 %v4103, 7
        %v4105 = vsub.s32 0, %v4104
        %v4106 = vrot.slane %v4101, %v4105
        %v4107 = vlaneseq
        %v4108 = vshrl.u32 %v4107, 7
        %v4109 = vsub.s32 1, %v4108
        %v4110 = vrot.slane %v4101, %v4109
        %v4113 = vadd.f32 %v4069, %v4106
        %v4114 = vadd.f32 %v4070, %v4110
        %v4115 = vadd.f32 %v4071, %v4106
        %v4116 = vadd.f32 %v4072, %v4110
        %v4117 = vadd.f32 %v4073, %v4106
        %v4118 = vadd.f32 %v4074, %v4110
        %v4119 = vadd.f32 %v4075, %v4106
        %v4120 = vadd.f32 %v4076, %v4110
        %v4121 = vadd.f32 %v4077, %v4106
        %v4122 = vadd.f32 %v4078, %v4110
        %v4123 = vadd.f32 %v4079, %v4106
        %v4124 = vadd.f32 %v4080, %v4110
        %v4125 = vadd.f32 %v4081, %v4106
        %v4126 = vadd.f32 %v4082, %v4110
        %v4127 = vadd.f32 %v4083, %v4106
        %v4128 = vadd.f32 %v4084, %v4110
        %v4129 = vadd.f32 %v4085, %v4106
        %v4130 = vadd.f32 %v4086, %v4110
        %v4131 = vadd.f32 %v4087, %v4106
        %v4132 = vadd.f32 %v4088, %v4110
        %v4133 = vadd.f32 %v4089, %v4106
        %v4134 = vadd.f32 %v4090, %v4110
        %v4135 = vadd.f32 %v4091, %v4106
        %v4136 = vadd.f32 %v4092, %v4110
        %v4137 = vadd.f32 %v4093, %v4106
        %v4138 = vadd.f32 %v4094, %v4110
        %v4139 = vadd.f32 %v4095, %v4106
        %v4140 = vadd.f32 %v4096, %v4110
        %v4141 = vadd.f32 %v4097, %v4106
        %v4142 = vadd.f32 %v4098, %v4110
        %v4143 = vadd.f32 %v4099, %v4106
        %v4144 = vadd.f32 %v4100, %v4110
        %v4145 = vmax.f32 %v4113, 0.0
        %v4146 = vmax.f32 %v4114, 0.0
        %v4147 = vmax.f32 %v4115, 0.0
        %v4148 = vmax.f32 %v4116, 0.0
        %v4149 = vmax.f32 %v4117, 0.0
        %v4150 = vmax.f32 %v4118, 0.0
        %v4151 = vmax.f32 %v4119, 0.0
        %v4152 = vmax.f32 %v4120, 0.0
        %v4153 = vmax.f32 %v4121, 0.0
        %v4154 = vmax.f32 %v4122, 0.0
        %v4155 = vmax.f32 %v4123, 0.0
        %v4156 = vmax.f32 %v4124, 0.0
        %v4157 = vmax.f32 %v4125, 0.0
        %v4158 = vmax.f32 %v4126, 0.0
        %v4159 = vmax.f32 %v4127, 0.0
        %v4160 = vmax.f32 %v4128, 0.0
        %v4161 = vmax.f32 %v4129, 0.0
        %v4162 = vmax.f32 %v4130, 0.0
        %v4163 = vmax.f32 %v4131, 0.0
        %v4164 = vmax.f32 %v4132, 0.0
        %v4165 = vmax.f32 %v4133, 0.0
        %v4166 = vmax.f32 %v4134, 0.0
        %v4167 = vmax.f32 %v4135, 0.0
        %v4168 = vmax.f32 %v4136, 0.0
        %v4169 = vmax.f32 %v4137, 0.0
        %v4170 = vmax.f32 %v4138, 0.0
        %v4171 = vmax.f32 %v4139, 0.0
        %v4172 = vmax.f32 %v4140, 0.0
        %v4173 = vmax.f32 %v4141, 0.0
        %v4174 = vmax.f32 %v4142, 0.0
        %v4175 = vmax.f32 %v4143, 0.0
        %v4176 = vmax.f32 %v4144, 0.0
        %v4177 = vld [vmem:[%s7] sm:$0xff]
        %v4178 = vld [vmem:[%s7 + $0x8] sm:$0xff]
        %v4179 = vld [vmem:[%s7 + $0x10] sm:$0xff]
        %v4180 = vld [vmem:[%s7 + $0x18] sm:$0xff]
        %v4181 = vld [vmem:[%s7 + $0x20] sm:$0xff]
        %v4182 = vld [vmem:[%s7 + $0x28] sm:$0xff]
        %v4183 = vld [vmem:[%s7 + $0x30] sm:$0xff]
        %v4184 = vld [vmem:[%s7 + $0x38] sm:$0xff]
        %v4185 = vld [vmem:[%s7 + $0x40] sm:$0xff]
        %v4186 = vld [vmem:[%s7 + $0x48] sm:$0xff]
        %v4187 = vld [vmem:[%s7 + $0x50] sm:$0xff]
        %v4188 = vld [vmem:[%s7 + $0x58] sm:$0xff]
        %v4189 = vld [vmem:[%s7 + $0x60] sm:$0xff]
        %v4190 = vld [vmem:[%s7 + $0x68] sm:$0xff]
        %v4191 = vld [vmem:[%s7 + $0x70] sm:$0xff]
        %v4192 = vld [vmem:[%s7 + $0x78] sm:$0xff]
        %v4193 = vld [vmem:[%s7 + $0x80] sm:$0xff]
        %v4194 = vld [vmem:[%s7 + $0x88] sm:$0xff]
        %v4195 = vld [vmem:[%s7 + $0x90] sm:$0xff]
        %v4196 = vld [vmem:[%s7 + $0x98] sm:$0xff]
        %v4197 = vld [vmem:[%s7 + $0xa0] sm:$0xff]
        %v4199 = vsel %vm1902, %v4146, 0
        %v4202 = vsel %vm1902, %v4148, 0
        %v4205 = vsel %vm1902, %v4150, 0
        %v4208 = vsel %vm1902, %v4152, 0
        %v4211 = vsel %vm1902, %v4154, 0
        %v4214 = vsel %vm1902, %v4156, 0
        %v4217 = vsel %vm1902, %v4158, 0
        %v4220 = vsel %vm1902, %v4160, 0
        %v4223 = vsel %vm1902, %v4162, 0
        %v4226 = vsel %vm1902, %v4164, 0
        %v4229 = vsel %vm1902, %v4166, 0
        %v4232 = vsel %vm1902, %v4168, 0
        %v4235 = vsel %vm1902, %v4170, 0
        %v4238 = vsel %vm1902, %v4172, 0
        %v4241 = vsel %vm1902, %v4174, 0
        %v4244 = vsel %vm1902, %v4176, 0
        %4246 = vmatprep.subr.mxu0 0.0
        %4247 = vmatpush1.msra.mxu0 %v4192
        %4248 = vmatprep.subr.mxu0 0.0
        %4249 = vmatpush1.msra.mxu0 %v4191
        %4250 = vmatprep.subr.mxu0 0.0
        %4251 = vmatpush1.msra.mxu0 %v4190
        %4252 = vmatprep.subr.mxu0 0.0
        %4253 = vmatpush1.msra.mxu0 %v4189
        %4254 = vmatprep.subr.mxu0 0.0
        %4255 = vmatpush1.msra.mxu0 %v4188
        %4256 = vmatprep.subr.mxu0 0.0
        %4257 = vmatpush1.msra.mxu0 %v4187
        %4258 = vmatprep.subr.mxu0 0.0
        %4259 = vmatpush1.msra.mxu0 %v4186
        %4260 = vmatprep.subr.mxu0 0.0
        %4261 = vmatpush1.msra.mxu0 %v4185
        %4262 = vmatprep.subr.mxu0 0.0
        %4263 = vmatpush1.msra.mxu0 %v4184
        %4264 = vmatprep.subr.mxu0 0.0
        %4265 = vmatpush1.msra.mxu0 %v4183
        %4266 = vmatprep.subr.mxu0 0.0
        %4267 = vmatpush1.msra.mxu0 %v4182
        %4268 = vmatprep.subr.mxu0 0.0
        %4269 = vmatpush1.msra.mxu0 %v4181
        %4270 = vmatprep.subr.mxu0 0.0
        %4271 = vmatpush1.msra.mxu0 %v4180
        %4272 = vmatprep.subr.mxu0 0.0
        %4273 = vmatpush1.msra.mxu0 %v4179
        %4274 = vmatprep.subr.mxu0 0.0
        %4275 = vmatpush1.msra.mxu0 %v4178
        %4276 = vmatprep.subr.mxu0 0.0
        %4277 = vmatpush1.msra.mxu0 %v4177
        %4278 = vmatprep.subr.mxu0 0.0
        %4279 = vmatpush2.msra.mxu0 0.0
        %4280 = vmatprep.subr.mxu0 0.0
        %4281 = vmatpush2.msra.mxu0 0.0
        %4282 = vmatprep.subr.mxu0 0.0
        %4283 = vmatpush2.msra.mxu0 0.0
        %4284 = vmatprep.subr.mxu0 0.0
        %4285 = vmatpush2.msra.mxu0 0.0
        %4286 = vmatprep.subr.mxu0 0.0
        %4287 = vmatpush2.msra.mxu0 0.0
        %4288 = vmatprep.subr.mxu0 0.0
        %4289 = vmatpush2.msra.mxu0 0.0
        %4290 = vmatprep.subr.mxu0 0.0
        %4291 = vmatpush2.msra.mxu0 0.0
        %4292 = vmatprep.subr.mxu0 0.0
        %4293 = vmatpush2.msra.mxu0 0.0
        %4294 = vmatprep.subr.mxu0 0.0
        %4295 = vmatpush2.msra.mxu0 0.0
        %4296 = vmatprep.subr.mxu0 0.0
        %4297 = vmatpush2.msra.mxu0 0.0
        %4298 = vmatprep.subr.mxu0 0.0
        %4299 = vmatpush2.msra.mxu0 0.0
        %4300 = vmatprep.subr.mxu0 0.0
        %4301 = vmatpush2.msra.mxu0 %v4197
        %4302 = vmatprep.subr.mxu0 0.0
        %4303 = vmatpush2.msra.mxu0 %v4196
        %4304 = vmatprep.subr.mxu0 0.0
        %4305 = vmatpush2.msra.mxu0 %v4195
        %4306 = vmatprep.subr.mxu0 0.0
        %4307 = vmatpush2.msra.mxu0 %v4194
        %4308 = vmatprep.subr.mxu0 0.0
        %4309 = vmatpush2.msra.mxu0 %v4193
        %4310 = vmatprep.mubr.f32.mxu0 %v4199
        %4311 = vmatmul.mubr.f32.gmra.mxu0 %v4145
        %v4312 = vpop.f32.mrf.mxu0
        %v4313 = vadd.f32 0.0, %v4312
        %v4314 = vpop.f32.mrf.mxu0
        %4315 = vmatprep.mubr.f32.mxu0 %v4202
        %4316 = vmatmul.mubr.f32.gmra.mxu0 %v4147
        %v4317 = vpop.f32.mrf.mxu0
        %v4318 = vadd.f32 0.0, %v4317
        %v4319 = vpop.f32.mrf.mxu0
        %4320 = vmatprep.mubr.f32.mxu0 %v4205
        %4321 = vmatmul.mubr.f32.gmra.mxu0 %v4149
        %v4322 = vpop.f32.mrf.mxu0
        %v4323 = vadd.f32 0.0, %v4322
        %v4324 = vpop.f32.mrf.mxu0
        %4325 = vmatprep.mubr.f32.mxu0 %v4208
        %4326 = vmatmul.mubr.f32.gmra.mxu0 %v4151
        %v4327 = vpop.f32.mrf.mxu0
        %v4328 = vadd.f32 0.0, %v4327
        %v4329 = vpop.f32.mrf.mxu0
        %4330 = vmatprep.mubr.f32.mxu0 %v4211
        %4331 = vmatmul.mubr.f32.gmra.mxu0 %v4153
        %v4332 = vpop.f32.mrf.mxu0
        %v4333 = vadd.f32 0.0, %v4332
        %v4334 = vpop.f32.mrf.mxu0
        %4335 = vmatprep.mubr.f32.mxu0 %v4214
        %4336 = vmatmul.mubr.f32.gmra.mxu0 %v4155
        %v4337 = vpop.f32.mrf.mxu0
        %v4338 = vadd.f32 0.0, %v4337
        %v4339 = vpop.f32.mrf.mxu0
        %4340 = vmatprep.mubr.f32.mxu0 %v4217
        %4341 = vmatmul.mubr.f32.gmra.mxu0 %v4157
        %v4342 = vpop.f32.mrf.mxu0
        %v4343 = vadd.f32 0.0, %v4342
        %v4344 = vpop.f32.mrf.mxu0
        %4345 = vmatprep.mubr.f32.mxu0 %v4220
        %4346 = vmatmul.mubr.f32.gmra.mxu0 %v4159
        %v4347 = vpop.f32.mrf.mxu0
        %v4348 = vadd.f32 0.0, %v4347
        %v4349 = vpop.f32.mrf.mxu0
        %4350 = vmatprep.mubr.f32.mxu0 %v4223
        %4351 = vmatmul.mubr.f32.gmra.mxu0 %v4161
        %v4352 = vpop.f32.mrf.mxu0
        %v4353 = vadd.f32 0.0, %v4352
        %v4354 = vpop.f32.mrf.mxu0
        %4355 = vmatprep.mubr.f32.mxu0 %v4226
        %4356 = vmatmul.mubr.f32.gmra.mxu0 %v4163
        %v4357 = vpop.f32.mrf.mxu0
        %v4358 = vadd.f32 0.0, %v4357
        %v4359 = vpop.f32.mrf.mxu0
        %4360 = vmatprep.mubr.f32.mxu0 %v4229
        %4361 = vmatmul.mubr.f32.gmra.mxu0 %v4165
        %v4362 = vpop.f32.mrf.mxu0
        %v4363 = vadd.f32 0.0, %v4362
        %v4364 = vpop.f32.mrf.mxu0
        %4365 = vmatprep.mubr.f32.mxu0 %v4232
        %4366 = vmatmul.mubr.f32.gmra.mxu0 %v4167
        %v4367 = vpop.f32.mrf.mxu0
        %v4368 = vadd.f32 0.0, %v4367
        %v4369 = vpop.f32.mrf.mxu0
        %4370 = vmatprep.mubr.f32.mxu0 %v4235
        %4371 = vmatmul.mubr.f32.gmra.mxu0 %v4169
        %v4372 = vpop.f32.mrf.mxu0
        %v4373 = vadd.f32 0.0, %v4372
        %v4374 = vpop.f32.mrf.mxu0
        %4375 = vmatprep.mubr.f32.mxu0 %v4238
        %4376 = vmatmul.mubr.f32.gmra.mxu0 %v4171
        %v4377 = vpop.f32.mrf.mxu0
        %v4378 = vadd.f32 0.0, %v4377
        %v4379 = vpop.f32.mrf.mxu0
        %4380 = vmatprep.mubr.f32.mxu0 %v4241
        %4381 = vmatmul.mubr.f32.gmra.mxu0 %v4173
        %v4382 = vpop.f32.mrf.mxu0
        %v4383 = vadd.f32 0.0, %v4382
        %v4384 = vpop.f32.mrf.mxu0
        %4385 = vmatprep.mubr.f32.mxu0 %v4244
        %4386 = vmatmul.mubr.f32.gmra.mxu0 %v4175
        %v4387 = vpop.f32.mrf.mxu0
        %v4388 = vadd.f32 0.0, %v4387
        %v4389 = vpop.f32.mrf.mxu0
        %4390 = vdwg.mxu0
        %s4391 = scalar_lea.vmem %s7, 168
        %v4392 = vld [vmem:[%s4391] sm:$0xff]
        %v4393 = vld [vmem:[%s4391 + $0x8] sm:$0xff]
        %v4394 = vld [vmem:[%s4391 + $0x10] sm:$0xff]
        %v4395 = vld [vmem:[%s4391 + $0x18] sm:$0xff]
        %v4396 = vld [vmem:[%s4391 + $0x20] sm:$0xff]
        %v4397 = vld [vmem:[%s4391 + $0x28] sm:$0xff]
        %v4398 = vld [vmem:[%s4391 + $0x30] sm:$0xff]
        %v4399 = vld [vmem:[%s4391 + $0x38] sm:$0xff]
        %v4400 = vld [vmem:[%s4391 + $0x40] sm:$0xff]
        %v4401 = vld [vmem:[%s4391 + $0x48] sm:$0xff]
        %v4402 = vld [vmem:[%s4391 + $0x50] sm:$0xff]
        %v4403 = vld [vmem:[%s4391 + $0x58] sm:$0xff]
        %v4404 = vld [vmem:[%s4391 + $0x60] sm:$0xff]
        %v4405 = vld [vmem:[%s4391 + $0x68] sm:$0xff]
        %v4406 = vld [vmem:[%s4391 + $0x70] sm:$0xff]
        %v4407 = vld [vmem:[%s4391 + $0x78] sm:$0xff]
        %v4408 = vld [vmem:[%s4391 + $0x80] sm:$0xff]
        %v4409 = vld [vmem:[%s4391 + $0x88] sm:$0xff]
        %v4410 = vld [vmem:[%s4391 + $0x90] sm:$0xff]
        %v4411 = vld [vmem:[%s4391 + $0x98] sm:$0xff]
        %v4412 = vld [vmem:[%s4391 + $0xa0] sm:$0xff]
        %4413 = vmatprep.subr.mxu0 0.0
        %4414 = vmatpush1.msra.mxu0 %v4407
        %4415 = vmatprep.subr.mxu0 0.0
        %4416 = vmatpush1.msra.mxu0 %v4406
        %4417 = vmatprep.subr.mxu0 0.0
        %4418 = vmatpush1.msra.mxu0 %v4405
        %4419 = vmatprep.subr.mxu0 0.0
        %4420 = vmatpush1.msra.mxu0 %v4404
        %4421 = vmatprep.subr.mxu0 0.0
        %4422 = vmatpush1.msra.mxu0 %v4403
        %4423 = vmatprep.subr.mxu0 0.0
        %4424 = vmatpush1.msra.mxu0 %v4402
        %4425 = vmatprep.subr.mxu0 0.0
        %4426 = vmatpush1.msra.mxu0 %v4401
        %4427 = vmatprep.subr.mxu0 0.0
        %4428 = vmatpush1.msra.mxu0 %v4400
        %4429 = vmatprep.subr.mxu0 0.0
        %4430 = vmatpush1.msra.mxu0 %v4399
        %4431 = vmatprep.subr.mxu0 0.0
        %4432 = vmatpush1.msra.mxu0 %v4398
        %4433 = vmatprep.subr.mxu0 0.0
        %4434 = vmatpush1.msra.mxu0 %v4397
        %4435 = vmatprep.subr.mxu0 0.0
        %4436 = vmatpush1.msra.mxu0 %v4396
        %4437 = vmatprep.subr.mxu0 0.0
        %4438 = vmatpush1.msra.mxu0 %v4395
        %4439 = vmatprep.subr.mxu0 0.0
        %4440 = vmatpush1.msra.mxu0 %v4394
        %4441 = vmatprep.subr.mxu0 0.0
        %4442 = vmatpush1.msra.mxu0 %v4393
        %4443 = vmatprep.subr.mxu0 0.0
        %4444 = vmatpush1.msra.mxu0 %v4392
        %4445 = vmatprep.subr.mxu0 0.0
        %4446 = vmatpush2.msra.mxu0 0.0
        %4447 = vmatprep.subr.mxu0 0.0
        %4448 = vmatpush2.msra.mxu0 0.0
        %4449 = vmatprep.subr.mxu0 0.0
        %4450 = vmatpush2.msra.mxu0 0.0
        %4451 = vmatprep.subr.mxu0 0.0
        %4452 = vmatpush2.msra.mxu0 0.0
        %4453 = vmatprep.subr.mxu0 0.0
        %4454 = vmatpush2.msra.mxu0 0.0
        %4455 = vmatprep.subr.mxu0 0.0
        %4456 = vmatpush2.msra.mxu0 0.0
        %4457 = vmatprep.subr.mxu0 0.0
        %4458 = vmatpush2.msra.mxu0 0.0
        %4459 = vmatprep.subr.mxu0 0.0
        %4460 = vmatpush2.msra.mxu0 0.0
        %4461 = vmatprep.subr.mxu0 0.0
        %4462 = vmatpush2.msra.mxu0 0.0
        %4463 = vmatprep.subr.mxu0 0.0
        %4464 = vmatpush2.msra.mxu0 0.0
        %4465 = vmatprep.subr.mxu0 0.0
        %4466 = vmatpush2.msra.mxu0 0.0
        %4467 = vmatprep.subr.mxu0 0.0
        %4468 = vmatpush2.msra.mxu0 %v4412
        %4469 = vmatprep.subr.mxu0 0.0
        %4470 = vmatpush2.msra.mxu0 %v4411
        %4471 = vmatprep.subr.mxu0 0.0
        %4472 = vmatpush2.msra.mxu0 %v4410
        %4473 = vmatprep.subr.mxu0 0.0
        %4474 = vmatpush2.msra.mxu0 %v4409
        %4475 = vmatprep.subr.mxu0 0.0
        %4476 = vmatpush2.msra.mxu0 %v4408
        %4477 = vmatprep.mubr.f32.mxu0 %v4199
        %4478 = vmatmul.mubr.f32.gmra.mxu0 %v4145
        %v4479 = vpop.f32.mrf.mxu0
        %v4480 = vadd.f32 0.0, %v4479
        %v4481 = vpop.f32.mrf.mxu0
        %4482 = vmatprep.mubr.f32.mxu0 %v4202
        %4483 = vmatmul.mubr.f32.gmra.mxu0 %v4147
        %v4484 = vpop.f32.mrf.mxu0
        %v4485 = vadd.f32 0.0, %v4484
        %v4486 = vpop.f32.mrf.mxu0
        %4487 = vmatprep.mubr.f32.mxu0 %v4205
        %4488 = vmatmul.mubr.f32.gmra.mxu0 %v4149
        %v4489 = vpop.f32.mrf.mxu0
        %v4490 = vadd.f32 0.0, %v4489
        %v4491 = vpop.f32.mrf.mxu0
        %4492 = vmatprep.mubr.f32.mxu0 %v4208
        %4493 = vmatmul.mubr.f32.gmra.mxu0 %v4151
        %v4494 = vpop.f32.mrf.mxu0
        %v4495 = vadd.f32 0.0, %v4494
        %v4496 = vpop.f32.mrf.mxu0
        %4497 = vmatprep.mubr.f32.mxu0 %v4211
        %4498 = vmatmul.mubr.f32.gmra.mxu0 %v4153
        %v4499 = vpop.f32.mrf.mxu0
        %v4500 = vadd.f32 0.0, %v4499
        %v4501 = vpop.f32.mrf.mxu0
        %4502 = vmatprep.mubr.f32.mxu0 %v4214
        %4503 = vmatmul.mubr.f32.gmra.mxu0 %v4155
        %v4504 = vpop.f32.mrf.mxu0
        %v4505 = vadd.f32 0.0, %v4504
        %v4506 = vpop.f32.mrf.mxu0
        %4507 = vmatprep.mubr.f32.mxu0 %v4217
        %4508 = vmatmul.mubr.f32.gmra.mxu0 %v4157
        %v4509 = vpop.f32.mrf.mxu0
        %v4510 = vadd.f32 0.0, %v4509
        %v4511 = vpop.f32.mrf.mxu0
        %4512 = vmatprep.mubr.f32.mxu0 %v4220
        %4513 = vmatmul.mubr.f32.gmra.mxu0 %v4159
        %v4514 = vpop.f32.mrf.mxu0
        %v4515 = vadd.f32 0.0, %v4514
        %v4516 = vpop.f32.mrf.mxu0
        %4517 = vmatprep.mubr.f32.mxu0 %v4223
        %4518 = vmatmul.mubr.f32.gmra.mxu0 %v4161
        %v4519 = vpop.f32.mrf.mxu0
        %v4520 = vadd.f32 0.0, %v4519
        %v4521 = vpop.f32.mrf.mxu0
        %4522 = vmatprep.mubr.f32.mxu0 %v4226
        %4523 = vmatmul.mubr.f32.gmra.mxu0 %v4163
        %v4524 = vpop.f32.mrf.mxu0
        %v4525 = vadd.f32 0.0, %v4524
        %v4526 = vpop.f32.mrf.mxu0
        %4527 = vmatprep.mubr.f32.mxu0 %v4229
        %4528 = vmatmul.mubr.f32.gmra.mxu0 %v4165
        %v4529 = vpop.f32.mrf.mxu0
        %v4530 = vadd.f32 0.0, %v4529
        %v4531 = vpop.f32.mrf.mxu0
        %4532 = vmatprep.mubr.f32.mxu0 %v4232
        %4533 = vmatmul.mubr.f32.gmra.mxu0 %v4167
        %v4534 = vpop.f32.mrf.mxu0
        %v4535 = vadd.f32 0.0, %v4534
        %v4536 = vpop.f32.mrf.mxu0
        %4537 = vmatprep.mubr.f32.mxu0 %v4235
        %4538 = vmatmul.mubr.f32.gmra.mxu0 %v4169
        %v4539 = vpop.f32.mrf.mxu0
        %v4540 = vadd.f32 0.0, %v4539
        %v4541 = vpop.f32.mrf.mxu0
        %4542 = vmatprep.mubr.f32.mxu0 %v4238
        %4543 = vmatmul.mubr.f32.gmra.mxu0 %v4171
        %v4544 = vpop.f32.mrf.mxu0
        %v4545 = vadd.f32 0.0, %v4544
        %v4546 = vpop.f32.mrf.mxu0
        %4547 = vmatprep.mubr.f32.mxu0 %v4241
        %4548 = vmatmul.mubr.f32.gmra.mxu0 %v4173
        %v4549 = vpop.f32.mrf.mxu0
        %v4550 = vadd.f32 0.0, %v4549
        %v4551 = vpop.f32.mrf.mxu0
        %4552 = vmatprep.mubr.f32.mxu0 %v4244
        %4553 = vmatmul.mubr.f32.gmra.mxu0 %v4175
        %v4554 = vpop.f32.mrf.mxu0
        %v4555 = vadd.f32 0.0, %v4554
        %v4556 = vpop.f32.mrf.mxu0
        %4557 = vdwg.mxu0
        %v4558 = vmax.f32 %v4313, %v4480
        %v4559 = vmax.f32 %v4318, %v4485
        %v4560 = vmax.f32 %v4323, %v4490
        %v4561 = vmax.f32 %v4328, %v4495
        %v4562 = vmax.f32 %v4333, %v4500
        %v4563 = vmax.f32 %v4338, %v4505
        %v4564 = vmax.f32 %v4343, %v4510
        %v4565 = vmax.f32 %v4348, %v4515
        %v4566 = vmax.f32 %v4353, %v4520
        %v4567 = vmax.f32 %v4358, %v4525
        %v4568 = vmax.f32 %v4363, %v4530
        %v4569 = vmax.f32 %v4368, %v4535
        %v4570 = vmax.f32 %v4373, %v4540
        %v4571 = vmax.f32 %v4378, %v4545
        %v4572 = vmax.f32 %v4383, %v4550
        %v4573 = vmax.f32 %v4388, %v4555
        %v4574 = vld [vmem:[%s8] sm:$0xff]
        %v4575 = vld [vmem:[%s8 + $0x8] sm:$0xff]
        %v4576 = vld [vmem:[%s8 + $0x10] sm:$0xff]
        %v4577 = vld [vmem:[%s8 + $0x18] sm:$0xff]
        %v4578 = vld [vmem:[%s8 + $0x20] sm:$0xff]
        %v4579 = vld [vmem:[%s8 + $0x28] sm:$0xff]
        %v4580 = vld [vmem:[%s8 + $0x30] sm:$0xff]
        %4581 = vmatprep.subr.mxu0 0.0
        %4582 = vmatpush1.msra.mxu0 %v4573
        %4583 = vmatprep.subr.mxu0 0.0
        %4584 = vmatpush1.msra.mxu0 %v4572
        %4585 = vmatprep.subr.mxu0 0.0
        %4586 = vmatpush1.msra.mxu0 %v4571
        %4587 = vmatprep.subr.mxu0 0.0
        %4588 = vmatpush1.msra.mxu0 %v4570
        %4589 = vmatprep.subr.mxu0 0.0
        %4590 = vmatpush1.msra.mxu0 %v4569
        %4591 = vmatprep.subr.mxu0 0.0
        %4592 = vmatpush1.msra.mxu0 %v4568
        %4593 = vmatprep.subr.mxu0 0.0
        %4594 = vmatpush1.msra.mxu0 %v4567
        %4595 = vmatprep.subr.mxu0 0.0
        %4596 = vmatpush1.msra.mxu0 %v4566
        %4597 = vmatprep.subr.mxu0 0.0
        %4598 = vmatpush1.msra.mxu0 %v4565
        %4599 = vmatprep.subr.mxu0 0.0
        %4600 = vmatpush1.msra.mxu0 %v4564
        %4601 = vmatprep.subr.mxu0 0.0
        %4602 = vmatpush1.msra.mxu0 %v4563
        %4603 = vmatprep.subr.mxu0 0.0
        %4604 = vmatpush1.msra.mxu0 %v4562
        %4605 = vmatprep.subr.mxu0 0.0
        %4606 = vmatpush1.msra.mxu0 %v4561
        %4607 = vmatprep.subr.mxu0 0.0
        %4608 = vmatpush1.msra.mxu0 %v4560
        %4609 = vmatprep.subr.mxu0 0.0
        %4610 = vmatpush1.msra.mxu0 %v4559
        %4611 = vmatprep.subr.mxu0 0.0
        %4612 = vmatpush1.msra.mxu0 %v4558
        %4613 = vmatprep.subr.mxu0 0.0
        %4614 = vmatpush2.msra.mxu0 0.0
        %4615 = vmatprep.subr.mxu0 0.0
        %4616 = vmatpush2.msra.mxu0 0.0
        %4617 = vmatprep.subr.mxu0 0.0
        %4618 = vmatpush2.msra.mxu0 0.0
        %4619 = vmatprep.subr.mxu0 0.0
        %4620 = vmatpush2.msra.mxu0 0.0
        %4621 = vmatprep.subr.mxu0 0.0
        %4622 = vmatpush2.msra.mxu0 0.0
        %4623 = vmatprep.subr.mxu0 0.0
        %4624 = vmatpush2.msra.mxu0 0.0
        %4625 = vmatprep.subr.mxu0 0.0
        %4626 = vmatpush2.msra.mxu0 0.0
        %4627 = vmatprep.subr.mxu0 0.0
        %4628 = vmatpush2.msra.mxu0 0.0
        %4629 = vmatprep.subr.mxu0 0.0
        %4630 = vmatpush2.msra.mxu0 0.0
        %4631 = vmatprep.subr.mxu0 0.0
        %4632 = vmatpush2.msra.mxu0 0.0
        %4633 = vmatprep.subr.mxu0 0.0
        %4634 = vmatpush2.msra.mxu0 0.0
        %4635 = vmatprep.subr.mxu0 0.0
        %4636 = vmatpush2.msra.mxu0 0.0
        %4637 = vmatprep.subr.mxu0 0.0
        %4638 = vmatpush2.msra.mxu0 0.0
        %4639 = vmatprep.subr.mxu0 0.0
        %4640 = vmatpush2.msra.mxu0 0.0
        %4641 = vmatprep.subr.mxu0 0.0
        %4642 = vmatpush2.msra.mxu0 0.0
        %4643 = vmatprep.subr.mxu0 0.0
        %4644 = vmatpush2.msra.mxu0 0.0
        %4645 = vmatprep.mubr.f32.mxu0 0.0
        %4646 = vmatmul.mubr.f32.gmra.mxu0 %v4574
        %v4647 = vpop.f32.mrf.mxu0
        %v4648 = vadd.f32 0.0, %v4647
        %v4649 = vpop.f32.mrf.mxu0
        %4650 = vmatprep.mubr.f32.mxu0 0.0
        %4651 = vmatmul.mubr.f32.gmra.mxu0 %v4575
        %v4652 = vpop.f32.mrf.mxu0
        %v4653 = vadd.f32 0.0, %v4652
        %v4654 = vpop.f32.mrf.mxu0
        %4655 = vmatprep.mubr.f32.mxu0 0.0
        %4656 = vmatmul.mubr.f32.gmra.mxu0 %v4576
        %v4657 = vpop.f32.mrf.mxu0
        %v4658 = vadd.f32 0.0, %v4657
        %v4659 = vpop.f32.mrf.mxu0
        %4660 = vmatprep.mubr.f32.mxu0 0.0
        %4661 = vmatmul.mubr.f32.gmra.mxu0 %v4577
        %v4662 = vpop.f32.mrf.mxu0
        %v4663 = vadd.f32 0.0, %v4662
        %v4664 = vpop.f32.mrf.mxu0
        %4665 = vmatprep.mubr.f32.mxu0 0.0
        %4666 = vmatmul.mubr.f32.gmra.mxu0 %v4578
        %v4667 = vpop.f32.mrf.mxu0
        %v4668 = vadd.f32 0.0, %v4667
        %v4669 = vpop.f32.mrf.mxu0
        %4670 = vmatprep.mubr.f32.mxu0 0.0
        %4671 = vmatmul.mubr.f32.gmra.mxu0 %v4579
        %v4672 = vpop.f32.mrf.mxu0
        %v4673 = vadd.f32 0.0, %v4672
        %v4674 = vpop.f32.mrf.mxu0
        %4675 = vmatprep.mubr.f32.mxu0 0.0
        %4676 = vmatmul.mubr.f32.gmra.mxu0 %v4580
        %v4677 = vpop.f32.mrf.mxu0
        %v4678 = vadd.f32 0.0, %v4677
        %v4679 = vpop.f32.mrf.mxu0
        %4680 = vdwg.mxu0
        %s4681 = scalar_lea.vmem %s8, 56
        %v4682 = vld [vmem:[%s4681] sm:$0xff]
        %v4683 = vld [vmem:[%s4681 + $0x8] sm:$0xff]
        %v4684 = vld [vmem:[%s4681 + $0x10] sm:$0xff]
        %v4685 = vld [vmem:[%s4681 + $0x18] sm:$0xff]
        %v4686 = vld [vmem:[%s4681 + $0x20] sm:$0xff]
        %v4687 = vld [vmem:[%s4681 + $0x28] sm:$0xff]
        %v4688 = vld [vmem:[%s4681 + $0x30] sm:$0xff]
        %4689 = vmatprep.subr.mxu0 0.0
        %4690 = vmatpush1.msra.mxu0 %v4573
        %4691 = vmatprep.subr.mxu0 0.0
        %4692 = vmatpush1.msra.mxu0 %v4572
        %4693 = vmatprep.subr.mxu0 0.0
        %4694 = vmatpush1.msra.mxu0 %v4571
        %4695 = vmatprep.subr.mxu0 0.0
        %4696 = vmatpush1.msra.mxu0 %v4570
        %4697 = vmatprep.subr.mxu0 0.0
        %4698 = vmatpush1.msra.mxu0 %v4569
        %4699 = vmatprep.subr.mxu0 0.0
        %4700 = vmatpush1.msra.mxu0 %v4568
        %4701 = vmatprep.subr.mxu0 0.0
        %4702 = vmatpush1.msra.mxu0 %v4567
        %4703 = vmatprep.subr.mxu0 0.0
        %4704 = vmatpush1.msra.mxu0 %v4566
        %4705 = vmatprep.subr.mxu0 0.0
        %4706 = vmatpush1.msra.mxu0 %v4565
        %4707 = vmatprep.subr.mxu0 0.0
        %4708 = vmatpush1.msra.mxu0 %v4564
        %4709 = vmatprep.subr.mxu0 0.0
        %4710 = vmatpush1.msra.mxu0 %v4563
        %4711 = vmatprep.subr.mxu0 0.0
        %4712 = vmatpush1.msra.mxu0 %v4562
        %4713 = vmatprep.subr.mxu0 0.0
        %4714 = vmatpush1.msra.mxu0 %v4561
        %4715 = vmatprep.subr.mxu0 0.0
        %4716 = vmatpush1.msra.mxu0 %v4560
        %4717 = vmatprep.subr.mxu0 0.0
        %4718 = vmatpush1.msra.mxu0 %v4559
        %4719 = vmatprep.subr.mxu0 0.0
        %4720 = vmatpush1.msra.mxu0 %v4558
        %4721 = vmatprep.subr.mxu0 0.0
        %4722 = vmatpush2.msra.mxu0 0.0
        %4723 = vmatprep.subr.mxu0 0.0
        %4724 = vmatpush2.msra.mxu0 0.0
        %4725 = vmatprep.subr.mxu0 0.0
        %4726 = vmatpush2.msra.mxu0 0.0
        %4727 = vmatprep.subr.mxu0 0.0
        %4728 = vmatpush2.msra.mxu0 0.0
        %4729 = vmatprep.subr.mxu0 0.0
        %4730 = vmatpush2.msra.mxu0 0.0
        %4731 = vmatprep.subr.mxu0 0.0
        %4732 = vmatpush2.msra.mxu0 0.0
        %4733 = vmatprep.subr.mxu0 0.0
        %4734 = vmatpush2.msra.mxu0 0.0
        %4735 = vmatprep.subr.mxu0 0.0
        %4736 = vmatpush2.msra.mxu0 0.0
        %4737 = vmatprep.subr.mxu0 0.0
        %4738 = vmatpush2.msra.mxu0 0.0
        %4739 = vmatprep.subr.mxu0 0.0
        %4740 = vmatpush2.msra.mxu0 0.0
        %4741 = vmatprep.subr.mxu0 0.0
        %4742 = vmatpush2.msra.mxu0 0.0
        %4743 = vmatprep.subr.mxu0 0.0
        %4744 = vmatpush2.msra.mxu0 0.0
        %4745 = vmatprep.subr.mxu0 0.0
        %4746 = vmatpush2.msra.mxu0 0.0
        %4747 = vmatprep.subr.mxu0 0.0
        %4748 = vmatpush2.msra.mxu0 0.0
        %4749 = vmatprep.subr.mxu0 0.0
        %4750 = vmatpush2.msra.mxu0 0.0
        %4751 = vmatprep.subr.mxu0 0.0
        %4752 = vmatpush2.msra.mxu0 0.0
        %4753 = vmatprep.mubr.f32.mxu0 0.0
        %4754 = vmatmul.mubr.f32.gmra.mxu0 %v4682
        %v4755 = vpop.f32.mrf.mxu0
        %v4756 = vadd.f32 0.0, %v4755
        %v4757 = vpop.f32.mrf.mxu0
        %4758 = vmatprep.mubr.f32.mxu0 0.0
        %4759 = vmatmul.mubr.f32.gmra.mxu0 %v4683
        %v4760 = vpop.f32.mrf.mxu0
        %v4761 = vadd.f32 0.0, %v4760
        %v4762 = vpop.f32.mrf.mxu0
        %4763 = vmatprep.mubr.f32.mxu0 0.0
        %4764 = vmatmul.mubr.f32.gmra.mxu0 %v4684
        %v4765 = vpop.f32.mrf.mxu0
        %v4766 = vadd.f32 0.0, %v4765
        %v4767 = vpop.f32.mrf.mxu0
        %4768 = vmatprep.mubr.f32.mxu0 0.0
        %4769 = vmatmul.mubr.f32.gmra.mxu0 %v4685
        %v4770 = vpop.f32.mrf.mxu0
        %v4771 = vadd.f32 0.0, %v4770
        %v4772 = vpop.f32.mrf.mxu0
        %4773 = vmatprep.mubr.f32.mxu0 0.0
        %4774 = vmatmul.mubr.f32.gmra.mxu0 %v4686
        %v4775 = vpop.f32.mrf.mxu0
        %v4776 = vadd.f32 0.0, %v4775
        %v4777 = vpop.f32.mrf.mxu0
        %4778 = vmatprep.mubr.f32.mxu0 0.0
        %4779 = vmatmul.mubr.f32.gmra.mxu0 %v4687
        %v4780 = vpop.f32.mrf.mxu0
        %v4781 = vadd.f32 0.0, %v4780
        %v4782 = vpop.f32.mrf.mxu0
        %4783 = vmatprep.mubr.f32.mxu0 0.0
        %4784 = vmatmul.mubr.f32.gmra.mxu0 %v4688
        %v4785 = vpop.f32.mrf.mxu0
        %v4786 = vadd.f32 0.0, %v4785
        %v4787 = vpop.f32.mrf.mxu0
        %4788 = vdwg.mxu0
        %v4789 = vmax.f32 %v4648, %v4756
        %v4790 = vmax.f32 %v4653, %v4761
        %v4791 = vmax.f32 %v4658, %v4766
        %v4792 = vmax.f32 %v4663, %v4771
        %v4793 = vmax.f32 %v4668, %v4776
        %v4794 = vmax.f32 %v4673, %v4781
        %v4795 = vmax.f32 %v4678, %v4786
        %v4796 = vld [vmem:[%s9] sm:$0xff]
        %v4797 = vld [vmem:[%s9 + $0x8] sm:$0xff]
        %v4798 = vld [vmem:[%s9 + $0x10] sm:$0xff]
        %v4799 = vld [vmem:[%s9 + $0x18] sm:$0xff]
        %v4800 = vld [vmem:[%s9 + $0x20] sm:$0xff]
        %v4801 = vld [vmem:[%s9 + $0x28] sm:$0xff]
        %v4802 = vld [vmem:[%s9 + $0x30] sm:$0xff]
        %v4803 = vld [vmem:[%s9 + $0x38] sm:$0xff]
        %v4804 = vld [vmem:[%s9 + $0x40] sm:$0xff]
        %v4805 = vld [vmem:[%s9 + $0x48] sm:$0xff]
        %v4806 = vld [vmem:[%s9 + $0x50] sm:$0xf]
        %s4807 = scalar_lea.vmem %s9, 88
        %v4808 = vld [vmem:[%s4807] sm:$0xff]
        %v4809 = vld [vmem:[%s4807 + $0x8] sm:$0xff]
        %v4810 = vld [vmem:[%s4807 + $0x10] sm:$0xff]
        %v4811 = vld [vmem:[%s4807 + $0x18] sm:$0xff]
        %v4812 = vld [vmem:[%s4807 + $0x20] sm:$0xff]
        %v4813 = vld [vmem:[%s4807 + $0x28] sm:$0xff]
        %v4814 = vld [vmem:[%s4807 + $0x30] sm:$0xff]
        %v4815 = vld [vmem:[%s4807 + $0x38] sm:$0xff]
        %v4816 = vld [vmem:[%s4807 + $0x40] sm:$0xff]
        %v4817 = vld [vmem:[%s4807 + $0x48] sm:$0xff]
        %v4818 = vld [vmem:[%s4807 + $0x50] sm:$0xf]
        %v4820 = vsel %vm3399, %v4790, 0
        %v4823 = vsel %vm3448, %v4818, 0
        %4825 = vmatprep.subr.mxu0 0.0
        %4826 = vmatpush1.msra.mxu0 0.0
        %4827 = vmatprep.subr.mxu0 0.0
        %4828 = vmatpush1.msra.mxu0 0.0
        %4829 = vmatprep.subr.mxu0 0.0
        %4830 = vmatpush1.msra.mxu0 0.0
        %4831 = vmatprep.subr.mxu0 0.0
        %4832 = vmatpush1.msra.mxu0 0.0
        %4833 = vmatprep.subr.mxu0 0.0
        %4834 = vmatpush1.msra.mxu0 0.0
        %4835 = vmatprep.subr.mxu0 0.0
        %4836 = vmatpush1.msra.mxu0 %v4823
        %4837 = vmatprep.subr.mxu0 0.0
        %4838 = vmatpush1.msra.mxu0 %v4817
        %4839 = vmatprep.subr.mxu0 0.0
        %4840 = vmatpush1.msra.mxu0 %v4816
        %4841 = vmatprep.subr.mxu0 0.0
        %4842 = vmatpush1.msra.mxu0 %v4815
        %4843 = vmatprep.subr.mxu0 0.0
        %4844 = vmatpush1.msra.mxu0 %v4814
        %4845 = vmatprep.subr.mxu0 0.0
        %4846 = vmatpush1.msra.mxu0 %v4813
        %4847 = vmatprep.subr.mxu0 0.0
        %4848 = vmatpush1.msra.mxu0 %v4812
        %4849 = vmatprep.subr.mxu0 0.0
        %4850 = vmatpush1.msra.mxu0 %v4811
        %4851 = vmatprep.subr.mxu0 0.0
        %4852 = vmatpush1.msra.mxu0 %v4810
        %4853 = vmatprep.subr.mxu0 0.0
        %4854 = vmatpush1.msra.mxu0 %v4809
        %4855 = vmatprep.subr.mxu0 0.0
        %4856 = vmatpush1.msra.mxu0 %v4808
        %4857 = vmatprep.subr.mxu0 0.0
        %4858 = vmatpush2.msra.mxu0 0.0
        %4859 = vmatprep.subr.mxu0 0.0
        %4860 = vmatpush2.msra.mxu0 0.0
        %4861 = vmatprep.subr.mxu0 0.0
        %4862 = vmatpush2.msra.mxu0 0.0
        %4863 = vmatprep.subr.mxu0 0.0
        %4864 = vmatpush2.msra.mxu0 0.0
        %4865 = vmatprep.subr.mxu0 0.0
        %4866 = vmatpush2.msra.mxu0 0.0
        %4867 = vmatprep.subr.mxu0 0.0
        %4868 = vmatpush2.msra.mxu0 0.0
        %4869 = vmatprep.subr.mxu0 0.0
        %4870 = vmatpush2.msra.mxu0 0.0
        %4871 = vmatprep.subr.mxu0 0.0
        %4872 = vmatpush2.msra.mxu0 0.0
        %4873 = vmatprep.subr.mxu0 0.0
        %4874 = vmatpush2.msra.mxu0 0.0
        %4875 = vmatprep.subr.mxu0 0.0
        %4876 = vmatpush2.msra.mxu0 0.0
        %4877 = vmatprep.subr.mxu0 0.0
        %4878 = vmatpush2.msra.mxu0 0.0
        %4879 = vmatprep.subr.mxu0 0.0
        %4880 = vmatpush2.msra.mxu0 0.0
        %4881 = vmatprep.subr.mxu0 0.0
        %4882 = vmatpush2.msra.mxu0 0.0
        %4883 = vmatprep.subr.mxu0 0.0
        %4884 = vmatpush2.msra.mxu0 0.0
        %4885 = vmatprep.subr.mxu0 0.0
        %4886 = vmatpush2.msra.mxu0 0.0
        %4887 = vmatprep.subr.mxu0 0.0
        %4888 = vmatpush2.msra.mxu0 0.0
        %4889 = vmatprep.mubr.f32.mxu0 0.0
        %4890 = vmatmul.mubr.f32.gmra.mxu0 %v4820
        %v4891 = vpop.f32.mrf.mxu0
        %v4892 = vadd.f32 0.0, %v4891
        %v4893 = vpop.f32.mrf.mxu0
        %4894 = vdwg.mxu0
        %v4896 = vsel %vm3399, %v4789, 0
        %v4899 = vsel %vm3448, %v4806, 0
        %4901 = vmatprep.subr.mxu0 0.0
        %4902 = vmatpush1.msra.mxu0 0.0
        %4903 = vmatprep.subr.mxu0 0.0
        %4904 = vmatpush1.msra.mxu0 0.0
        %4905 = vmatprep.subr.mxu0 0.0
        %4906 = vmatpush1.msra.mxu0 0.0
        %4907 = vmatprep.subr.mxu0 0.0
        %4908 = vmatpush1.msra.mxu0 0.0
        %4909 = vmatprep.subr.mxu0 0.0
        %4910 = vmatpush1.msra.mxu0 0.0
        %4911 = vmatprep.subr.mxu0 0.0
        %4912 = vmatpush1.msra.mxu0 %v4899
        %4913 = vmatprep.subr.mxu0 0.0
        %4914 = vmatpush1.msra.mxu0 %v4805
        %4915 = vmatprep.subr.mxu0 0.0
        %4916 = vmatpush1.msra.mxu0 %v4804
        %4917 = vmatprep.subr.mxu0 0.0
        %4918 = vmatpush1.msra.mxu0 %v4803
        %4919 = vmatprep.subr.mxu0 0.0
        %4920 = vmatpush1.msra.mxu0 %v4802
        %4921 = vmatprep.subr.mxu0 0.0
        %4922 = vmatpush1.msra.mxu0 %v4801
        %4923 = vmatprep.subr.mxu0 0.0
        %4924 = vmatpush1.msra.mxu0 %v4800
        %4925 = vmatprep.subr.mxu0 0.0
        %4926 = vmatpush1.msra.mxu0 %v4799
        %4927 = vmatprep.subr.mxu0 0.0
        %4928 = vmatpush1.msra.mxu0 %v4798
        %4929 = vmatprep.subr.mxu0 0.0
        %4930 = vmatpush1.msra.mxu0 %v4797
        %4931 = vmatprep.subr.mxu0 0.0
        %4932 = vmatpush1.msra.mxu0 %v4796
        %4933 = vmatprep.subr.mxu0 0.0
        %4934 = vmatpush2.msra.mxu0 0.0
        %4935 = vmatprep.subr.mxu0 0.0
        %4936 = vmatpush2.msra.mxu0 0.0
        %4937 = vmatprep.subr.mxu0 0.0
        %4938 = vmatpush2.msra.mxu0 0.0
        %4939 = vmatprep.subr.mxu0 0.0
        %4940 = vmatpush2.msra.mxu0 0.0
        %4941 = vmatprep.subr.mxu0 0.0
        %4942 = vmatpush2.msra.mxu0 0.0
        %4943 = vmatprep.subr.mxu0 0.0
        %4944 = vmatpush2.msra.mxu0 0.0
        %4945 = vmatprep.subr.mxu0 0.0
        %4946 = vmatpush2.msra.mxu0 0.0
        %4947 = vmatprep.subr.mxu0 0.0
        %4948 = vmatpush2.msra.mxu0 0.0
        %4949 = vmatprep.subr.mxu0 0.0
        %4950 = vmatpush2.msra.mxu0 0.0
        %4951 = vmatprep.subr.mxu0 0.0
        %4952 = vmatpush2.msra.mxu0 0.0
        %4953 = vmatprep.subr.mxu0 0.0
        %4954 = vmatpush2.msra.mxu0 0.0
        %4955 = vmatprep.subr.mxu0 0.0
        %4956 = vmatpush2.msra.mxu0 0.0
        %4957 = vmatprep.subr.mxu0 0.0
        %4958 = vmatpush2.msra.mxu0 0.0
        %4959 = vmatprep.subr.mxu0 0.0
        %4960 = vmatpush2.msra.mxu0 0.0
        %4961 = vmatprep.subr.mxu0 0.0
        %4962 = vmatpush2.msra.mxu0 0.0
        %4963 = vmatprep.subr.mxu0 0.0
        %4964 = vmatpush2.msra.mxu0 0.0
        %4965 = vmatprep.mubr.f32.mxu0 0.0
        %4966 = vmatmul.mubr.f32.gmra.mxu0 %v4896
        %v4967 = vpop.f32.mrf.mxu0
        %v4968 = vadd.f32 %v4892, %v4967
        %v4969 = vpop.f32.mrf.mxu0
        %4970 = vdwg.mxu0
        %s4971 = scalar_lea.vmem %s9, 176
        %v4972 = vld [vmem:[%s4971] sm:$0xff]
        %v4973 = vld [vmem:[%s4971 + $0x8] sm:$0xff]
        %v4974 = vld [vmem:[%s4971 + $0x10] sm:$0xff]
        %v4975 = vld [vmem:[%s4971 + $0x18] sm:$0xff]
        %v4976 = vld [vmem:[%s4971 + $0x20] sm:$0xff]
        %v4977 = vld [vmem:[%s4971 + $0x28] sm:$0xff]
        %v4978 = vld [vmem:[%s4971 + $0x30] sm:$0xff]
        %v4979 = vld [vmem:[%s4971 + $0x38] sm:$0xff]
        %v4980 = vld [vmem:[%s4971 + $0x40] sm:$0xff]
        %v4981 = vld [vmem:[%s4971 + $0x48] sm:$0xff]
        %v4982 = vld [vmem:[%s4971 + $0x50] sm:$0xf]
        %v4984 = vsel %vm3399, %v4791, 0
        %v4987 = vsel %vm3448, %v4982, 0
        %4989 = vmatprep.subr.mxu0 0.0
        %4990 = vmatpush1.msra.mxu0 0.0
        %4991 = vmatprep.subr.mxu0 0.0
        %4992 = vmatpush1.msra.mxu0 0.0
        %4993 = vmatprep.subr.mxu0 0.0
        %4994 = vmatpush1.msra.mxu0 0.0
        %4995 = vmatprep.subr.mxu0 0.0
        %4996 = vmatpush1.msra.mxu0 0.0
        %4997 = vmatprep.subr.mxu0 0.0
        %4998 = vmatpush1.msra.mxu0 0.0
        %4999 = vmatprep.subr.mxu0 0.0
        %5000 = vmatpush1.msra.mxu0 %v4987
        %5001 = vmatprep.subr.mxu0 0.0
        %5002 = vmatpush1.msra.mxu0 %v4981
        %5003 = vmatprep.subr.mxu0 0.0
        %5004 = vmatpush1.msra.mxu0 %v4980
        %5005 = vmatprep.subr.mxu0 0.0
        %5006 = vmatpush1.msra.mxu0 %v4979
        %5007 = vmatprep.subr.mxu0 0.0
        %5008 = vmatpush1.msra.mxu0 %v4978
        %5009 = vmatprep.subr.mxu0 0.0
        %5010 = vmatpush1.msra.mxu0 %v4977
        %5011 = vmatprep.subr.mxu0 0.0
        %5012 = vmatpush1.msra.mxu0 %v4976
        %5013 = vmatprep.subr.mxu0 0.0
        %5014 = vmatpush1.msra.mxu0 %v4975
        %5015 = vmatprep.subr.mxu0 0.0
        %5016 = vmatpush1.msra.mxu0 %v4974
        %5017 = vmatprep.subr.mxu0 0.0
        %5018 = vmatpush1.msra.mxu0 %v4973
        %5019 = vmatprep.subr.mxu0 0.0
        %5020 = vmatpush1.msra.mxu0 %v4972
        %5021 = vmatprep.subr.mxu0 0.0
        %5022 = vmatpush2.msra.mxu0 0.0
        %5023 = vmatprep.subr.mxu0 0.0
        %5024 = vmatpush2.msra.mxu0 0.0
        %5025 = vmatprep.subr.mxu0 0.0
        %5026 = vmatpush2.msra.mxu0 0.0
        %5027 = vmatprep.subr.mxu0 0.0
        %5028 = vmatpush2.msra.mxu0 0.0
        %5029 = vmatprep.subr.mxu0 0.0
        %5030 = vmatpush2.msra.mxu0 0.0
        %5031 = vmatprep.subr.mxu0 0.0
        %5032 = vmatpush2.msra.mxu0 0.0
        %5033 = vmatprep.subr.mxu0 0.0
        %5034 = vmatpush2.msra.mxu0 0.0
        %5035 = vmatprep.subr.mxu0 0.0
        %5036 = vmatpush2.msra.mxu0 0.0
        %5037 = vmatprep.subr.mxu0 0.0
        %5038 = vmatpush2.msra.mxu0 0.0
        %5039 = vmatprep.subr.mxu0 0.0
        %5040 = vmatpush2.msra.mxu0 0.0
        %5041 = vmatprep.subr.mxu0 0.0
        %5042 = vmatpush2.msra.mxu0 0.0
        %5043 = vmatprep.subr.mxu0 0.0
        %5044 = vmatpush2.msra.mxu0 0.0
        %5045 = vmatprep.subr.mxu0 0.0
        %5046 = vmatpush2.msra.mxu0 0.0
        %5047 = vmatprep.subr.mxu0 0.0
        %5048 = vmatpush2.msra.mxu0 0.0
        %5049 = vmatprep.subr.mxu0 0.0
        %5050 = vmatpush2.msra.mxu0 0.0
        %5051 = vmatprep.subr.mxu0 0.0
        %5052 = vmatpush2.msra.mxu0 0.0
        %5053 = vmatprep.mubr.f32.mxu0 0.0
        %5054 = vmatmul.mubr.f32.gmra.mxu0 %v4984
        %v5055 = vpop.f32.mrf.mxu0
        %v5056 = vadd.f32 0.0, %v5055
        %v5057 = vpop.f32.mrf.mxu0
        %5058 = vdwg.mxu0
        %v5059 = vadd.f32 %v4968, %v5056
        %s5060 = scalar_lea.vmem %s9, 264
        %v5061 = vld [vmem:[%s5060] sm:$0xff]
        %v5062 = vld [vmem:[%s5060 + $0x8] sm:$0xff]
        %v5063 = vld [vmem:[%s5060 + $0x10] sm:$0xff]
        %v5064 = vld [vmem:[%s5060 + $0x18] sm:$0xff]
        %v5065 = vld [vmem:[%s5060 + $0x20] sm:$0xff]
        %v5066 = vld [vmem:[%s5060 + $0x28] sm:$0xff]
        %v5067 = vld [vmem:[%s5060 + $0x30] sm:$0xff]
        %v5068 = vld [vmem:[%s5060 + $0x38] sm:$0xff]
        %v5069 = vld [vmem:[%s5060 + $0x40] sm:$0xff]
        %v5070 = vld [vmem:[%s5060 + $0x48] sm:$0xff]
        %v5071 = vld [vmem:[%s5060 + $0x50] sm:$0xf]
        %v5073 = vsel %vm3399, %v4792, 0
        %v5076 = vsel %vm3448, %v5071, 0
        %5078 = vmatprep.subr.mxu0 0.0
        %5079 = vmatpush1.msra.mxu0 0.0
        %5080 = vmatprep.subr.mxu0 0.0
        %5081 = vmatpush1.msra.mxu0 0.0
        %5082 = vmatprep.subr.mxu0 0.0
        %5083 = vmatpush1.msra.mxu0 0.0
        %5084 = vmatprep.subr.mxu0 0.0
        %5085 = vmatpush1.msra.mxu0 0.0
        %5086 = vmatprep.subr.mxu0 0.0
        %5087 = vmatpush1.msra.mxu0 0.0
        %5088 = vmatprep.subr.mxu0 0.0
        %5089 = vmatpush1.msra.mxu0 %v5076
        %5090 = vmatprep.subr.mxu0 0.0
        %5091 = vmatpush1.msra.mxu0 %v5070
        %5092 = vmatprep.subr.mxu0 0.0
        %5093 = vmatpush1.msra.mxu0 %v5069
        %5094 = vmatprep.subr.mxu0 0.0
        %5095 = vmatpush1.msra.mxu0 %v5068
        %5096 = vmatprep.subr.mxu0 0.0
        %5097 = vmatpush1.msra.mxu0 %v5067
        %5098 = vmatprep.subr.mxu0 0.0
        %5099 = vmatpush1.msra.mxu0 %v5066
        %5100 = vmatprep.subr.mxu0 0.0
        %5101 = vmatpush1.msra.mxu0 %v5065
        %5102 = vmatprep.subr.mxu0 0.0
        %5103 = vmatpush1.msra.mxu0 %v5064
        %5104 = vmatprep.subr.mxu0 0.0
        %5105 = vmatpush1.msra.mxu0 %v5063
        %5106 = vmatprep.subr.mxu0 0.0
        %5107 = vmatpush1.msra.mxu0 %v5062
        %5108 = vmatprep.subr.mxu0 0.0
        %5109 = vmatpush1.msra.mxu0 %v5061
        %5110 = vmatprep.subr.mxu0 0.0
        %5111 = vmatpush2.msra.mxu0 0.0
        %5112 = vmatprep.subr.mxu0 0.0
        %5113 = vmatpush2.msra.mxu0 0.0
        %5114 = vmatprep.subr.mxu0 0.0
        %5115 = vmatpush2.msra.mxu0 0.0
        %5116 = vmatprep.subr.mxu0 0.0
        %5117 = vmatpush2.msra.mxu0 0.0
        %5118 = vmatprep.subr.mxu0 0.0
        %5119 = vmatpush2.msra.mxu0 0.0
        %5120 = vmatprep.subr.mxu0 0.0
        %5121 = vmatpush2.msra.mxu0 0.0
        %5122 = vmatprep.subr.mxu0 0.0
        %5123 = vmatpush2.msra.mxu0 0.0
        %5124 = vmatprep.subr.mxu0 0.0
        %5125 = vmatpush2.msra.mxu0 0.0
        %5126 = vmatprep.subr.mxu0 0.0
        %5127 = vmatpush2.msra.mxu0 0.0
        %5128 = vmatprep.subr.mxu0 0.0
        %5129 = vmatpush2.msra.mxu0 0.0
        %5130 = vmatprep.subr.mxu0 0.0
        %5131 = vmatpush2.msra.mxu0 0.0
        %5132 = vmatprep.subr.mxu0 0.0
        %5133 = vmatpush2.msra.mxu0 0.0
        %5134 = vmatprep.subr.mxu0 0.0
        %5135 = vmatpush2.msra.mxu0 0.0
        %5136 = vmatprep.subr.mxu0 0.0
        %5137 = vmatpush2.msra.mxu0 0.0
        %5138 = vmatprep.subr.mxu0 0.0
        %5139 = vmatpush2.msra.mxu0 0.0
        %5140 = vmatprep.subr.mxu0 0.0
        %5141 = vmatpush2.msra.mxu0 0.0
        %5142 = vmatprep.mubr.f32.mxu0 0.0
        %5143 = vmatmul.mubr.f32.gmra.mxu0 %v5073
        %v5144 = vpop.f32.mrf.mxu0
        %v5145 = vadd.f32 0.0, %v5144
        %v5146 = vpop.f32.mrf.mxu0
        %5147 = vdwg.mxu0
        %v5148 = vadd.f32 %v5059, %v5145
        %s5149 = scalar_lea.vmem %s9, 352
        %v5150 = vld [vmem:[%s5149] sm:$0xff]
        %v5151 = vld [vmem:[%s5149 + $0x8] sm:$0xff]
        %v5152 = vld [vmem:[%s5149 + $0x10] sm:$0xff]
        %v5153 = vld [vmem:[%s5149 + $0x18] sm:$0xff]
        %v5154 = vld [vmem:[%s5149 + $0x20] sm:$0xff]
        %v5155 = vld [vmem:[%s5149 + $0x28] sm:$0xff]
        %v5156 = vld [vmem:[%s5149 + $0x30] sm:$0xff]
        %v5157 = vld [vmem:[%s5149 + $0x38] sm:$0xff]
        %v5158 = vld [vmem:[%s5149 + $0x40] sm:$0xff]
        %v5159 = vld [vmem:[%s5149 + $0x48] sm:$0xff]
        %v5160 = vld [vmem:[%s5149 + $0x50] sm:$0xf]
        %v5162 = vsel %vm3399, %v4793, 0
        %v5165 = vsel %vm3448, %v5160, 0
        %5167 = vmatprep.subr.mxu0 0.0
        %5168 = vmatpush1.msra.mxu0 0.0
        %5169 = vmatprep.subr.mxu0 0.0
        %5170 = vmatpush1.msra.mxu0 0.0
        %5171 = vmatprep.subr.mxu0 0.0
        %5172 = vmatpush1.msra.mxu0 0.0
        %5173 = vmatprep.subr.mxu0 0.0
        %5174 = vmatpush1.msra.mxu0 0.0
        %5175 = vmatprep.subr.mxu0 0.0
        %5176 = vmatpush1.msra.mxu0 0.0
        %5177 = vmatprep.subr.mxu0 0.0
        %5178 = vmatpush1.msra.mxu0 %v5165
        %5179 = vmatprep.subr.mxu0 0.0
        %5180 = vmatpush1.msra.mxu0 %v5159
        %5181 = vmatprep.subr.mxu0 0.0
        %5182 = vmatpush1.msra.mxu0 %v5158
        %5183 = vmatprep.subr.mxu0 0.0
        %5184 = vmatpush1.msra.mxu0 %v5157
        %5185 = vmatprep.subr.mxu0 0.0
        %5186 = vmatpush1.msra.mxu0 %v5156
        %5187 = vmatprep.subr.mxu0 0.0
        %5188 = vmatpush1.msra.mxu0 %v5155
        %5189 = vmatprep.subr.mxu0 0.0
        %5190 = vmatpush1.msra.mxu0 %v5154
        %5191 = vmatprep.subr.mxu0 0.0
        %5192 = vmatpush1.msra.mxu0 %v5153
        %5193 = vmatprep.subr.mxu0 0.0
        %5194 = vmatpush1.msra.mxu0 %v5152
        %5195 = vmatprep.subr.mxu0 0.0
        %5196 = vmatpush1.msra.mxu0 %v5151
        %5197 = vmatprep.subr.mxu0 0.0
        %5198 = vmatpush1.msra.mxu0 %v5150
        %5199 = vmatprep.subr.mxu0 0.0
        %5200 = vmatpush2.msra.mxu0 0.0
        %5201 = vmatprep.subr.mxu0 0.0
        %5202 = vmatpush2.msra.mxu0 0.0
        %5203 = vmatprep.subr.mxu0 0.0
        %5204 = vmatpush2.msra.mxu0 0.0
        %5205 = vmatprep.subr.mxu0 0.0
        %5206 = vmatpush2.msra.mxu0 0.0
        %5207 = vmatprep.subr.mxu0 0.0
        %5208 = vmatpush2.msra.mxu0 0.0
        %5209 = vmatprep.subr.mxu0 0.0
        %5210 = vmatpush2.msra.mxu0 0.0
        %5211 = vmatprep.subr.mxu0 0.0
        %5212 = vmatpush2.msra.mxu0 0.0
        %5213 = vmatprep.subr.mxu0 0.0
        %5214 = vmatpush2.msra.mxu0 0.0
        %5215 = vmatprep.subr.mxu0 0.0
        %5216 = vmatpush2.msra.mxu0 0.0
        %5217 = vmatprep.subr.mxu0 0.0
        %5218 = vmatpush2.msra.mxu0 0.0
        %5219 = vmatprep.subr.mxu0 0.0
        %5220 = vmatpush2.msra.mxu0 0.0
        %5221 = vmatprep.subr.mxu0 0.0
        %5222 = vmatpush2.msra.mxu0 0.0
        %5223 = vmatprep.subr.mxu0 0.0
        %5224 = vmatpush2.msra.mxu0 0.0
        %5225 = vmatprep.subr.mxu0 0.0
        %5226 = vmatpush2.msra.mxu0 0.0
        %5227 = vmatprep.subr.mxu0 0.0
        %5228 = vmatpush2.msra.mxu0 0.0
        %5229 = vmatprep.subr.mxu0 0.0
        %5230 = vmatpush2.msra.mxu0 0.0
        %5231 = vmatprep.mubr.f32.mxu0 0.0
        %5232 = vmatmul.mubr.f32.gmra.mxu0 %v5162
        %v5233 = vpop.f32.mrf.mxu0
        %v5234 = vadd.f32 0.0, %v5233
        %v5235 = vpop.f32.mrf.mxu0
        %5236 = vdwg.mxu0
        %v5237 = vadd.f32 %v5148, %v5234
        %s5238 = scalar_lea.vmem %s9, 440
        %v5239 = vld [vmem:[%s5238] sm:$0xff]
        %v5240 = vld [vmem:[%s5238 + $0x8] sm:$0xff]
        %v5241 = vld [vmem:[%s5238 + $0x10] sm:$0xff]
        %v5242 = vld [vmem:[%s5238 + $0x18] sm:$0xff]
        %v5243 = vld [vmem:[%s5238 + $0x20] sm:$0xff]
        %v5244 = vld [vmem:[%s5238 + $0x28] sm:$0xff]
        %v5245 = vld [vmem:[%s5238 + $0x30] sm:$0xff]
        %v5246 = vld [vmem:[%s5238 + $0x38] sm:$0xff]
        %v5247 = vld [vmem:[%s5238 + $0x40] sm:$0xff]
        %v5248 = vld [vmem:[%s5238 + $0x48] sm:$0xff]
        %v5249 = vld [vmem:[%s5238 + $0x50] sm:$0xf]
        %v5251 = vsel %vm3399, %v4794, 0
        %v5254 = vsel %vm3448, %v5249, 0
        %5256 = vmatprep.subr.mxu0 0.0
        %5257 = vmatpush1.msra.mxu0 0.0
        %5258 = vmatprep.subr.mxu0 0.0
        %5259 = vmatpush1.msra.mxu0 0.0
        %5260 = vmatprep.subr.mxu0 0.0
        %5261 = vmatpush1.msra.mxu0 0.0
        %5262 = vmatprep.subr.mxu0 0.0
        %5263 = vmatpush1.msra.mxu0 0.0
        %5264 = vmatprep.subr.mxu0 0.0
        %5265 = vmatpush1.msra.mxu0 0.0
        %5266 = vmatprep.subr.mxu0 0.0
        %5267 = vmatpush1.msra.mxu0 %v5254
        %5268 = vmatprep.subr.mxu0 0.0
        %5269 = vmatpush1.msra.mxu0 %v5248
        %5270 = vmatprep.subr.mxu0 0.0
        %5271 = vmatpush1.msra.mxu0 %v5247
        %5272 = vmatprep.subr.mxu0 0.0
        %5273 = vmatpush1.msra.mxu0 %v5246
        %5274 = vmatprep.subr.mxu0 0.0
        %5275 = vmatpush1.msra.mxu0 %v5245
        %5276 = vmatprep.subr.mxu0 0.0
        %5277 = vmatpush1.msra.mxu0 %v5244
        %5278 = vmatprep.subr.mxu0 0.0
        %5279 = vmatpush1.msra.mxu0 %v5243
        %5280 = vmatprep.subr.mxu0 0.0
        %5281 = vmatpush1.msra.mxu0 %v5242
        %5282 = vmatprep.subr.mxu0 0.0
        %5283 = vmatpush1.msra.mxu0 %v5241
        %5284 = vmatprep.subr.mxu0 0.0
        %5285 = vmatpush1.msra.mxu0 %v5240
        %5286 = vmatprep.subr.mxu0 0.0
        %5287 = vmatpush1.msra.mxu0 %v5239
        %5288 = vmatprep.subr.mxu0 0.0
        %5289 = vmatpush2.msra.mxu0 0.0
        %5290 = vmatprep.subr.mxu0 0.0
        %5291 = vmatpush2.msra.mxu0 0.0
        %5292 = vmatprep.subr.mxu0 0.0
        %5293 = vmatpush2.msra.mxu0 0.0
        %5294 = vmatprep.subr.mxu0 0.0
        %5295 = vmatpush2.msra.mxu0 0.0
        %5296 = vmatprep.subr.mxu0 0.0
        %5297 = vmatpush2.msra.mxu0 0.0
        %5298 = vmatprep.subr.mxu0 0.0
        %5299 = vmatpush2.msra.mxu0 0.0
        %5300 = vmatprep.subr.mxu0 0.0
        %5301 = vmatpush2.msra.mxu0 0.0
        %5302 = vmatprep.subr.mxu0 0.0
        %5303 = vmatpush2.msra.mxu0 0.0
        %5304 = vmatprep.subr.mxu0 0.0
        %5305 = vmatpush2.msra.mxu0 0.0
        %5306 = vmatprep.subr.mxu0 0.0
        %5307 = vmatpush2.msra.mxu0 0.0
        %5308 = vmatprep.subr.mxu0 0.0
        %5309 = vmatpush2.msra.mxu0 0.0
        %5310 = vmatprep.subr.mxu0 0.0
        %5311 = vmatpush2.msra.mxu0 0.0
        %5312 = vmatprep.subr.mxu0 0.0
        %5313 = vmatpush2.msra.mxu0 0.0
        %5314 = vmatprep.subr.mxu0 0.0
        %5315 = vmatpush2.msra.mxu0 0.0
        %5316 = vmatprep.subr.mxu0 0.0
        %5317 = vmatpush2.msra.mxu0 0.0
        %5318 = vmatprep.subr.mxu0 0.0
        %5319 = vmatpush2.msra.mxu0 0.0
        %5320 = vmatprep.mubr.f32.mxu0 0.0
        %5321 = vmatmul.mubr.f32.gmra.mxu0 %v5251
        %v5322 = vpop.f32.mrf.mxu0
        %v5323 = vadd.f32 0.0, %v5322
        %v5324 = vpop.f32.mrf.mxu0
        %5325 = vdwg.mxu0
        %v5326 = vadd.f32 %v5237, %v5323
        %s5327 = scalar_lea.vmem %s9, 528
        %v5328 = vld [vmem:[%s5327] sm:$0xff]
        %v5329 = vld [vmem:[%s5327 + $0x8] sm:$0xff]
        %v5330 = vld [vmem:[%s5327 + $0x10] sm:$0xff]
        %v5331 = vld [vmem:[%s5327 + $0x18] sm:$0xff]
        %v5332 = vld [vmem:[%s5327 + $0x20] sm:$0xff]
        %v5333 = vld [vmem:[%s5327 + $0x28] sm:$0xff]
        %v5334 = vld [vmem:[%s5327 + $0x30] sm:$0xff]
        %v5335 = vld [vmem:[%s5327 + $0x38] sm:$0xff]
        %v5336 = vld [vmem:[%s5327 + $0x40] sm:$0xff]
        %v5337 = vld [vmem:[%s5327 + $0x48] sm:$0xff]
        %v5338 = vld [vmem:[%s5327 + $0x50] sm:$0xf]
        %v5340 = vsel %vm3399, %v4795, 0
        %v5343 = vsel %vm3448, %v5338, 0
        %5345 = vmatprep.subr.mxu0 0.0
        %5346 = vmatpush1.msra.mxu0 0.0
        %5347 = vmatprep.subr.mxu0 0.0
        %5348 = vmatpush1.msra.mxu0 0.0
        %5349 = vmatprep.subr.mxu0 0.0
        %5350 = vmatpush1.msra.mxu0 0.0
        %5351 = vmatprep.subr.mxu0 0.0
        %5352 = vmatpush1.msra.mxu0 0.0
        %5353 = vmatprep.subr.mxu0 0.0
        %5354 = vmatpush1.msra.mxu0 0.0
        %5355 = vmatprep.subr.mxu0 0.0
        %5356 = vmatpush1.msra.mxu0 %v5343
        %5357 = vmatprep.subr.mxu0 0.0
        %5358 = vmatpush1.msra.mxu0 %v5337
        %5359 = vmatprep.subr.mxu0 0.0
        %5360 = vmatpush1.msra.mxu0 %v5336
        %5361 = vmatprep.subr.mxu0 0.0
        %5362 = vmatpush1.msra.mxu0 %v5335
        %5363 = vmatprep.subr.mxu0 0.0
        %5364 = vmatpush1.msra.mxu0 %v5334
        %5365 = vmatprep.subr.mxu0 0.0
        %5366 = vmatpush1.msra.mxu0 %v5333
        %5367 = vmatprep.subr.mxu0 0.0
        %5368 = vmatpush1.msra.mxu0 %v5332
        %5369 = vmatprep.subr.mxu0 0.0
        %5370 = vmatpush1.msra.mxu0 %v5331
        %5371 = vmatprep.subr.mxu0 0.0
        %5372 = vmatpush1.msra.mxu0 %v5330
        %5373 = vmatprep.subr.mxu0 0.0
        %5374 = vmatpush1.msra.mxu0 %v5329
        %5375 = vmatprep.subr.mxu0 0.0
        %5376 = vmatpush1.msra.mxu0 %v5328
        %5377 = vmatprep.subr.mxu0 0.0
        %5378 = vmatpush2.msra.mxu0 0.0
        %5379 = vmatprep.subr.mxu0 0.0
        %5380 = vmatpush2.msra.mxu0 0.0
        %5381 = vmatprep.subr.mxu0 0.0
        %5382 = vmatpush2.msra.mxu0 0.0
        %5383 = vmatprep.subr.mxu0 0.0
        %5384 = vmatpush2.msra.mxu0 0.0
        %5385 = vmatprep.subr.mxu0 0.0
        %5386 = vmatpush2.msra.mxu0 0.0
        %5387 = vmatprep.subr.mxu0 0.0
        %5388 = vmatpush2.msra.mxu0 0.0
        %5389 = vmatprep.subr.mxu0 0.0
        %5390 = vmatpush2.msra.mxu0 0.0
        %5391 = vmatprep.subr.mxu0 0.0
        %5392 = vmatpush2.msra.mxu0 0.0
        %5393 = vmatprep.subr.mxu0 0.0
        %5394 = vmatpush2.msra.mxu0 0.0
        %5395 = vmatprep.subr.mxu0 0.0
        %5396 = vmatpush2.msra.mxu0 0.0
        %5397 = vmatprep.subr.mxu0 0.0
        %5398 = vmatpush2.msra.mxu0 0.0
        %5399 = vmatprep.subr.mxu0 0.0
        %5400 = vmatpush2.msra.mxu0 0.0
        %5401 = vmatprep.subr.mxu0 0.0
        %5402 = vmatpush2.msra.mxu0 0.0
        %5403 = vmatprep.subr.mxu0 0.0
        %5404 = vmatpush2.msra.mxu0 0.0
        %5405 = vmatprep.subr.mxu0 0.0
        %5406 = vmatpush2.msra.mxu0 0.0
        %5407 = vmatprep.subr.mxu0 0.0
        %5408 = vmatpush2.msra.mxu0 0.0
        %5409 = vmatprep.mubr.f32.mxu0 0.0
        %5410 = vmatmul.mubr.f32.gmra.mxu0 %v5340
        %v5411 = vpop.f32.mrf.mxu0
        %v5412 = vadd.f32 0.0, %v5411
        %v5413 = vpop.f32.mrf.mxu0
        %5414 = vdwg.mxu0
        %v5415 = vadd.f32 %v5326, %v5412
        %v5416 = vld [vmem:[%s10] sm:$0x1]
        %v5418 = vlaneseq
        %v5419 = vshrl.u32 %v5418, 7
        %v5420 = vsub.s32 0, %v5419
        %v5421 = vrot.slane %v5416, %v5420
        %v5423 = vadd.f32 %v5415, %v5421
        %v5424 = vmax.f32 %v5423, 0.0
        %v5425 = vld [vmem:[%s11] sm:$0xff]
        %v5426 = vld [vmem:[%s11 + $0x8] sm:$0xff]
        %v5427 = vld [vmem:[%s11 + $0x10] sm:$0xff]
        %v5428 = vld [vmem:[%s11 + $0x18] sm:$0xff]
        %v5429 = vld [vmem:[%s11 + $0x20] sm:$0xff]
        %v5430 = vld [vmem:[%s12] sm:$0x1]
        %v5432 = vlaneseq
        %v5433 = vshrl.u32 %v5432, 7
        %v5434 = vsub.s32 0, %v5433
        %v5435 = vrot.slane %v5430, %v5434
        %v5438 = vsel %vm1902, %v5424, 0
        %5440 = vmatprep.subr.mxu0 0.0
        %5441 = vmatpush1.msra.mxu0 0.0
        %5442 = vmatprep.subr.mxu0 0.0
        %5443 = vmatpush1.msra.mxu0 0.0
        %5444 = vmatprep.subr.mxu0 0.0
        %5445 = vmatpush1.msra.mxu0 0.0
        %5446 = vmatprep.subr.mxu0 0.0
        %5447 = vmatpush1.msra.mxu0 0.0
        %5448 = vmatprep.subr.mxu0 0.0
        %5449 = vmatpush1.msra.mxu0 0.0
        %5450 = vmatprep.subr.mxu0 0.0
        %5451 = vmatpush1.msra.mxu0 0.0
        %5452 = vmatprep.subr.mxu0 0.0
        %5453 = vmatpush1.msra.mxu0 0.0
        %5454 = vmatprep.subr.mxu0 0.0
        %5455 = vmatpush1.msra.mxu0 0.0
        %5456 = vmatprep.subr.mxu0 0.0
        %5457 = vmatpush1.msra.mxu0 0.0
        %5458 = vmatprep.subr.mxu0 0.0
        %5459 = vmatpush1.msra.mxu0 0.0
        %5460 = vmatprep.subr.mxu0 0.0
        %5461 = vmatpush1.msra.mxu0 0.0
        %5462 = vmatprep.subr.mxu0 0.0
        %5463 = vmatpush1.msra.mxu0 %v5429
        %5464 = vmatprep.subr.mxu0 0.0
        %5465 = vmatpush1.msra.mxu0 %v5428
        %5466 = vmatprep.subr.mxu0 0.0
        %5467 = vmatpush1.msra.mxu0 %v5427
        %5468 = vmatprep.subr.mxu0 0.0
        %5469 = vmatpush1.msra.mxu0 %v5426
        %5470 = vmatprep.subr.mxu0 0.0
        %5471 = vmatpush1.msra.mxu0 %v5425
        %5472 = vmatprep.subr.mxu0 0.0
        %5473 = vmatpush2.msra.mxu0 0.0
        %5474 = vmatprep.subr.mxu0 0.0
        %5475 = vmatpush2.msra.mxu0 0.0
        %5476 = vmatprep.subr.mxu0 0.0
        %5477 = vmatpush2.msra.mxu0 0.0
        %5478 = vmatprep.subr.mxu0 0.0
        %5479 = vmatpush2.msra.mxu0 0.0
        %5480 = vmatprep.subr.mxu0 0.0
        %5481 = vmatpush2.msra.mxu0 0.0
        %5482 = vmatprep.subr.mxu0 0.0
        %5483 = vmatpush2.msra.mxu0 0.0
        %5484 = vmatprep.subr.mxu0 0.0
        %5485 = vmatpush2.msra.mxu0 0.0
        %5486 = vmatprep.subr.mxu0 0.0
        %5487 = vmatpush2.msra.mxu0 0.0
        %5488 = vmatprep.subr.mxu0 0.0
        %5489 = vmatpush2.msra.mxu0 0.0
        %5490 = vmatprep.subr.mxu0 0.0
        %5491 = vmatpush2.msra.mxu0 0.0
        %5492 = vmatprep.subr.mxu0 0.0
        %5493 = vmatpush2.msra.mxu0 0.0
        %5494 = vmatprep.subr.mxu0 0.0
        %5495 = vmatpush2.msra.mxu0 0.0
        %5496 = vmatprep.subr.mxu0 0.0
        %5497 = vmatpush2.msra.mxu0 0.0
        %5498 = vmatprep.subr.mxu0 0.0
        %5499 = vmatpush2.msra.mxu0 0.0
        %5500 = vmatprep.subr.mxu0 0.0
        %5501 = vmatpush2.msra.mxu0 0.0
        %5502 = vmatprep.subr.mxu0 0.0
        %5503 = vmatpush2.msra.mxu0 0.0
        %5504 = vmatprep.mubr.f32.mxu0 0.0
        %5505 = vmatmul.mubr.f32.gmra.mxu0 %v5438
        %v5506 = vpop.f32.mrf.mxu0
        %v5507 = vadd.f32 %v5435, %v5506
        %v5508 = vpop.f32.mrf.mxu0
        %5509 = vdwg.mxu0
        %5510 = vst [vmem:[%s436] sm:$0xff] %v5507
        %s5511 = sand.u32 %s313, 1
        %s5512 = scalar_lea.sflag [#allocation4], %s5511
        %s5513 = sand.u32 %s313, 1
        %s5514 = smul.addr %s5513, 8
        %s5515 = scalar_lea.vmem [#allocation3], %s5514
        // Predicated region
        $region73: #{_mnist_forward.1} parent=71 // pred_check
          %p5516 = pneg %p323
        $region74: #{_mnist_forward.1} parent=71 // pred_check_branch
          %5518 = sbr.rel (%p5516) target = $region76
        $region75: #{_mnist_forward.1} parent=71 // pred_region
          %s5520 = ssub.s32 128, 128
          %5521 = vsyncadd %s5512, %s5520
          %s5522 = smul.addr %s27, 128
          %s5523 = scalar_lea.hbm %s13, %s5522
          %s5525 = sshll.u32 %s5515, 4
          %s5526 = int_to_ptr.vmem [resolvable:$true] %s5525
          %5528 = dma.vmem_to_hbm [thread:$0]  %s5526, 128, %s5523, %s5512
        $region76: #{_mnist_forward.1} parent=71 // pred_fallthru
          _
      $region72: #{_mnist_forward.1} parent=5 // pred_fallthru
        _
      %p5529 = scmp.le.s32.totalorder 2, %s22
      // Predicated region
      $region77: #{_mnist_forward.1} parent=5 // pred_check
        %p5530 = pneg %p5529
      $region78: #{_mnist_forward.1} parent=5 // pred_check_branch
        %5532 = sbr.rel (%p5530) target = $region80
      $region79: #{_mnist_forward.1} parent=5 // pred_region
        %s5533 = ssub.s32 %s22, 2
        // Predicated region
        $region81: #{_mnist_forward.1} parent=79 // pred_check
          %p5534 = pneg %p329
        $region82: #{_mnist_forward.1} parent=79 // pred_check_branch
          %5536 = sbr.rel (%p5534) target = $region84
        $region83: #{_mnist_forward.1} parent=79 // pred_region
          %s5537 = sand.u32 %s314, 1
          %s5538 = scalar_lea.sflag [#allocation4], %s5537
          %s5539 = sand.u32 %s314, 1
          %s5540 = smul.addr %s5539, 8
          %s5541 = scalar_lea.vmem [#allocation3], %s5540
          %5542 = dma.done %s5538, 128
        $region84: #{_mnist_forward.1} parent=79 // pred_fallthru
          _
      $region80: #{_mnist_forward.1} parent=5 // pred_fallthru
        _
    $region6: #{_mnist_forward.1} parent=1 // loop_footer
      %s26 = sadd.s32 1, %s22
    $region7: #{_mnist_forward.1} parent=1 // loop_footer_branch
      %21 = sbr.rel target = $region3
    $region8: #{_mnist_forward.1} parent=1 // loop_exit
      _
    %5543 = vsyncpa [#allocation4], 1
    %s5544 = scalar_lea.sflag [#allocation4], 1
    %5545 = vsyncpa %s5544, 1

</llo_original>
